<compile_context>
chip_gen: v5e
topology: v5e:2x2
jax: 0.10.0
libtpu: 0.0.40
codegen_flags: <defaults>
</compile_context>

<pallas_src>
import functools

import jax
import jax.numpy as jnp
from jax import lax
from jax.experimental import pallas as pl
from jax.experimental.pallas import tpu as pltpu


def _round_up(x, m):
    return (x + m - 1) // m * m


def _block_spec(shape, index_map, buffers=None):
    """BlockSpec with optional explicit pipeline depth (graceful fallback)."""
    if buffers is None:
        return pl.BlockSpec(shape, index_map)
    try:
        return pl.BlockSpec(shape, index_map, pipeline_mode=pl.Buffered(buffers))
    except (TypeError, AttributeError):
        return pl.BlockSpec(shape, index_map)


def _vmem_limit_bytes():
    # v7x: 64 MiB VMEM / TensorCore, v5e/v6e: 128 MiB. Never request the whole
    # physical capacity -- leave headroom for compiler scratch.
    try:
        cap = pltpu.get_tpu_info().vmem_capacity_bytes
    except Exception:
        cap = 64 * 1024 * 1024
    return int(min(cap * 3 // 4, 100 * 1024 * 1024))


# ----------------------------------------------------------------------------
# Kernel 1: gather + mean over the context dimension (manual row-gather DMAs).
# ----------------------------------------------------------------------------
def _mean_emb_kernel(x_idx, emb_hbm, out_ref, buf, sems, *, rows, ctx, inv_c):
    # x_idx:   (Bp*C,)          int32  flattened context indices (SMEM prefetch)
    # emb_hbm: (V+1, Dp)        f32    embedding table left in HBM (pl.ANY)
    # out_ref: (rows, Dp)       f32    mean embedding for this batch tile
    # buf:     (rows*ctx, 1, Dp) f32   VMEM landing buffer, one row per DMA
    # sems:    (rows*ctx,)             DMA completion semaphores
    i = pl.program_id(0)
    base = i * (rows * ctx)
    dp = buf.shape[-1]

    # Issue every row-gather DMA for this batch tile up front; they overlap.
    for k in range(rows * ctx):
        idx = x_idx[base + k]
        pltpu.make_async_copy(emb_hbm.at[pl.ds(idx, 1)], buf.at[k],
                              sems.at[k]).start()

    # Reduce over the context dimension as the copies complete.
    for r in range(rows):
        acc = jnp.zeros((1, dp), jnp.float32)
        for c in range(ctx):
            k = r * ctx + c
            pltpu.make_async_copy(emb_hbm.at[pl.ds(0, 1)], buf.at[k],
                                  sems.at[k]).wait()
            acc = acc + buf[k].astype(jnp.float32)
        out_ref[pl.ds(r, 1), :] = acc * inv_c


# ----------------------------------------------------------------------------
# Kernel 2: scores tile = mean_emb @ W_tile^T  (vocab axis tiled, parallel).
# ----------------------------------------------------------------------------
def _projection_kernel(mean_ref, w_ref, out_ref):
    # mean_ref: (Bp, Dp)      bf16   resident (constant index map)
    # w_ref:    (TV, Dp)      bf16   current vocab tile of the projection weight
    # out_ref:  (Bp, TV)      f32    scores tile (single dense lane-wide store)
    out_ref[...] = lax.dot_general(
        mean_ref[...], w_ref[...],
        dimension_numbers=(((1,), (1,)), ((), ())),   # contract last dims:
        preferred_element_type=jnp.float32)           # W used in native layout


def cbow_forward(x, emb_table, w, *, tile_v=512, rows_per_step=8):
    B, C = x.shape
    V, D = w.shape
    V1 = emb_table.shape[0]            # vocab_size + 1 (last row = padding, zeros)

    # --- padded / lane-aligned sizes ---------------------------------------
    Dp = _round_up(D, 128)
    Bp = _round_up(_round_up(B, 16), rows_per_step)    # 16: bf16 sublane packing
    tile_v = _round_up(min(tile_v, _round_up(V, 128)), 128)
    Vp = _round_up(V, tile_v)

    # Padded batch rows point at the (all-zero) padding row: harmless, sliced.
    x_p = jnp.pad(x.astype(jnp.int32), ((0, Bp - B), (0, 0)),
                  constant_values=V1 - 1)
    x_flat = x_p.reshape(-1)                           # 1-D SMEM prefetch
    emb_p = jnp.pad(emb_table.astype(jnp.float32), ((0, 0), (0, Dp - D)))
    w_p = jnp.pad(w, ((0, Vp - V), (0, Dp - D))).astype(jnp.bfloat16)

    inv_c = 1.0 / float(C)
    vmem_limit = _vmem_limit_bytes()

    # --- kernel 1: gather only B*C embedding rows from HBM, mean over C ----
    mean_f32 = pl.pallas_call(
        functools.partial(_mean_emb_kernel,
                          rows=rows_per_step, ctx=C, inv_c=inv_c),
        out_shape=jax.ShapeDtypeStruct((Bp, Dp), jnp.float32),
        grid_spec=pltpu.PrefetchScalarGridSpec(
            num_scalar_prefetch=1,                         # x_flat -> SMEM
            grid=(Bp // rows_per_step,),
            in_specs=[pl.BlockSpec(memory_space=pl.ANY)],  # emb table in HBM
            out_specs=pl.BlockSpec((rows_per_step, Dp), lambda i, x: (i, 0)),
            scratch_shapes=[
                pltpu.VMEM((rows_per_step * C, 1, Dp), jnp.float32),
                pltpu.SemaphoreType.DMA((rows_per_step * C,)),
            ]),
        compiler_params=pltpu.CompilerParams(
            dimension_semantics=("parallel",),
            vmem_limit_bytes=vmem_limit),
    )(x_flat, emb_p)

    mean_bf16 = mean_f32.astype(jnp.bfloat16)

    # --- kernel 2: scores = mean @ W^T over vocab tiles ---------------------
    grid = (Vp // tile_v,)
    flops = 2 * Bp * Dp * Vp
    bytes_accessed = Bp * Dp * 2 + Vp * Dp * 2 + Bp * Vp * 4

    out_p = pl.pallas_call(
        _projection_kernel,
        out_shape=jax.ShapeDtypeStruct((Bp, Vp), jnp.float32),
        grid_spec=pltpu.PrefetchScalarGridSpec(
            num_scalar_prefetch=0,
            grid=grid,
            in_specs=[
                # mean embedding: tiny, resident, constant index map.
                pl.BlockSpec((Bp, Dp), lambda j: (0, 0)),
                # W vocab tile: dominant HBM stream -> deeper pipeline.
                _block_spec((tile_v, Dp), lambda j: (j, 0), buffers=3),
            ],
            out_specs=pl.BlockSpec((Bp, tile_v), lambda j: (0, j)),
        ),
        compiler_params=pltpu.CompilerParams(
            dimension_semantics=("parallel",),     # independent tiles -> both TCs
            vmem_limit_bytes=vmem_limit),
        cost_estimate=pl.CostEstimate(
            flops=flops, transcendentals=0, bytes_accessed=bytes_accessed),
    )(mean_bf16, w_p)

    return out_p[:B, :V]


def reference_forward(x, emb_table, w):
    # Pure-JAX reference matching the PyTorch module.
    emb = jnp.take(emb_table, x, axis=0)        # (B, C, D)
    mean_emb = emb.mean(axis=1)                 # (B, D)
    return mean_emb @ w.T                       # (B, V)


if __name__ == "__main__":
    vocab_size = 32
    embedding_dim = 16
    batch = 8
    context = 4

    key = jax.random.PRNGKey(0)
    k_emb, k_w, k_x = jax.random.split(key, 3)

    # nn.Embedding init ~ N(0, 1); padding row (index vocab_size) forced to zero.
    emb_table = jax.random.normal(k_emb, (vocab_size + 1, embedding_dim),
                                  dtype=jnp.float32)
    emb_table = emb_table.at[vocab_size].set(0.0)

    # nn.Linear(bias=False) init ~ U(-1/sqrt(D), 1/sqrt(D)).
    bound = 1.0 / jnp.sqrt(embedding_dim)
    w = jax.random.uniform(k_w, (vocab_size, embedding_dim),
                           minval=-bound, maxval=bound, dtype=jnp.float32)

    # Context indices include some padding (== vocab_size).
    x = jax.random.randint(k_x, (batch, context), 0, vocab_size + 1,
                           dtype=jnp.int32)

    scores = cbow_forward(x, emb_table, w)
    jax.block_until_ready(scores)

    ref = reference_forward(x, emb_table, w)
    assert scores.shape == (batch, vocab_size)
    # W / mean are streamed as bf16 (f32 accumulation) -> bf16-level tolerance.
    assert jnp.allclose(scores, ref, atol=2e-2, rtol=2e-2), \
        float(jnp.max(jnp.abs(scores - ref)))

    print("KERNEL_OK")
</pallas_src>

<mosaic_0001>
module attributes {stable_mosaic.version = 11 : i64} {
  func.func @_mean_emb_kernel(%arg0: i32, %arg1: memref<64xi32, #tpu.memory_space<smem>>, %arg2: memref<33x128xf32, #tpu.memory_space<any>>, %arg3: memref<8x128xf32, #tpu.memory_space<vmem>>, %arg4: memref<32x1x128xf32, #tpu.memory_space<vmem>>, %arg5: memref<32x!tpu.dma_semaphore, #tpu.memory_space<semaphore_mem>>) attributes {dimension_semantics = [#tpu.dimension_semantics<parallel>], iteration_bounds = array<i64: 2>, scalar_prefetch = 1 : i64, scratch_operands = 2 : i64, tpu.core_type = #tpu.core_type<tc>, window_params = [{}, {transform_indices = @transform_1, window_bounds = array<i64: 8, 128>}]} {
    %c32_i32 = arith.constant 32 : i32
    %0 = arith.muli %arg0, %c32_i32 : i32
    %c0_i32 = arith.constant 0 : i32
    %1 = arith.addi %0, %c0_i32 : i32
    %2 = arith.index_cast %1 : i32 to index
    %3 = memref.load %arg1[%2] : memref<64xi32, #tpu.memory_space<smem>>
    %c0_i32_0 = arith.constant 0 : i32
    %c0_i32_1 = arith.constant 0 : i32
    %c0_i32_2 = arith.constant 0 : i32
    %4 = tpu.memref_slice %arg2[%3, %c0_i32_2] : memref<33x128xf32, #tpu.memory_space<any>> -> memref<1x128xf32, #tpu.memory_space<any>>
    %c0_i32_3 = arith.constant 0 : i32
    %c0_i32_4 = arith.constant 0 : i32
    %5 = tpu.memref_slice %arg4[%c0_i32_0, %c0_i32_3, %c0_i32_4] : memref<32x1x128xf32, #tpu.memory_space<vmem>> -> memref<1x1x128xf32, #tpu.memory_space<vmem>>
    %6 = tpu.memref_squeeze %5 : memref<1x1x128xf32, #tpu.memory_space<vmem>> -> memref<1x128xf32, #tpu.memory_space<vmem>>
    %7 = tpu.memref_slice %arg5[%c0_i32_1] : memref<32x!tpu.dma_semaphore, #tpu.memory_space<semaphore_mem>> -> memref<1x!tpu.dma_semaphore, #tpu.memory_space<semaphore_mem>>
    %8 = tpu.memref_squeeze %7 : memref<1x!tpu.dma_semaphore, #tpu.memory_space<semaphore_mem>> -> memref<!tpu.dma_semaphore, #tpu.memory_space<semaphore_mem>>
    tpu.enqueue_dma source(%4 : memref<1x128xf32, #tpu.memory_space<any>>) target(%6 : memref<1x128xf32, #tpu.memory_space<vmem>>) target_semaphore(%8 : memref<!tpu.dma_semaphore, #tpu.memory_space<semaphore_mem>>)
    %c1_i32 = arith.constant 1 : i32
    %9 = arith.addi %0, %c1_i32 : i32
    %10 = arith.index_cast %9 : i32 to index
    %11 = memref.load %arg1[%10] : memref<64xi32, #tpu.memory_space<smem>>
    %c1_i32_5 = arith.constant 1 : i32
    %c1_i32_6 = arith.constant 1 : i32
    %c0_i32_7 = arith.constant 0 : i32
    %12 = tpu.memref_slice %arg2[%11, %c0_i32_7] : memref<33x128xf32, #tpu.memory_space<any>> -> memref<1x128xf32, #tpu.memory_space<any>>
    %c0_i32_8 = arith.constant 0 : i32
    %c0_i32_9 = arith.constant 0 : i32
    %13 = tpu.memref_slice %arg4[%c1_i32_5, %c0_i32_8, %c0_i32_9] : memref<32x1x128xf32, #tpu.memory_space<vmem>> -> memref<1x1x128xf32, #tpu.memory_space<vmem>>
    %14 = tpu.memref_squeeze %13 : memref<1x1x128xf32, #tpu.memory_space<vmem>> -> memref<1x128xf32, #tpu.memory_space<vmem>>
    %15 = tpu.memref_slice %arg5[%c1_i32_6] : memref<32x!tpu.dma_semaphore, #tpu.memory_space<semaphore_mem>> -> memref<1x!tpu.dma_semaphore, #tpu.memory_space<semaphore_mem>>
    %16 = tpu.memref_squeeze %15 : memref<1x!tpu.dma_semaphore, #tpu.memory_space<semaphore_mem>> -> memref<!tpu.dma_semaphore, #tpu.memory_space<semaphore_mem>>
    tpu.enqueue_dma source(%12 : memref<1x128xf32, #tpu.memory_space<any>>) target(%14 : memref<1x128xf32, #tpu.memory_space<vmem>>) target_semaphore(%16 : memref<!tpu.dma_semaphore, #tpu.memory_space<semaphore_mem>>)
    %c2_i32 = arith.constant 2 : i32
    %17 = arith.addi %0, %c2_i32 : i32
    %18 = arith.index_cast %17 : i32 to index
    %19 = memref.load %arg1[%18] : memref<64xi32, #tpu.memory_space<smem>>
    %c2_i32_10 = arith.constant 2 : i32
    %c2_i32_11 = arith.constant 2 : i32
    %c0_i32_12 = arith.constant 0 : i32
    %20 = tpu.memref_slice %arg2[%19, %c0_i32_12] : memref<33x128xf32, #tpu.memory_space<any>> -> memref<1x128xf32, #tpu.memory_space<any>>
    %c0_i32_13 = arith.constant 0 : i32
    %c0_i32_14 = arith.constant 0 : i32
    %21 = tpu.memref_slice %arg4[%c2_i32_10, %c0_i32_13, %c0_i32_14] : memref<32x1x128xf32, #tpu.memory_space<vmem>> -> memref<1x1x128xf32, #tpu.memory_space<vmem>>
    %22 = tpu.memref_squeeze %21 : memref<1x1x128xf32, #tpu.memory_space<vmem>> -> memref<1x128xf32, #tpu.memory_space<vmem>>
    %23 = tpu.memref_slice %arg5[%c2_i32_11] : memref<32x!tpu.dma_semaphore, #tpu.memory_space<semaphore_mem>> -> memref<1x!tpu.dma_semaphore, #tpu.memory_space<semaphore_mem>>
    %24 = tpu.memref_squeeze %23 : memref<1x!tpu.dma_semaphore, #tpu.memory_space<semaphore_mem>> -> memref<!tpu.dma_semaphore, #tpu.memory_space<semaphore_mem>>
    tpu.enqueue_dma source(%20 : memref<1x128xf32, #tpu.memory_space<any>>) target(%22 : memref<1x128xf32, #tpu.memory_space<vmem>>) target_semaphore(%24 : memref<!tpu.dma_semaphore, #tpu.memory_space<semaphore_mem>>)
    %c3_i32 = arith.constant 3 : i32
    %25 = arith.addi %0, %c3_i32 : i32
    %26 = arith.index_cast %25 : i32 to index
    %27 = memref.load %arg1[%26] : memref<64xi32, #tpu.memory_space<smem>>
    %c3_i32_15 = arith.constant 3 : i32
    %c3_i32_16 = arith.constant 3 : i32
    %c0_i32_17 = arith.constant 0 : i32
    %28 = tpu.memref_slice %arg2[%27, %c0_i32_17] : memref<33x128xf32, #tpu.memory_space<any>> -> memref<1x128xf32, #tpu.memory_space<any>>
    %c0_i32_18 = arith.constant 0 : i32
    %c0_i32_19 = arith.constant 0 : i32
    %29 = tpu.memref_slice %arg4[%c3_i32_15, %c0_i32_18, %c0_i32_19] : memref<32x1x128xf32, #tpu.memory_space<vmem>> -> memref<1x1x128xf32, #tpu.memory_space<vmem>>
    %30 = tpu.memref_squeeze %29 : memref<1x1x128xf32, #tpu.memory_space<vmem>> -> memref<1x128xf32, #tpu.memory_space<vmem>>
    %31 = tpu.memref_slice %arg5[%c3_i32_16] : memref<32x!tpu.dma_semaphore, #tpu.memory_space<semaphore_mem>> -> memref<1x!tpu.dma_semaphore, #tpu.memory_space<semaphore_mem>>
    %32 = tpu.memref_squeeze %31 : memref<1x!tpu.dma_semaphore, #tpu.memory_space<semaphore_mem>> -> memref<!tpu.dma_semaphore, #tpu.memory_space<semaphore_mem>>
    tpu.enqueue_dma source(%28 : memref<1x128xf32, #tpu.memory_space<any>>) target(%30 : memref<1x128xf32, #tpu.memory_space<vmem>>) target_semaphore(%32 : memref<!tpu.dma_semaphore, #tpu.memory_space<semaphore_mem>>)
    %c4_i32 = arith.constant 4 : i32
    %33 = arith.addi %0, %c4_i32 : i32
    %34 = arith.index_cast %33 : i32 to index
    %35 = memref.load %arg1[%34] : memref<64xi32, #tpu.memory_space<smem>>
    %c4_i32_20 = arith.constant 4 : i32
    %c4_i32_21 = arith.constant 4 : i32
    %c0_i32_22 = arith.constant 0 : i32
    %36 = tpu.memref_slice %arg2[%35, %c0_i32_22] : memref<33x128xf32, #tpu.memory_space<any>> -> memref<1x128xf32, #tpu.memory_space<any>>
    %c0_i32_23 = arith.constant 0 : i32
    %c0_i32_24 = arith.constant 0 : i32
    %37 = tpu.memref_slice %arg4[%c4_i32_20, %c0_i32_23, %c0_i32_24] : memref<32x1x128xf32, #tpu.memory_space<vmem>> -> memref<1x1x128xf32, #tpu.memory_space<vmem>>
    %38 = tpu.memref_squeeze %37 : memref<1x1x128xf32, #tpu.memory_space<vmem>> -> memref<1x128xf32, #tpu.memory_space<vmem>>
    %39 = tpu.memref_slice %arg5[%c4_i32_21] : memref<32x!tpu.dma_semaphore, #tpu.memory_space<semaphore_mem>> -> memref<1x!tpu.dma_semaphore, #tpu.memory_space<semaphore_mem>>
    %40 = tpu.memref_squeeze %39 : memref<1x!tpu.dma_semaphore, #tpu.memory_space<semaphore_mem>> -> memref<!tpu.dma_semaphore, #tpu.memory_space<semaphore_mem>>
    tpu.enqueue_dma source(%36 : memref<1x128xf32, #tpu.memory_space<any>>) target(%38 : memref<1x128xf32, #tpu.memory_space<vmem>>) target_semaphore(%40 : memref<!tpu.dma_semaphore, #tpu.memory_space<semaphore_mem>>)
    %c5_i32 = arith.constant 5 : i32
    %41 = arith.addi %0, %c5_i32 : i32
    %42 = arith.index_cast %41 : i32 to index
    %43 = memref.load %arg1[%42] : memref<64xi32, #tpu.memory_space<smem>>
    %c5_i32_25 = arith.constant 5 : i32
    %c5_i32_26 = arith.constant 5 : i32
    %c0_i32_27 = arith.constant 0 : i32
    %44 = tpu.memref_slice %arg2[%43, %c0_i32_27] : memref<33x128xf32, #tpu.memory_space<any>> -> memref<1x128xf32, #tpu.memory_space<any>>
    %c0_i32_28 = arith.constant 0 : i32
    %c0_i32_29 = arith.constant 0 : i32
    %45 = tpu.memref_slice %arg4[%c5_i32_25, %c0_i32_28, %c0_i32_29] : memref<32x1x128xf32, #tpu.memory_space<vmem>> -> memref<1x1x128xf32, #tpu.memory_space<vmem>>
    %46 = tpu.memref_squeeze %45 : memref<1x1x128xf32, #tpu.memory_space<vmem>> -> memref<1x128xf32, #tpu.memory_space<vmem>>
    %47 = tpu.memref_slice %arg5[%c5_i32_26] : memref<32x!tpu.dma_semaphore, #tpu.memory_space<semaphore_mem>> -> memref<1x!tpu.dma_semaphore, #tpu.memory_space<semaphore_mem>>
    %48 = tpu.memref_squeeze %47 : memref<1x!tpu.dma_semaphore, #tpu.memory_space<semaphore_mem>> -> memref<!tpu.dma_semaphore, #tpu.memory_space<semaphore_mem>>
    tpu.enqueue_dma source(%44 : memref<1x128xf32, #tpu.memory_space<any>>) target(%46 : memref<1x128xf32, #tpu.memory_space<vmem>>) target_semaphore(%48 : memref<!tpu.dma_semaphore, #tpu.memory_space<semaphore_mem>>)
    %c6_i32 = arith.constant 6 : i32
    %49 = arith.addi %0, %c6_i32 : i32
    %50 = arith.index_cast %49 : i32 to index
    %51 = memref.load %arg1[%50] : memref<64xi32, #tpu.memory_space<smem>>
    %c6_i32_30 = arith.constant 6 : i32
    %c6_i32_31 = arith.constant 6 : i32
    %c0_i32_32 = arith.constant 0 : i32
    %52 = tpu.memref_slice %arg2[%51, %c0_i32_32] : memref<33x128xf32, #tpu.memory_space<any>> -> memref<1x128xf32, #tpu.memory_space<any>>
    %c0_i32_33 = arith.constant 0 : i32
    %c0_i32_34 = arith.constant 0 : i32
    %53 = tpu.memref_slice %arg4[%c6_i32_30, %c0_i32_33, %c0_i32_34] : memref<32x1x128xf32, #tpu.memory_space<vmem>> -> memref<1x1x128xf32, #tpu.memory_space<vmem>>
    %54 = tpu.memref_squeeze %53 : memref<1x1x128xf32, #tpu.memory_space<vmem>> -> memref<1x128xf32, #tpu.memory_space<vmem>>
    %55 = tpu.memref_slice %arg5[%c6_i32_31] : memref<32x!tpu.dma_semaphore, #tpu.memory_space<semaphore_mem>> -> memref<1x!tpu.dma_semaphore, #tpu.memory_space<semaphore_mem>>
    %56 = tpu.memref_squeeze %55 : memref<1x!tpu.dma_semaphore, #tpu.memory_space<semaphore_mem>> -> memref<!tpu.dma_semaphore, #tpu.memory_space<semaphore_mem>>
    tpu.enqueue_dma source(%52 : memref<1x128xf32, #tpu.memory_space<any>>) target(%54 : memref<1x128xf32, #tpu.memory_space<vmem>>) target_semaphore(%56 : memref<!tpu.dma_semaphore, #tpu.memory_space<semaphore_mem>>)
    %c7_i32 = arith.constant 7 : i32
    %57 = arith.addi %0, %c7_i32 : i32
    %58 = arith.index_cast %57 : i32 to index
    %59 = memref.load %arg1[%58] : memref<64xi32, #tpu.memory_space<smem>>
    %c7_i32_35 = arith.constant 7 : i32
    %c7_i32_36 = arith.constant 7 : i32
    %c0_i32_37 = arith.constant 0 : i32
    %60 = tpu.memref_slice %arg2[%59, %c0_i32_37] : memref<33x128xf32, #tpu.memory_space<any>> -> memref<1x128xf32, #tpu.memory_space<any>>
    %c0_i32_38 = arith.constant 0 : i32
    %c0_i32_39 = arith.constant 0 : i32
    %61 = tpu.memref_slice %arg4[%c7_i32_35, %c0_i32_38, %c0_i32_39] : memref<32x1x128xf32, #tpu.memory_space<vmem>> -> memref<1x1x128xf32, #tpu.memory_space<vmem>>
    %62 = tpu.memref_squeeze %61 : memref<1x1x128xf32, #tpu.memory_space<vmem>> -> memref<1x128xf32, #tpu.memory_space<vmem>>
    %63 = tpu.memref_slice %arg5[%c7_i32_36] : memref<32x!tpu.dma_semaphore, #tpu.memory_space<semaphore_mem>> -> memref<1x!tpu.dma_semaphore, #tpu.memory_space<semaphore_mem>>
    %64 = tpu.memref_squeeze %63 : memref<1x!tpu.dma_semaphore, #tpu.memory_space<semaphore_mem>> -> memref<!tpu.dma_semaphore, #tpu.memory_space<semaphore_mem>>
    tpu.enqueue_dma source(%60 : memref<1x128xf32, #tpu.memory_space<any>>) target(%62 : memref<1x128xf32, #tpu.memory_space<vmem>>) target_semaphore(%64 : memref<!tpu.dma_semaphore, #tpu.memory_space<semaphore_mem>>)
    %c8_i32 = arith.constant 8 : i32
    %65 = arith.addi %0, %c8_i32 : i32
    %66 = arith.index_cast %65 : i32 to index
    %67 = memref.load %arg1[%66] : memref<64xi32, #tpu.memory_space<smem>>
    %c8_i32_40 = arith.constant 8 : i32
    %c8_i32_41 = arith.constant 8 : i32
    %c0_i32_42 = arith.constant 0 : i32
    %68 = tpu.memref_slice %arg2[%67, %c0_i32_42] : memref<33x128xf32, #tpu.memory_space<any>> -> memref<1x128xf32, #tpu.memory_space<any>>
    %c0_i32_43 = arith.constant 0 : i32
    %c0_i32_44 = arith.constant 0 : i32
    %69 = tpu.memref_slice %arg4[%c8_i32_40, %c0_i32_43, %c0_i32_44] : memref<32x1x128xf32, #tpu.memory_space<vmem>> -> memref<1x1x128xf32, #tpu.memory_space<vmem>>
    %70 = tpu.memref_squeeze %69 : memref<1x1x128xf32, #tpu.memory_space<vmem>> -> memref<1x128xf32, #tpu.memory_space<vmem>>
    %71 = tpu.memref_slice %arg5[%c8_i32_41] : memref<32x!tpu.dma_semaphore, #tpu.memory_space<semaphore_mem>> -> memref<1x!tpu.dma_semaphore, #tpu.memory_space<semaphore_mem>>
    %72 = tpu.memref_squeeze %71 : memref<1x!tpu.dma_semaphore, #tpu.memory_space<semaphore_mem>> -> memref<!tpu.dma_semaphore, #tpu.memory_space<semaphore_mem>>
    tpu.enqueue_dma source(%68 : memref<1x128xf32, #tpu.memory_space<any>>) target(%70 : memref<1x128xf32, #tpu.memory_space<vmem>>) target_semaphore(%72 : memref<!tpu.dma_semaphore, #tpu.memory_space<semaphore_mem>>)
    %c9_i32 = arith.constant 9 : i32
    %73 = arith.addi %0, %c9_i32 : i32
    %74 = arith.index_cast %73 : i32 to index
    %75 = memref.load %arg1[%74] : memref<64xi32, #tpu.memory_space<smem>>
    %c9_i32_45 = arith.constant 9 : i32
    %c9_i32_46 = arith.constant 9 : i32
    %c0_i32_47 = arith.constant 0 : i32
    %76 = tpu.memref_slice %arg2[%75, %c0_i32_47] : memref<33x128xf32, #tpu.memory_space<any>> -> memref<1x128xf32, #tpu.memory_space<any>>
    %c0_i32_48 = arith.constant 0 : i32
    %c0_i32_49 = arith.constant 0 : i32
    %77 = tpu.memref_slice %arg4[%c9_i32_45, %c0_i32_48, %c0_i32_49] : memref<32x1x128xf32, #tpu.memory_space<vmem>> -> memref<1x1x128xf32, #tpu.memory_space<vmem>>
    %78 = tpu.memref_squeeze %77 : memref<1x1x128xf32, #tpu.memory_space<vmem>> -> memref<1x128xf32, #tpu.memory_space<vmem>>
    %79 = tpu.memref_slice %arg5[%c9_i32_46] : memref<32x!tpu.dma_semaphore, #tpu.memory_space<semaphore_mem>> -> memref<1x!tpu.dma_semaphore, #tpu.memory_space<semaphore_mem>>
    %80 = tpu.memref_squeeze %79 : memref<1x!tpu.dma_semaphore, #tpu.memory_space<semaphore_mem>> -> memref<!tpu.dma_semaphore, #tpu.memory_space<semaphore_mem>>
    tpu.enqueue_dma source(%76 : memref<1x128xf32, #tpu.memory_space<any>>) target(%78 : memref<1x128xf32, #tpu.memory_space<vmem>>) target_semaphore(%80 : memref<!tpu.dma_semaphore, #tpu.memory_space<semaphore_mem>>)
    %c10_i32 = arith.constant 10 : i32
    %81 = arith.addi %0, %c10_i32 : i32
    %82 = arith.index_cast %81 : i32 to index
    %83 = memref.load %arg1[%82] : memref<64xi32, #tpu.memory_space<smem>>
    %c10_i32_50 = arith.constant 10 : i32
    %c10_i32_51 = arith.constant 10 : i32
    %c0_i32_52 = arith.constant 0 : i32
    %84 = tpu.memref_slice %arg2[%83, %c0_i32_52] : memref<33x128xf32, #tpu.memory_space<any>> -> memref<1x128xf32, #tpu.memory_space<any>>
    %c0_i32_53 = arith.constant 0 : i32
    %c0_i32_54 = arith.constant 0 : i32
    %85 = tpu.memref_slice %arg4[%c10_i32_50, %c0_i32_53, %c0_i32_54] : memref<32x1x128xf32, #tpu.memory_space<vmem>> -> memref<1x1x128xf32, #tpu.memory_space<vmem>>
    %86 = tpu.memref_squeeze %85 : memref<1x1x128xf32, #tpu.memory_space<vmem>> -> memref<1x128xf32, #tpu.memory_space<vmem>>
    %87 = tpu.memref_slice %arg5[%c10_i32_51] : memref<32x!tpu.dma_semaphore, #tpu.memory_space<semaphore_mem>> -> memref<1x!tpu.dma_semaphore, #tpu.memory_space<semaphore_mem>>
    %88 = tpu.memref_squeeze %87 : memref<1x!tpu.dma_semaphore, #tpu.memory_space<semaphore_mem>> -> memref<!tpu.dma_semaphore, #tpu.memory_space<semaphore_mem>>
    tpu.enqueue_dma source(%84 : memref<1x128xf32, #tpu.memory_space<any>>) target(%86 : memref<1x128xf32, #tpu.memory_space<vmem>>) target_semaphore(%88 : memref<!tpu.dma_semaphore, #tpu.memory_space<semaphore_mem>>)
    %c11_i32 = arith.constant 11 : i32
    %89 = arith.addi %0, %c11_i32 : i32
    %90 = arith.index_cast %89 : i32 to index
    %91 = memref.load %arg1[%90] : memref<64xi32, #tpu.memory_space<smem>>
    %c11_i32_55 = arith.constant 11 : i32
    %c11_i32_56 = arith.constant 11 : i32
    %c0_i32_57 = arith.constant 0 : i32
    %92 = tpu.memref_slice %arg2[%91, %c0_i32_57] : memref<33x128xf32, #tpu.memory_space<any>> -> memref<1x128xf32, #tpu.memory_space<any>>
    %c0_i32_58 = arith.constant 0 : i32
    %c0_i32_59 = arith.constant 0 : i32
    %93 = tpu.memref_slice %arg4[%c11_i32_55, %c0_i32_58, %c0_i32_59] : memref<32x1x128xf32, #tpu.memory_space<vmem>> -> memref<1x1x128xf32, #tpu.memory_space<vmem>>
    %94 = tpu.memref_squeeze %93 : memref<1x1x128xf32, #tpu.memory_space<vmem>> -> memref<1x128xf32, #tpu.memory_space<vmem>>
    %95 = tpu.memref_slice %arg5[%c11_i32_56] : memref<32x!tpu.dma_semaphore, #tpu.memory_space<semaphore_mem>> -> memref<1x!tpu.dma_semaphore, #tpu.memory_space<semaphore_mem>>
    %96 = tpu.memref_squeeze %95 : memref<1x!tpu.dma_semaphore, #tpu.memory_space<semaphore_mem>> -> memref<!tpu.dma_semaphore, #tpu.memory_space<semaphore_mem>>
    tpu.enqueue_dma source(%92 : memref<1x128xf32, #tpu.memory_space<any>>) target(%94 : memref<1x128xf32, #tpu.memory_space<vmem>>) target_semaphore(%96 : memref<!tpu.dma_semaphore, #tpu.memory_space<semaphore_mem>>)
    %c12_i32 = arith.constant 12 : i32
    %97 = arith.addi %0, %c12_i32 : i32
    %98 = arith.index_cast %97 : i32 to index
    %99 = memref.load %arg1[%98] : memref<64xi32, #tpu.memory_space<smem>>
    %c12_i32_60 = arith.constant 12 : i32
    %c12_i32_61 = arith.constant 12 : i32
    %c0_i32_62 = arith.constant 0 : i32
    %100 = tpu.memref_slice %arg2[%99, %c0_i32_62] : memref<33x128xf32, #tpu.memory_space<any>> -> memref<1x128xf32, #tpu.memory_space<any>>
    %c0_i32_63 = arith.constant 0 : i32
    %c0_i32_64 = arith.constant 0 : i32
    %101 = tpu.memref_slice %arg4[%c12_i32_60, %c0_i32_63, %c0_i32_64] : memref<32x1x128xf32, #tpu.memory_space<vmem>> -> memref<1x1x128xf32, #tpu.memory_space<vmem>>
    %102 = tpu.memref_squeeze %101 : memref<1x1x128xf32, #tpu.memory_space<vmem>> -> memref<1x128xf32, #tpu.memory_space<vmem>>
    %103 = tpu.memref_slice %arg5[%c12_i32_61] : memref<32x!tpu.dma_semaphore, #tpu.memory_space<semaphore_mem>> -> memref<1x!tpu.dma_semaphore, #tpu.memory_space<semaphore_mem>>
    %104 = tpu.memref_squeeze %103 : memref<1x!tpu.dma_semaphore, #tpu.memory_space<semaphore_mem>> -> memref<!tpu.dma_semaphore, #tpu.memory_space<semaphore_mem>>
    tpu.enqueue_dma source(%100 : memref<1x128xf32, #tpu.memory_space<any>>) target(%102 : memref<1x128xf32, #tpu.memory_space<vmem>>) target_semaphore(%104 : memref<!tpu.dma_semaphore, #tpu.memory_space<semaphore_mem>>)
    %c13_i32 = arith.constant 13 : i32
    %105 = arith.addi %0, %c13_i32 : i32
    %106 = arith.index_cast %105 : i32 to index
    %107 = memref.load %arg1[%106] : memref<64xi32, #tpu.memory_space<smem>>
    %c13_i32_65 = arith.constant 13 : i32
    %c13_i32_66 = arith.constant 13 : i32
    %c0_i32_67 = arith.constant 0 : i32
    %108 = tpu.memref_slice %arg2[%107, %c0_i32_67] : memref<33x128xf32, #tpu.memory_space<any>> -> memref<1x128xf32, #tpu.memory_space<any>>
    %c0_i32_68 = arith.constant 0 : i32
    %c0_i32_69 = arith.constant 0 : i32
    %109 = tpu.memref_slice %arg4[%c13_i32_65, %c0_i32_68, %c0_i32_69] : memref<32x1x128xf32, #tpu.memory_space<vmem>> -> memref<1x1x128xf32, #tpu.memory_space<vmem>>
    %110 = tpu.memref_squeeze %109 : memref<1x1x128xf32, #tpu.memory_space<vmem>> -> memref<1x128xf32, #tpu.memory_space<vmem>>
    %111 = tpu.memref_slice %arg5[%c13_i32_66] : memref<32x!tpu.dma_semaphore, #tpu.memory_space<semaphore_mem>> -> memref<1x!tpu.dma_semaphore, #tpu.memory_space<semaphore_mem>>
    %112 = tpu.memref_squeeze %111 : memref<1x!tpu.dma_semaphore, #tpu.memory_space<semaphore_mem>> -> memref<!tpu.dma_semaphore, #tpu.memory_space<semaphore_mem>>
    tpu.enqueue_dma source(%108 : memref<1x128xf32, #tpu.memory_space<any>>) target(%110 : memref<1x128xf32, #tpu.memory_space<vmem>>) target_semaphore(%112 : memref<!tpu.dma_semaphore, #tpu.memory_space<semaphore_mem>>)
    %c14_i32 = arith.constant 14 : i32
    %113 = arith.addi %0, %c14_i32 : i32
    %114 = arith.index_cast %113 : i32 to index
    %115 = memref.load %arg1[%114] : memref<64xi32, #tpu.memory_space<smem>>
    %c14_i32_70 = arith.constant 14 : i32
    %c14_i32_71 = arith.constant 14 : i32
    %c0_i32_72 = arith.constant 0 : i32
    %116 = tpu.memref_slice %arg2[%115, %c0_i32_72] : memref<33x128xf32, #tpu.memory_space<any>> -> memref<1x128xf32, #tpu.memory_space<any>>
    %c0_i32_73 = arith.constant 0 : i32
    %c0_i32_74 = arith.constant 0 : i32
    %117 = tpu.memref_slice %arg4[%c14_i32_70, %c0_i32_73, %c0_i32_74] : memref<32x1x128xf32, #tpu.memory_space<vmem>> -> memref<1x1x128xf32, #tpu.memory_space<vmem>>
    %118 = tpu.memref_squeeze %117 : memref<1x1x128xf32, #tpu.memory_space<vmem>> -> memref<1x128xf32, #tpu.memory_space<vmem>>
    %119 = tpu.memref_slice %arg5[%c14_i32_71] : memref<32x!tpu.dma_semaphore, #tpu.memory_space<semaphore_mem>> -> memref<1x!tpu.dma_semaphore, #tpu.memory_space<semaphore_mem>>
    %120 = tpu.memref_squeeze %119 : memref<1x!tpu.dma_semaphore, #tpu.memory_space<semaphore_mem>> -> memref<!tpu.dma_semaphore, #tpu.memory_space<semaphore_mem>>
    tpu.enqueue_dma source(%116 : memref<1x128xf32, #tpu.memory_space<any>>) target(%118 : memref<1x128xf32, #tpu.memory_space<vmem>>) target_semaphore(%120 : memref<!tpu.dma_semaphore, #tpu.memory_space<semaphore_mem>>)
    %c15_i32 = arith.constant 15 : i32
    %121 = arith.addi %0, %c15_i32 : i32
    %122 = arith.index_cast %121 : i32 to index
    %123 = memref.load %arg1[%122] : memref<64xi32, #tpu.memory_space<smem>>
    %c15_i32_75 = arith.constant 15 : i32
    %c15_i32_76 = arith.constant 15 : i32
    %c0_i32_77 = arith.constant 0 : i32
    %124 = tpu.memref_slice %arg2[%123, %c0_i32_77] : memref<33x128xf32, #tpu.memory_space<any>> -> memref<1x128xf32, #tpu.memory_space<any>>
    %c0_i32_78 = arith.constant 0 : i32
    %c0_i32_79 = arith.constant 0 : i32
    %125 = tpu.memref_slice %arg4[%c15_i32_75, %c0_i32_78, %c0_i32_79] : memref<32x1x128xf32, #tpu.memory_space<vmem>> -> memref<1x1x128xf32, #tpu.memory_space<vmem>>
    %126 = tpu.memref_squeeze %125 : memref<1x1x128xf32, #tpu.memory_space<vmem>> -> memref<1x128xf32, #tpu.memory_space<vmem>>
    %127 = tpu.memref_slice %arg5[%c15_i32_76] : memref<32x!tpu.dma_semaphore, #tpu.memory_space<semaphore_mem>> -> memref<1x!tpu.dma_semaphore, #tpu.memory_space<semaphore_mem>>
    %128 = tpu.memref_squeeze %127 : memref<1x!tpu.dma_semaphore, #tpu.memory_space<semaphore_mem>> -> memref<!tpu.dma_semaphore, #tpu.memory_space<semaphore_mem>>
    tpu.enqueue_dma source(%124 : memref<1x128xf32, #tpu.memory_space<any>>) target(%126 : memref<1x128xf32, #tpu.memory_space<vmem>>) target_semaphore(%128 : memref<!tpu.dma_semaphore, #tpu.memory_space<semaphore_mem>>)
    %c16_i32 = arith.constant 16 : i32
    %129 = arith.addi %0, %c16_i32 : i32
    %130 = arith.index_cast %129 : i32 to index
    %131 = memref.load %arg1[%130] : memref<64xi32, #tpu.memory_space<smem>>
    %c16_i32_80 = arith.constant 16 : i32
    %c16_i32_81 = arith.constant 16 : i32
    %c0_i32_82 = arith.constant 0 : i32
    %132 = tpu.memref_slice %arg2[%131, %c0_i32_82] : memref<33x128xf32, #tpu.memory_space<any>> -> memref<1x128xf32, #tpu.memory_space<any>>
    %c0_i32_83 = arith.constant 0 : i32
    %c0_i32_84 = arith.constant 0 : i32
    %133 = tpu.memref_slice %arg4[%c16_i32_80, %c0_i32_83, %c0_i32_84] : memref<32x1x128xf32, #tpu.memory_space<vmem>> -> memref<1x1x128xf32, #tpu.memory_space<vmem>>
    %134 = tpu.memref_squeeze %133 : memref<1x1x128xf32, #tpu.memory_space<vmem>> -> memref<1x128xf32, #tpu.memory_space<vmem>>
    %135 = tpu.memref_slice %arg5[%c16_i32_81] : memref<32x!tpu.dma_semaphore, #tpu.memory_space<semaphore_mem>> -> memref<1x!tpu.dma_semaphore, #tpu.memory_space<semaphore_mem>>
    %136 = tpu.memref_squeeze %135 : memref<1x!tpu.dma_semaphore, #tpu.memory_space<semaphore_mem>> -> memref<!tpu.dma_semaphore, #tpu.memory_space<semaphore_mem>>
    tpu.enqueue_dma source(%132 : memref<1x128xf32, #tpu.memory_space<any>>) target(%134 : memref<1x128xf32, #tpu.memory_space<vmem>>) target_semaphore(%136 : memref<!tpu.dma_semaphore, #tpu.memory_space<semaphore_mem>>)
    %c17_i32 = arith.constant 17 : i32
    %137 = arith.addi %0, %c17_i32 : i32
    %138 = arith.index_cast %137 : i32 to index
    %139 = memref.load %arg1[%138] : memref<64xi32, #tpu.memory_space<smem>>
    %c17_i32_85 = arith.constant 17 : i32
    %c17_i32_86 = arith.constant 17 : i32
    %c0_i32_87 = arith.constant 0 : i32
    %140 = tpu.memref_slice %arg2[%139, %c0_i32_87] : memref<33x128xf32, #tpu.memory_space<any>> -> memref<1x128xf32, #tpu.memory_space<any>>
    %c0_i32_88 = arith.constant 0 : i32
    %c0_i32_89 = arith.constant 0 : i32
    %141 = tpu.memref_slice %arg4[%c17_i32_85, %c0_i32_88, %c0_i32_89] : memref<32x1x128xf32, #tpu.memory_space<vmem>> -> memref<1x1x128xf32, #tpu.memory_space<vmem>>
    %142 = tpu.memref_squeeze %141 : memref<1x1x128xf32, #tpu.memory_space<vmem>> -> memref<1x128xf32, #tpu.memory_space<vmem>>
    %143 = tpu.memref_slice %arg5[%c17_i32_86] : memref<32x!tpu.dma_semaphore, #tpu.memory_space<semaphore_mem>> -> memref<1x!tpu.dma_semaphore, #tpu.memory_space<semaphore_mem>>
    %144 = tpu.memref_squeeze %143 : memref<1x!tpu.dma_semaphore, #tpu.memory_space<semaphore_mem>> -> memref<!tpu.dma_semaphore, #tpu.memory_space<semaphore_mem>>
    tpu.enqueue_dma source(%140 : memref<1x128xf32, #tpu.memory_space<any>>) target(%142 : memref<1x128xf32, #tpu.memory_space<vmem>>) target_semaphore(%144 : memref<!tpu.dma_semaphore, #tpu.memory_space<semaphore_mem>>)
    %c18_i32 = arith.constant 18 : i32
    %145 = arith.addi %0, %c18_i32 : i32
    %146 = arith.index_cast %145 : i32 to index
    %147 = memref.load %arg1[%146] : memref<64xi32, #tpu.memory_space<smem>>
    %c18_i32_90 = arith.constant 18 : i32
    %c18_i32_91 = arith.constant 18 : i32
    %c0_i32_92 = arith.constant 0 : i32
    %148 = tpu.memref_slice %arg2[%147, %c0_i32_92] : memref<33x128xf32, #tpu.memory_space<any>> -> memref<1x128xf32, #tpu.memory_space<any>>
    %c0_i32_93 = arith.constant 0 : i32
    %c0_i32_94 = arith.constant 0 : i32
    %149 = tpu.memref_slice %arg4[%c18_i32_90, %c0_i32_93, %c0_i32_94] : memref<32x1x128xf32, #tpu.memory_space<vmem>> -> memref<1x1x128xf32, #tpu.memory_space<vmem>>
    %150 = tpu.memref_squeeze %149 : memref<1x1x128xf32, #tpu.memory_space<vmem>> -> memref<1x128xf32, #tpu.memory_space<vmem>>
    %151 = tpu.memref_slice %arg5[%c18_i32_91] : memref<32x!tpu.dma_semaphore, #tpu.memory_space<semaphore_mem>> -> memref<1x!tpu.dma_semaphore, #tpu.memory_space<semaphore_mem>>
    %152 = tpu.memref_squeeze %151 : memref<1x!tpu.dma_semaphore, #tpu.memory_space<semaphore_mem>> -> memref<!tpu.dma_semaphore, #tpu.memory_space<semaphore_mem>>
    tpu.enqueue_dma source(%148 : memref<1x128xf32, #tpu.memory_space<any>>) target(%150 : memref<1x128xf32, #tpu.memory_space<vmem>>) target_semaphore(%152 : memref<!tpu.dma_semaphore, #tpu.memory_space<semaphore_mem>>)
    %c19_i32 = arith.constant 19 : i32
    %153 = arith.addi %0, %c19_i32 : i32
    %154 = arith.index_cast %153 : i32 to index
    %155 = memref.load %arg1[%154] : memref<64xi32, #tpu.memory_space<smem>>
    %c19_i32_95 = arith.constant 19 : i32
    %c19_i32_96 = arith.constant 19 : i32
    %c0_i32_97 = arith.constant 0 : i32
    %156 = tpu.memref_slice %arg2[%155, %c0_i32_97] : memref<33x128xf32, #tpu.memory_space<any>> -> memref<1x128xf32, #tpu.memory_space<any>>
    %c0_i32_98 = arith.constant 0 : i32
    %c0_i32_99 = arith.constant 0 : i32
    %157 = tpu.memref_slice %arg4[%c19_i32_95, %c0_i32_98, %c0_i32_99] : memref<32x1x128xf32, #tpu.memory_space<vmem>> -> memref<1x1x128xf32, #tpu.memory_space<vmem>>
    %158 = tpu.memref_squeeze %157 : memref<1x1x128xf32, #tpu.memory_space<vmem>> -> memref<1x128xf32, #tpu.memory_space<vmem>>
    %159 = tpu.memref_slice %arg5[%c19_i32_96] : memref<32x!tpu.dma_semaphore, #tpu.memory_space<semaphore_mem>> -> memref<1x!tpu.dma_semaphore, #tpu.memory_space<semaphore_mem>>
    %160 = tpu.memref_squeeze %159 : memref<1x!tpu.dma_semaphore, #tpu.memory_space<semaphore_mem>> -> memref<!tpu.dma_semaphore, #tpu.memory_space<semaphore_mem>>
    tpu.enqueue_dma source(%156 : memref<1x128xf32, #tpu.memory_space<any>>) target(%158 : memref<1x128xf32, #tpu.memory_space<vmem>>) target_semaphore(%160 : memref<!tpu.dma_semaphore, #tpu.memory_space<semaphore_mem>>)
    %c20_i32 = arith.constant 20 : i32
    %161 = arith.addi %0, %c20_i32 : i32
    %162 = arith.index_cast %161 : i32 to index
    %163 = memref.load %arg1[%162] : memref<64xi32, #tpu.memory_space<smem>>
    %c20_i32_100 = arith.constant 20 : i32
    %c20_i32_101 = arith.constant 20 : i32
    %c0_i32_102 = arith.constant 0 : i32
    %164 = tpu.memref_slice %arg2[%163, %c0_i32_102] : memref<33x128xf32, #tpu.memory_space<any>> -> memref<1x128xf32, #tpu.memory_space<any>>
    %c0_i32_103 = arith.constant 0 : i32
    %c0_i32_104 = arith.constant 0 : i32
    %165 = tpu.memref_slice %arg4[%c20_i32_100, %c0_i32_103, %c0_i32_104] : memref<32x1x128xf32, #tpu.memory_space<vmem>> -> memref<1x1x128xf32, #tpu.memory_space<vmem>>
    %166 = tpu.memref_squeeze %165 : memref<1x1x128xf32, #tpu.memory_space<vmem>> -> memref<1x128xf32, #tpu.memory_space<vmem>>
    %167 = tpu.memref_slice %arg5[%c20_i32_101] : memref<32x!tpu.dma_semaphore, #tpu.memory_space<semaphore_mem>> -> memref<1x!tpu.dma_semaphore, #tpu.memory_space<semaphore_mem>>
    %168 = tpu.memref_squeeze %167 : memref<1x!tpu.dma_semaphore, #tpu.memory_space<semaphore_mem>> -> memref<!tpu.dma_semaphore, #tpu.memory_space<semaphore_mem>>
    tpu.enqueue_dma source(%164 : memref<1x128xf32, #tpu.memory_space<any>>) target(%166 : memref<1x128xf32, #tpu.memory_space<vmem>>) target_semaphore(%168 : memref<!tpu.dma_semaphore, #tpu.memory_space<semaphore_mem>>)
    %c21_i32 = arith.constant 21 : i32
    %169 = arith.addi %0, %c21_i32 : i32
    %170 = arith.index_cast %169 : i32 to index
    %171 = memref.load %arg1[%170] : memref<64xi32, #tpu.memory_space<smem>>
    %c21_i32_105 = arith.constant 21 : i32
    %c21_i32_106 = arith.constant 21 : i32
    %c0_i32_107 = arith.constant 0 : i32
    %172 = tpu.memref_slice %arg2[%171, %c0_i32_107] : memref<33x128xf32, #tpu.memory_space<any>> -> memref<1x128xf32, #tpu.memory_space<any>>
    %c0_i32_108 = arith.constant 0 : i32
    %c0_i32_109 = arith.constant 0 : i32
    %173 = tpu.memref_slice %arg4[%c21_i32_105, %c0_i32_108, %c0_i32_109] : memref<32x1x128xf32, #tpu.memory_space<vmem>> -> memref<1x1x128xf32, #tpu.memory_space<vmem>>
    %174 = tpu.memref_squeeze %173 : memref<1x1x128xf32, #tpu.memory_space<vmem>> -> memref<1x128xf32, #tpu.memory_space<vmem>>
    %175 = tpu.memref_slice %arg5[%c21_i32_106] : memref<32x!tpu.dma_semaphore, #tpu.memory_space<semaphore_mem>> -> memref<1x!tpu.dma_semaphore, #tpu.memory_space<semaphore_mem>>
    %176 = tpu.memref_squeeze %175 : memref<1x!tpu.dma_semaphore, #tpu.memory_space<semaphore_mem>> -> memref<!tpu.dma_semaphore, #tpu.memory_space<semaphore_mem>>
    tpu.enqueue_dma source(%172 : memref<1x128xf32, #tpu.memory_space<any>>) target(%174 : memref<1x128xf32, #tpu.memory_space<vmem>>) target_semaphore(%176 : memref<!tpu.dma_semaphore, #tpu.memory_space<semaphore_mem>>)
    %c22_i32 = arith.constant 22 : i32
    %177 = arith.addi %0, %c22_i32 : i32
    %178 = arith.index_cast %177 : i32 to index
    %179 = memref.load %arg1[%178] : memref<64xi32, #tpu.memory_space<smem>>
    %c22_i32_110 = arith.constant 22 : i32
    %c22_i32_111 = arith.constant 22 : i32
    %c0_i32_112 = arith.constant 0 : i32
    %180 = tpu.memref_slice %arg2[%179, %c0_i32_112] : memref<33x128xf32, #tpu.memory_space<any>> -> memref<1x128xf32, #tpu.memory_space<any>>
    %c0_i32_113 = arith.constant 0 : i32
    %c0_i32_114 = arith.constant 0 : i32
    %181 = tpu.memref_slice %arg4[%c22_i32_110, %c0_i32_113, %c0_i32_114] : memref<32x1x128xf32, #tpu.memory_space<vmem>> -> memref<1x1x128xf32, #tpu.memory_space<vmem>>
    %182 = tpu.memref_squeeze %181 : memref<1x1x128xf32, #tpu.memory_space<vmem>> -> memref<1x128xf32, #tpu.memory_space<vmem>>
    %183 = tpu.memref_slice %arg5[%c22_i32_111] : memref<32x!tpu.dma_semaphore, #tpu.memory_space<semaphore_mem>> -> memref<1x!tpu.dma_semaphore, #tpu.memory_space<semaphore_mem>>
    %184 = tpu.memref_squeeze %183 : memref<1x!tpu.dma_semaphore, #tpu.memory_space<semaphore_mem>> -> memref<!tpu.dma_semaphore, #tpu.memory_space<semaphore_mem>>
    tpu.enqueue_dma source(%180 : memref<1x128xf32, #tpu.memory_space<any>>) target(%182 : memref<1x128xf32, #tpu.memory_space<vmem>>) target_semaphore(%184 : memref<!tpu.dma_semaphore, #tpu.memory_space<semaphore_mem>>)
    %c23_i32 = arith.constant 23 : i32
    %185 = arith.addi %0, %c23_i32 : i32
    %186 = arith.index_cast %185 : i32 to index
    %187 = memref.load %arg1[%186] : memref<64xi32, #tpu.memory_space<smem>>
    %c23_i32_115 = arith.constant 23 : i32
    %c23_i32_116 = arith.constant 23 : i32
    %c0_i32_117 = arith.constant 0 : i32
    %188 = tpu.memref_slice %arg2[%187, %c0_i32_117] : memref<33x128xf32, #tpu.memory_space<any>> -> memref<1x128xf32, #tpu.memory_space<any>>
    %c0_i32_118 = arith.constant 0 : i32
    %c0_i32_119 = arith.constant 0 : i32
    %189 = tpu.memref_slice %arg4[%c23_i32_115, %c0_i32_118, %c0_i32_119] : memref<32x1x128xf32, #tpu.memory_space<vmem>> -> memref<1x1x128xf32, #tpu.memory_space<vmem>>
    %190 = tpu.memref_squeeze %189 : memref<1x1x128xf32, #tpu.memory_space<vmem>> -> memref<1x128xf32, #tpu.memory_space<vmem>>
    %191 = tpu.memref_slice %arg5[%c23_i32_116] : memref<32x!tpu.dma_semaphore, #tpu.memory_space<semaphore_mem>> -> memref<1x!tpu.dma_semaphore, #tpu.memory_space<semaphore_mem>>
    %192 = tpu.memref_squeeze %191 : memref<1x!tpu.dma_semaphore, #tpu.memory_space<semaphore_mem>> -> memref<!tpu.dma_semaphore, #tpu.memory_space<semaphore_mem>>
    tpu.enqueue_dma source(%188 : memref<1x128xf32, #tpu.memory_space<any>>) target(%190 : memref<1x128xf32, #tpu.memory_space<vmem>>) target_semaphore(%192 : memref<!tpu.dma_semaphore, #tpu.memory_space<semaphore_mem>>)
    %c24_i32 = arith.constant 24 : i32
    %193 = arith.addi %0, %c24_i32 : i32
    %194 = arith.index_cast %193 : i32 to index
    %195 = memref.load %arg1[%194] : memref<64xi32, #tpu.memory_space<smem>>
    %c24_i32_120 = arith.constant 24 : i32
    %c24_i32_121 = arith.constant 24 : i32
    %c0_i32_122 = arith.constant 0 : i32
    %196 = tpu.memref_slice %arg2[%195, %c0_i32_122] : memref<33x128xf32, #tpu.memory_space<any>> -> memref<1x128xf32, #tpu.memory_space<any>>
    %c0_i32_123 = arith.constant 0 : i32
    %c0_i32_124 = arith.constant 0 : i32
    %197 = tpu.memref_slice %arg4[%c24_i32_120, %c0_i32_123, %c0_i32_124] : memref<32x1x128xf32, #tpu.memory_space<vmem>> -> memref<1x1x128xf32, #tpu.memory_space<vmem>>
    %198 = tpu.memref_squeeze %197 : memref<1x1x128xf32, #tpu.memory_space<vmem>> -> memref<1x128xf32, #tpu.memory_space<vmem>>
    %199 = tpu.memref_slice %arg5[%c24_i32_121] : memref<32x!tpu.dma_semaphore, #tpu.memory_space<semaphore_mem>> -> memref<1x!tpu.dma_semaphore, #tpu.memory_space<semaphore_mem>>
    %200 = tpu.memref_squeeze %199 : memref<1x!tpu.dma_semaphore, #tpu.memory_space<semaphore_mem>> -> memref<!tpu.dma_semaphore, #tpu.memory_space<semaphore_mem>>
    tpu.enqueue_dma source(%196 : memref<1x128xf32, #tpu.memory_space<any>>) target(%198 : memref<1x128xf32, #tpu.memory_space<vmem>>) target_semaphore(%200 : memref<!tpu.dma_semaphore, #tpu.memory_space<semaphore_mem>>)
    %c25_i32 = arith.constant 25 : i32
    %201 = arith.addi %0, %c25_i32 : i32
    %202 = arith.index_cast %201 : i32 to index
    %203 = memref.load %arg1[%202] : memref<64xi32, #tpu.memory_space<smem>>
    %c25_i32_125 = arith.constant 25 : i32
    %c25_i32_126 = arith.constant 25 : i32
    %c0_i32_127 = arith.constant 0 : i32
    %204 = tpu.memref_slice %arg2[%203, %c0_i32_127] : memref<33x128xf32, #tpu.memory_space<any>> -> memref<1x128xf32, #tpu.memory_space<any>>
    %c0_i32_128 = arith.constant 0 : i32
    %c0_i32_129 = arith.constant 0 : i32
    %205 = tpu.memref_slice %arg4[%c25_i32_125, %c0_i32_128, %c0_i32_129] : memref<32x1x128xf32, #tpu.memory_space<vmem>> -> memref<1x1x128xf32, #tpu.memory_space<vmem>>
    %206 = tpu.memref_squeeze %205 : memref<1x1x128xf32, #tpu.memory_space<vmem>> -> memref<1x128xf32, #tpu.memory_space<vmem>>
    %207 = tpu.memref_slice %arg5[%c25_i32_126] : memref<32x!tpu.dma_semaphore, #tpu.memory_space<semaphore_mem>> -> memref<1x!tpu.dma_semaphore, #tpu.memory_space<semaphore_mem>>
    %208 = tpu.memref_squeeze %207 : memref<1x!tpu.dma_semaphore, #tpu.memory_space<semaphore_mem>> -> memref<!tpu.dma_semaphore, #tpu.memory_space<semaphore_mem>>
    tpu.enqueue_dma source(%204 : memref<1x128xf32, #tpu.memory_space<any>>) target(%206 : memref<1x128xf32, #tpu.memory_space<vmem>>) target_semaphore(%208 : memref<!tpu.dma_semaphore, #tpu.memory_space<semaphore_mem>>)
    %c26_i32 = arith.constant 26 : i32
    %209 = arith.addi %0, %c26_i32 : i32
    %210 = arith.index_cast %209 : i32 to index
    %211 = memref.load %arg1[%210] : memref<64xi32, #tpu.memory_space<smem>>
    %c26_i32_130 = arith.constant 26 : i32
    %c26_i32_131 = arith.constant 26 : i32
    %c0_i32_132 = arith.constant 0 : i32
    %212 = tpu.memref_slice %arg2[%211, %c0_i32_132] : memref<33x128xf32, #tpu.memory_space<any>> -> memref<1x128xf32, #tpu.memory_space<any>>
    %c0_i32_133 = arith.constant 0 : i32
    %c0_i32_134 = arith.constant 0 : i32
    %213 = tpu.memref_slice %arg4[%c26_i32_130, %c0_i32_133, %c0_i32_134] : memref<32x1x128xf32, #tpu.memory_space<vmem>> -> memref<1x1x128xf32, #tpu.memory_space<vmem>>
    %214 = tpu.memref_squeeze %213 : memref<1x1x128xf32, #tpu.memory_space<vmem>> -> memref<1x128xf32, #tpu.memory_space<vmem>>
    %215 = tpu.memref_slice %arg5[%c26_i32_131] : memref<32x!tpu.dma_semaphore, #tpu.memory_space<semaphore_mem>> -> memref<1x!tpu.dma_semaphore, #tpu.memory_space<semaphore_mem>>
    %216 = tpu.memref_squeeze %215 : memref<1x!tpu.dma_semaphore, #tpu.memory_space<semaphore_mem>> -> memref<!tpu.dma_semaphore, #tpu.memory_space<semaphore_mem>>
    tpu.enqueue_dma source(%212 : memref<1x128xf32, #tpu.memory_space<any>>) target(%214 : memref<1x128xf32, #tpu.memory_space<vmem>>) target_semaphore(%216 : memref<!tpu.dma_semaphore, #tpu.memory_space<semaphore_mem>>)
    %c27_i32 = arith.constant 27 : i32
    %217 = arith.addi %0, %c27_i32 : i32
    %218 = arith.index_cast %217 : i32 to index
    %219 = memref.load %arg1[%218] : memref<64xi32, #tpu.memory_space<smem>>
    %c27_i32_135 = arith.constant 27 : i32
    %c27_i32_136 = arith.constant 27 : i32
    %c0_i32_137 = arith.constant 0 : i32
    %220 = tpu.memref_slice %arg2[%219, %c0_i32_137] : memref<33x128xf32, #tpu.memory_space<any>> -> memref<1x128xf32, #tpu.memory_space<any>>
    %c0_i32_138 = arith.constant 0 : i32
    %c0_i32_139 = arith.constant 0 : i32
    %221 = tpu.memref_slice %arg4[%c27_i32_135, %c0_i32_138, %c0_i32_139] : memref<32x1x128xf32, #tpu.memory_space<vmem>> -> memref<1x1x128xf32, #tpu.memory_space<vmem>>
    %222 = tpu.memref_squeeze %221 : memref<1x1x128xf32, #tpu.memory_space<vmem>> -> memref<1x128xf32, #tpu.memory_space<vmem>>
    %223 = tpu.memref_slice %arg5[%c27_i32_136] : memref<32x!tpu.dma_semaphore, #tpu.memory_space<semaphore_mem>> -> memref<1x!tpu.dma_semaphore, #tpu.memory_space<semaphore_mem>>
    %224 = tpu.memref_squeeze %223 : memref<1x!tpu.dma_semaphore, #tpu.memory_space<semaphore_mem>> -> memref<!tpu.dma_semaphore, #tpu.memory_space<semaphore_mem>>
    tpu.enqueue_dma source(%220 : memref<1x128xf32, #tpu.memory_space<any>>) target(%222 : memref<1x128xf32, #tpu.memory_space<vmem>>) target_semaphore(%224 : memref<!tpu.dma_semaphore, #tpu.memory_space<semaphore_mem>>)
    %c28_i32 = arith.constant 28 : i32
    %225 = arith.addi %0, %c28_i32 : i32
    %226 = arith.index_cast %225 : i32 to index
    %227 = memref.load %arg1[%226] : memref<64xi32, #tpu.memory_space<smem>>
    %c28_i32_140 = arith.constant 28 : i32
    %c28_i32_141 = arith.constant 28 : i32
    %c0_i32_142 = arith.constant 0 : i32
    %228 = tpu.memref_slice %arg2[%227, %c0_i32_142] : memref<33x128xf32, #tpu.memory_space<any>> -> memref<1x128xf32, #tpu.memory_space<any>>
    %c0_i32_143 = arith.constant 0 : i32
    %c0_i32_144 = arith.constant 0 : i32
    %229 = tpu.memref_slice %arg4[%c28_i32_140, %c0_i32_143, %c0_i32_144] : memref<32x1x128xf32, #tpu.memory_space<vmem>> -> memref<1x1x128xf32, #tpu.memory_space<vmem>>
    %230 = tpu.memref_squeeze %229 : memref<1x1x128xf32, #tpu.memory_space<vmem>> -> memref<1x128xf32, #tpu.memory_space<vmem>>
    %231 = tpu.memref_slice %arg5[%c28_i32_141] : memref<32x!tpu.dma_semaphore, #tpu.memory_space<semaphore_mem>> -> memref<1x!tpu.dma_semaphore, #tpu.memory_space<semaphore_mem>>
    %232 = tpu.memref_squeeze %231 : memref<1x!tpu.dma_semaphore, #tpu.memory_space<semaphore_mem>> -> memref<!tpu.dma_semaphore, #tpu.memory_space<semaphore_mem>>
    tpu.enqueue_dma source(%228 : memref<1x128xf32, #tpu.memory_space<any>>) target(%230 : memref<1x128xf32, #tpu.memory_space<vmem>>) target_semaphore(%232 : memref<!tpu.dma_semaphore, #tpu.memory_space<semaphore_mem>>)
    %c29_i32 = arith.constant 29 : i32
    %233 = arith.addi %0, %c29_i32 : i32
    %234 = arith.index_cast %233 : i32 to index
    %235 = memref.load %arg1[%234] : memref<64xi32, #tpu.memory_space<smem>>
    %c29_i32_145 = arith.constant 29 : i32
    %c29_i32_146 = arith.constant 29 : i32
    %c0_i32_147 = arith.constant 0 : i32
    %236 = tpu.memref_slice %arg2[%235, %c0_i32_147] : memref<33x128xf32, #tpu.memory_space<any>> -> memref<1x128xf32, #tpu.memory_space<any>>
    %c0_i32_148 = arith.constant 0 : i32
    %c0_i32_149 = arith.constant 0 : i32
    %237 = tpu.memref_slice %arg4[%c29_i32_145, %c0_i32_148, %c0_i32_149] : memref<32x1x128xf32, #tpu.memory_space<vmem>> -> memref<1x1x128xf32, #tpu.memory_space<vmem>>
    %238 = tpu.memref_squeeze %237 : memref<1x1x128xf32, #tpu.memory_space<vmem>> -> memref<1x128xf32, #tpu.memory_space<vmem>>
    %239 = tpu.memref_slice %arg5[%c29_i32_146] : memref<32x!tpu.dma_semaphore, #tpu.memory_space<semaphore_mem>> -> memref<1x!tpu.dma_semaphore, #tpu.memory_space<semaphore_mem>>
    %240 = tpu.memref_squeeze %239 : memref<1x!tpu.dma_semaphore, #tpu.memory_space<semaphore_mem>> -> memref<!tpu.dma_semaphore, #tpu.memory_space<semaphore_mem>>
    tpu.enqueue_dma source(%236 : memref<1x128xf32, #tpu.memory_space<any>>) target(%238 : memref<1x128xf32, #tpu.memory_space<vmem>>) target_semaphore(%240 : memref<!tpu.dma_semaphore, #tpu.memory_space<semaphore_mem>>)
    %c30_i32 = arith.constant 30 : i32
    %241 = arith.addi %0, %c30_i32 : i32
    %242 = arith.index_cast %241 : i32 to index
    %243 = memref.load %arg1[%242] : memref<64xi32, #tpu.memory_space<smem>>
    %c30_i32_150 = arith.constant 30 : i32
    %c30_i32_151 = arith.constant 30 : i32
    %c0_i32_152 = arith.constant 0 : i32
    %244 = tpu.memref_slice %arg2[%243, %c0_i32_152] : memref<33x128xf32, #tpu.memory_space<any>> -> memref<1x128xf32, #tpu.memory_space<any>>
    %c0_i32_153 = arith.constant 0 : i32
    %c0_i32_154 = arith.constant 0 : i32
    %245 = tpu.memref_slice %arg4[%c30_i32_150, %c0_i32_153, %c0_i32_154] : memref<32x1x128xf32, #tpu.memory_space<vmem>> -> memref<1x1x128xf32, #tpu.memory_space<vmem>>
    %246 = tpu.memref_squeeze %245 : memref<1x1x128xf32, #tpu.memory_space<vmem>> -> memref<1x128xf32, #tpu.memory_space<vmem>>
    %247 = tpu.memref_slice %arg5[%c30_i32_151] : memref<32x!tpu.dma_semaphore, #tpu.memory_space<semaphore_mem>> -> memref<1x!tpu.dma_semaphore, #tpu.memory_space<semaphore_mem>>
    %248 = tpu.memref_squeeze %247 : memref<1x!tpu.dma_semaphore, #tpu.memory_space<semaphore_mem>> -> memref<!tpu.dma_semaphore, #tpu.memory_space<semaphore_mem>>
    tpu.enqueue_dma source(%244 : memref<1x128xf32, #tpu.memory_space<any>>) target(%246 : memref<1x128xf32, #tpu.memory_space<vmem>>) target_semaphore(%248 : memref<!tpu.dma_semaphore, #tpu.memory_space<semaphore_mem>>)
    %c31_i32 = arith.constant 31 : i32
    %249 = arith.addi %0, %c31_i32 : i32
    %250 = arith.index_cast %249 : i32 to index
    %251 = memref.load %arg1[%250] : memref<64xi32, #tpu.memory_space<smem>>
    %c31_i32_155 = arith.constant 31 : i32
    %c31_i32_156 = arith.constant 31 : i32
    %c0_i32_157 = arith.constant 0 : i32
    %252 = tpu.memref_slice %arg2[%251, %c0_i32_157] : memref<33x128xf32, #tpu.memory_space<any>> -> memref<1x128xf32, #tpu.memory_space<any>>
    %c0_i32_158 = arith.constant 0 : i32
    %c0_i32_159 = arith.constant 0 : i32
    %253 = tpu.memref_slice %arg4[%c31_i32_155, %c0_i32_158, %c0_i32_159] : memref<32x1x128xf32, #tpu.memory_space<vmem>> -> memref<1x1x128xf32, #tpu.memory_space<vmem>>
    %254 = tpu.memref_squeeze %253 : memref<1x1x128xf32, #tpu.memory_space<vmem>> -> memref<1x128xf32, #tpu.memory_space<vmem>>
    %255 = tpu.memref_slice %arg5[%c31_i32_156] : memref<32x!tpu.dma_semaphore, #tpu.memory_space<semaphore_mem>> -> memref<1x!tpu.dma_semaphore, #tpu.memory_space<semaphore_mem>>
    %256 = tpu.memref_squeeze %255 : memref<1x!tpu.dma_semaphore, #tpu.memory_space<semaphore_mem>> -> memref<!tpu.dma_semaphore, #tpu.memory_space<semaphore_mem>>
    tpu.enqueue_dma source(%252 : memref<1x128xf32, #tpu.memory_space<any>>) target(%254 : memref<1x128xf32, #tpu.memory_space<vmem>>) target_semaphore(%256 : memref<!tpu.dma_semaphore, #tpu.memory_space<semaphore_mem>>)
    %cst = arith.constant 0.000000e+00 : f32
    %257 = vector.broadcast %cst : f32 to vector<1x128xf32>
    %c0_i32_160 = arith.constant 0 : i32
    %c0_i32_161 = arith.constant 0 : i32
    %c0_i32_162 = arith.constant 0 : i32
    %c0_i32_163 = arith.constant 0 : i32
    %258 = tpu.memref_slice %arg2[%c0_i32_162, %c0_i32_163] : memref<33x128xf32, #tpu.memory_space<any>> -> memref<1x128xf32, #tpu.memory_space<any>>
    %c0_i32_164 = arith.constant 0 : i32
    %c0_i32_165 = arith.constant 0 : i32
    %259 = tpu.memref_slice %arg4[%c0_i32_160, %c0_i32_164, %c0_i32_165] : memref<32x1x128xf32, #tpu.memory_space<vmem>> -> memref<1x1x128xf32, #tpu.memory_space<vmem>>
    %260 = tpu.memref_squeeze %259 : memref<1x1x128xf32, #tpu.memory_space<vmem>> -> memref<1x128xf32, #tpu.memory_space<vmem>>
    %261 = tpu.memref_slice %arg5[%c0_i32_161] : memref<32x!tpu.dma_semaphore, #tpu.memory_space<semaphore_mem>> -> memref<1x!tpu.dma_semaphore, #tpu.memory_space<semaphore_mem>>
    %262 = tpu.memref_squeeze %261 : memref<1x!tpu.dma_semaphore, #tpu.memory_space<semaphore_mem>> -> memref<!tpu.dma_semaphore, #tpu.memory_space<semaphore_mem>>
    tpu.wait_dma2 semaphore(%262 : memref<!tpu.dma_semaphore, #tpu.memory_space<semaphore_mem>>) src(%258 : memref<1x128xf32, #tpu.memory_space<any>>) dst(%260 : memref<1x128xf32, #tpu.memory_space<vmem>>)
    %c0 = arith.constant 0 : index
    %c0_166 = arith.constant 0 : index
    %c0_167 = arith.constant 0 : index
    %263 = vector.load %arg4[%c0, %c0_166, %c0_167] : memref<32x1x128xf32, #tpu.memory_space<vmem>>, vector<1x1x128xf32>
    %264 = vector.shape_cast %263 : vector<1x1x128xf32> to vector<1x128xf32>
    %265 = arith.addf %257, %264 : vector<1x128xf32>
    %c1_i32_168 = arith.constant 1 : i32
    %c1_i32_169 = arith.constant 1 : i32
    %c0_i32_170 = arith.constant 0 : i32
    %c0_i32_171 = arith.constant 0 : i32
    %266 = tpu.memref_slice %arg2[%c0_i32_170, %c0_i32_171] : memref<33x128xf32, #tpu.memory_space<any>> -> memref<1x128xf32, #tpu.memory_space<any>>
    %c0_i32_172 = arith.constant 0 : i32
    %c0_i32_173 = arith.constant 0 : i32
    %267 = tpu.memref_slice %arg4[%c1_i32_168, %c0_i32_172, %c0_i32_173] : memref<32x1x128xf32, #tpu.memory_space<vmem>> -> memref<1x1x128xf32, #tpu.memory_space<vmem>>
    %268 = tpu.memref_squeeze %267 : memref<1x1x128xf32, #tpu.memory_space<vmem>> -> memref<1x128xf32, #tpu.memory_space<vmem>>
    %269 = tpu.memref_slice %arg5[%c1_i32_169] : memref<32x!tpu.dma_semaphore, #tpu.memory_space<semaphore_mem>> -> memref<1x!tpu.dma_semaphore, #tpu.memory_space<semaphore_mem>>
    %270 = tpu.memref_squeeze %269 : memref<1x!tpu.dma_semaphore, #tpu.memory_space<semaphore_mem>> -> memref<!tpu.dma_semaphore, #tpu.memory_space<semaphore_mem>>
    tpu.wait_dma2 semaphore(%270 : memref<!tpu.dma_semaphore, #tpu.memory_space<semaphore_mem>>) src(%266 : memref<1x128xf32, #tpu.memory_space<any>>) dst(%268 : memref<1x128xf32, #tpu.memory_space<vmem>>)
    %c1 = arith.constant 1 : index
    %c0_174 = arith.constant 0 : index
    %c0_175 = arith.constant 0 : index
    %271 = vector.load %arg4[%c1, %c0_174, %c0_175] : memref<32x1x128xf32, #tpu.memory_space<vmem>>, vector<1x1x128xf32>
    %272 = vector.shape_cast %271 : vector<1x1x128xf32> to vector<1x128xf32>
    %273 = arith.addf %265, %272 : vector<1x128xf32>
    %c2_i32_176 = arith.constant 2 : i32
    %c2_i32_177 = arith.constant 2 : i32
    %c0_i32_178 = arith.constant 0 : i32
    %c0_i32_179 = arith.constant 0 : i32
    %274 = tpu.memref_slice %arg2[%c0_i32_178, %c0_i32_179] : memref<33x128xf32, #tpu.memory_space<any>> -> memref<1x128xf32, #tpu.memory_space<any>>
    %c0_i32_180 = arith.constant 0 : i32
    %c0_i32_181 = arith.constant 0 : i32
    %275 = tpu.memref_slice %arg4[%c2_i32_176, %c0_i32_180, %c0_i32_181] : memref<32x1x128xf32, #tpu.memory_space<vmem>> -> memref<1x1x128xf32, #tpu.memory_space<vmem>>
    %276 = tpu.memref_squeeze %275 : memref<1x1x128xf32, #tpu.memory_space<vmem>> -> memref<1x128xf32, #tpu.memory_space<vmem>>
    %277 = tpu.memref_slice %arg5[%c2_i32_177] : memref<32x!tpu.dma_semaphore, #tpu.memory_space<semaphore_mem>> -> memref<1x!tpu.dma_semaphore, #tpu.memory_space<semaphore_mem>>
    %278 = tpu.memref_squeeze %277 : memref<1x!tpu.dma_semaphore, #tpu.memory_space<semaphore_mem>> -> memref<!tpu.dma_semaphore, #tpu.memory_space<semaphore_mem>>
    tpu.wait_dma2 semaphore(%278 : memref<!tpu.dma_semaphore, #tpu.memory_space<semaphore_mem>>) src(%274 : memref<1x128xf32, #tpu.memory_space<any>>) dst(%276 : memref<1x128xf32, #tpu.memory_space<vmem>>)
    %c2 = arith.constant 2 : index
    %c0_182 = arith.constant 0 : index
    %c0_183 = arith.constant 0 : index
    %279 = vector.load %arg4[%c2, %c0_182, %c0_183] : memref<32x1x128xf32, #tpu.memory_space<vmem>>, vector<1x1x128xf32>
    %280 = vector.shape_cast %279 : vector<1x1x128xf32> to vector<1x128xf32>
    %281 = arith.addf %273, %280 : vector<1x128xf32>
    %c3_i32_184 = arith.constant 3 : i32
    %c3_i32_185 = arith.constant 3 : i32
    %c0_i32_186 = arith.constant 0 : i32
    %c0_i32_187 = arith.constant 0 : i32
    %282 = tpu.memref_slice %arg2[%c0_i32_186, %c0_i32_187] : memref<33x128xf32, #tpu.memory_space<any>> -> memref<1x128xf32, #tpu.memory_space<any>>
    %c0_i32_188 = arith.constant 0 : i32
    %c0_i32_189 = arith.constant 0 : i32
    %283 = tpu.memref_slice %arg4[%c3_i32_184, %c0_i32_188, %c0_i32_189] : memref<32x1x128xf32, #tpu.memory_space<vmem>> -> memref<1x1x128xf32, #tpu.memory_space<vmem>>
    %284 = tpu.memref_squeeze %283 : memref<1x1x128xf32, #tpu.memory_space<vmem>> -> memref<1x128xf32, #tpu.memory_space<vmem>>
    %285 = tpu.memref_slice %arg5[%c3_i32_185] : memref<32x!tpu.dma_semaphore, #tpu.memory_space<semaphore_mem>> -> memref<1x!tpu.dma_semaphore, #tpu.memory_space<semaphore_mem>>
    %286 = tpu.memref_squeeze %285 : memref<1x!tpu.dma_semaphore, #tpu.memory_space<semaphore_mem>> -> memref<!tpu.dma_semaphore, #tpu.memory_space<semaphore_mem>>
    tpu.wait_dma2 semaphore(%286 : memref<!tpu.dma_semaphore, #tpu.memory_space<semaphore_mem>>) src(%282 : memref<1x128xf32, #tpu.memory_space<any>>) dst(%284 : memref<1x128xf32, #tpu.memory_space<vmem>>)
    %c3 = arith.constant 3 : index
    %c0_190 = arith.constant 0 : index
    %c0_191 = arith.constant 0 : index
    %287 = vector.load %arg4[%c3, %c0_190, %c0_191] : memref<32x1x128xf32, #tpu.memory_space<vmem>>, vector<1x1x128xf32>
    %288 = vector.shape_cast %287 : vector<1x1x128xf32> to vector<1x128xf32>
    %289 = arith.addf %281, %288 : vector<1x128xf32>
    %cst_192 = arith.constant 2.500000e-01 : f32
    %290 = vector.broadcast %cst_192 : f32 to vector<1x128xf32>
    %291 = arith.mulf %289, %290 : vector<1x128xf32>
    %c0_193 = arith.constant 0 : index
    %c0_194 = arith.constant 0 : index
    %292 = vector.load %arg3[%c0_193, %c0_194] : memref<8x128xf32, #tpu.memory_space<vmem>>, vector<1x128xf32>
    tpu.vector_store %arg3[%c0_193, %c0_194], %291 {strides = array<i32>} : memref<8x128xf32, #tpu.memory_space<vmem>>, vector<1x128xf32>,
    %cst_195 = arith.constant 0.000000e+00 : f32
    %293 = vector.broadcast %cst_195 : f32 to vector<1x128xf32>
    %c4_i32_196 = arith.constant 4 : i32
    %c4_i32_197 = arith.constant 4 : i32
    %c0_i32_198 = arith.constant 0 : i32
    %c0_i32_199 = arith.constant 0 : i32
    %294 = tpu.memref_slice %arg2[%c0_i32_198, %c0_i32_199] : memref<33x128xf32, #tpu.memory_space<any>> -> memref<1x128xf32, #tpu.memory_space<any>>
    %c0_i32_200 = arith.constant 0 : i32
    %c0_i32_201 = arith.constant 0 : i32
    %295 = tpu.memref_slice %arg4[%c4_i32_196, %c0_i32_200, %c0_i32_201] : memref<32x1x128xf32, #tpu.memory_space<vmem>> -> memref<1x1x128xf32, #tpu.memory_space<vmem>>
    %296 = tpu.memref_squeeze %295 : memref<1x1x128xf32, #tpu.memory_space<vmem>> -> memref<1x128xf32, #tpu.memory_space<vmem>>
    %297 = tpu.memref_slice %arg5[%c4_i32_197] : memref<32x!tpu.dma_semaphore, #tpu.memory_space<semaphore_mem>> -> memref<1x!tpu.dma_semaphore, #tpu.memory_space<semaphore_mem>>
    %298 = tpu.memref_squeeze %297 : memref<1x!tpu.dma_semaphore, #tpu.memory_space<semaphore_mem>> -> memref<!tpu.dma_semaphore, #tpu.memory_space<semaphore_mem>>
    tpu.wait_dma2 semaphore(%298 : memref<!tpu.dma_semaphore, #tpu.memory_space<semaphore_mem>>) src(%294 : memref<1x128xf32, #tpu.memory_space<any>>) dst(%296 : memref<1x128xf32, #tpu.memory_space<vmem>>)
    %c4 = arith.constant 4 : index
    %c0_202 = arith.constant 0 : index
    %c0_203 = arith.constant 0 : index
    %299 = vector.load %arg4[%c4, %c0_202, %c0_203] : memref<32x1x128xf32, #tpu.memory_space<vmem>>, vector<1x1x128xf32>
    %300 = vector.shape_cast %299 : vector<1x1x128xf32> to vector<1x128xf32>
    %301 = arith.addf %293, %300 : vector<1x128xf32>
    %c5_i32_204 = arith.constant 5 : i32
    %c5_i32_205 = arith.constant 5 : i32
    %c0_i32_206 = arith.constant 0 : i32
    %c0_i32_207 = arith.constant 0 : i32
    %302 = tpu.memref_slice %arg2[%c0_i32_206, %c0_i32_207] : memref<33x128xf32, #tpu.memory_space<any>> -> memref<1x128xf32, #tpu.memory_space<any>>
    %c0_i32_208 = arith.constant 0 : i32
    %c0_i32_209 = arith.constant 0 : i32
    %303 = tpu.memref_slice %arg4[%c5_i32_204, %c0_i32_208, %c0_i32_209] : memref<32x1x128xf32, #tpu.memory_space<vmem>> -> memref<1x1x128xf32, #tpu.memory_space<vmem>>
    %304 = tpu.memref_squeeze %303 : memref<1x1x128xf32, #tpu.memory_space<vmem>> -> memref<1x128xf32, #tpu.memory_space<vmem>>
    %305 = tpu.memref_slice %arg5[%c5_i32_205] : memref<32x!tpu.dma_semaphore, #tpu.memory_space<semaphore_mem>> -> memref<1x!tpu.dma_semaphore, #tpu.memory_space<semaphore_mem>>
    %306 = tpu.memref_squeeze %305 : memref<1x!tpu.dma_semaphore, #tpu.memory_space<semaphore_mem>> -> memref<!tpu.dma_semaphore, #tpu.memory_space<semaphore_mem>>
    tpu.wait_dma2 semaphore(%306 : memref<!tpu.dma_semaphore, #tpu.memory_space<semaphore_mem>>) src(%302 : memref<1x128xf32, #tpu.memory_space<any>>) dst(%304 : memref<1x128xf32, #tpu.memory_space<vmem>>)
    %c5 = arith.constant 5 : index
    %c0_210 = arith.constant 0 : index
    %c0_211 = arith.constant 0 : index
    %307 = vector.load %arg4[%c5, %c0_210, %c0_211] : memref<32x1x128xf32, #tpu.memory_space<vmem>>, vector<1x1x128xf32>
    %308 = vector.shape_cast %307 : vector<1x1x128xf32> to vector<1x128xf32>
    %309 = arith.addf %301, %308 : vector<1x128xf32>
    %c6_i32_212 = arith.constant 6 : i32
    %c6_i32_213 = arith.constant 6 : i32
    %c0_i32_214 = arith.constant 0 : i32
    %c0_i32_215 = arith.constant 0 : i32
    %310 = tpu.memref_slice %arg2[%c0_i32_214, %c0_i32_215] : memref<33x128xf32, #tpu.memory_space<any>> -> memref<1x128xf32, #tpu.memory_space<any>>
    %c0_i32_216 = arith.constant 0 : i32
    %c0_i32_217 = arith.constant 0 : i32
    %311 = tpu.memref_slice %arg4[%c6_i32_212, %c0_i32_216, %c0_i32_217] : memref<32x1x128xf32, #tpu.memory_space<vmem>> -> memref<1x1x128xf32, #tpu.memory_space<vmem>>
    %312 = tpu.memref_squeeze %311 : memref<1x1x128xf32, #tpu.memory_space<vmem>> -> memref<1x128xf32, #tpu.memory_space<vmem>>
    %313 = tpu.memref_slice %arg5[%c6_i32_213] : memref<32x!tpu.dma_semaphore, #tpu.memory_space<semaphore_mem>> -> memref<1x!tpu.dma_semaphore, #tpu.memory_space<semaphore_mem>>
    %314 = tpu.memref_squeeze %313 : memref<1x!tpu.dma_semaphore, #tpu.memory_space<semaphore_mem>> -> memref<!tpu.dma_semaphore, #tpu.memory_space<semaphore_mem>>
    tpu.wait_dma2 semaphore(%314 : memref<!tpu.dma_semaphore, #tpu.memory_space<semaphore_mem>>) src(%310 : memref<1x128xf32, #tpu.memory_space<any>>) dst(%312 : memref<1x128xf32, #tpu.memory_space<vmem>>)
    %c6 = arith.constant 6 : index
    %c0_218 = arith.constant 0 : index
    %c0_219 = arith.constant 0 : index
    %315 = vector.load %arg4[%c6, %c0_218, %c0_219] : memref<32x1x128xf32, #tpu.memory_space<vmem>>, vector<1x1x128xf32>
    %316 = vector.shape_cast %315 : vector<1x1x128xf32> to vector<1x128xf32>
    %317 = arith.addf %309, %316 : vector<1x128xf32>
    %c7_i32_220 = arith.constant 7 : i32
    %c7_i32_221 = arith.constant 7 : i32
    %c0_i32_222 = arith.constant 0 : i32
    %c0_i32_223 = arith.constant 0 : i32
    %318 = tpu.memref_slice %arg2[%c0_i32_222, %c0_i32_223] : memref<33x128xf32, #tpu.memory_space<any>> -> memref<1x128xf32, #tpu.memory_space<any>>
    %c0_i32_224 = arith.constant 0 : i32
    %c0_i32_225 = arith.constant 0 : i32
    %319 = tpu.memref_slice %arg4[%c7_i32_220, %c0_i32_224, %c0_i32_225] : memref<32x1x128xf32, #tpu.memory_space<vmem>> -> memref<1x1x128xf32, #tpu.memory_space<vmem>>
    %320 = tpu.memref_squeeze %319 : memref<1x1x128xf32, #tpu.memory_space<vmem>> -> memref<1x128xf32, #tpu.memory_space<vmem>>
    %321 = tpu.memref_slice %arg5[%c7_i32_221] : memref<32x!tpu.dma_semaphore, #tpu.memory_space<semaphore_mem>> -> memref<1x!tpu.dma_semaphore, #tpu.memory_space<semaphore_mem>>
    %322 = tpu.memref_squeeze %321 : memref<1x!tpu.dma_semaphore, #tpu.memory_space<semaphore_mem>> -> memref<!tpu.dma_semaphore, #tpu.memory_space<semaphore_mem>>
    tpu.wait_dma2 semaphore(%322 : memref<!tpu.dma_semaphore, #tpu.memory_space<semaphore_mem>>) src(%318 : memref<1x128xf32, #tpu.memory_space<any>>) dst(%320 : memref<1x128xf32, #tpu.memory_space<vmem>>)
    %c7 = arith.constant 7 : index
    %c0_226 = arith.constant 0 : index
    %c0_227 = arith.constant 0 : index
    %323 = vector.load %arg4[%c7, %c0_226, %c0_227] : memref<32x1x128xf32, #tpu.memory_space<vmem>>, vector<1x1x128xf32>
    %324 = vector.shape_cast %323 : vector<1x1x128xf32> to vector<1x128xf32>
    %325 = arith.addf %317, %324 : vector<1x128xf32>
    %cst_228 = arith.constant 2.500000e-01 : f32
    %326 = vector.broadcast %cst_228 : f32 to vector<1x128xf32>
    %327 = arith.mulf %325, %326 : vector<1x128xf32>
    %c1_229 = arith.constant 1 : index
    %c0_230 = arith.constant 0 : index
    %328 = vector.load %arg3[%c1_229, %c0_230] : memref<8x128xf32, #tpu.memory_space<vmem>>, vector<1x128xf32>
    tpu.vector_store %arg3[%c1_229, %c0_230], %327 {strides = array<i32>} : memref<8x128xf32, #tpu.memory_space<vmem>>, vector<1x128xf32>,
    %cst_231 = arith.constant 0.000000e+00 : f32
    %329 = vector.broadcast %cst_231 : f32 to vector<1x128xf32>
    %c8_i32_232 = arith.constant 8 : i32
    %c8_i32_233 = arith.constant 8 : i32
    %c0_i32_234 = arith.constant 0 : i32
    %c0_i32_235 = arith.constant 0 : i32
    %330 = tpu.memref_slice %arg2[%c0_i32_234, %c0_i32_235] : memref<33x128xf32, #tpu.memory_space<any>> -> memref<1x128xf32, #tpu.memory_space<any>>
    %c0_i32_236 = arith.constant 0 : i32
    %c0_i32_237 = arith.constant 0 : i32
    %331 = tpu.memref_slice %arg4[%c8_i32_232, %c0_i32_236, %c0_i32_237] : memref<32x1x128xf32, #tpu.memory_space<vmem>> -> memref<1x1x128xf32, #tpu.memory_space<vmem>>
    %332 = tpu.memref_squeeze %331 : memref<1x1x128xf32, #tpu.memory_space<vmem>> -> memref<1x128xf32, #tpu.memory_space<vmem>>
    %333 = tpu.memref_slice %arg5[%c8_i32_233] : memref<32x!tpu.dma_semaphore, #tpu.memory_space<semaphore_mem>> -> memref<1x!tpu.dma_semaphore, #tpu.memory_space<semaphore_mem>>
    %334 = tpu.memref_squeeze %333 : memref<1x!tpu.dma_semaphore, #tpu.memory_space<semaphore_mem>> -> memref<!tpu.dma_semaphore, #tpu.memory_space<semaphore_mem>>
    tpu.wait_dma2 semaphore(%334 : memref<!tpu.dma_semaphore, #tpu.memory_space<semaphore_mem>>) src(%330 : memref<1x128xf32, #tpu.memory_space<any>>) dst(%332 : memref<1x128xf32, #tpu.memory_space<vmem>>)
    %c8 = arith.constant 8 : index
    %c0_238 = arith.constant 0 : index
    %c0_239 = arith.constant 0 : index
    %335 = vector.load %arg4[%c8, %c0_238, %c0_239] : memref<32x1x128xf32, #tpu.memory_space<vmem>>, vector<1x1x128xf32>
    %336 = vector.shape_cast %335 : vector<1x1x128xf32> to vector<1x128xf32>
    %337 = arith.addf %329, %336 : vector<1x128xf32>
    %c9_i32_240 = arith.constant 9 : i32
    %c9_i32_241 = arith.constant 9 : i32
    %c0_i32_242 = arith.constant 0 : i32
    %c0_i32_243 = arith.constant 0 : i32
    %338 = tpu.memref_slice %arg2[%c0_i32_242, %c0_i32_243] : memref<33x128xf32, #tpu.memory_space<any>> -> memref<1x128xf32, #tpu.memory_space<any>>
    %c0_i32_244 = arith.constant 0 : i32
    %c0_i32_245 = arith.constant 0 : i32
    %339 = tpu.memref_slice %arg4[%c9_i32_240, %c0_i32_244, %c0_i32_245] : memref<32x1x128xf32, #tpu.memory_space<vmem>> -> memref<1x1x128xf32, #tpu.memory_space<vmem>>
    %340 = tpu.memref_squeeze %339 : memref<1x1x128xf32, #tpu.memory_space<vmem>> -> memref<1x128xf32, #tpu.memory_space<vmem>>
    %341 = tpu.memref_slice %arg5[%c9_i32_241] : memref<32x!tpu.dma_semaphore, #tpu.memory_space<semaphore_mem>> -> memref<1x!tpu.dma_semaphore, #tpu.memory_space<semaphore_mem>>
    %342 = tpu.memref_squeeze %341 : memref<1x!tpu.dma_semaphore, #tpu.memory_space<semaphore_mem>> -> memref<!tpu.dma_semaphore, #tpu.memory_space<semaphore_mem>>
    tpu.wait_dma2 semaphore(%342 : memref<!tpu.dma_semaphore, #tpu.memory_space<semaphore_mem>>) src(%338 : memref<1x128xf32, #tpu.memory_space<any>>) dst(%340 : memref<1x128xf32, #tpu.memory_space<vmem>>)
    %c9 = arith.constant 9 : index
    %c0_246 = arith.constant 0 : index
    %c0_247 = arith.constant 0 : index
    %343 = vector.load %arg4[%c9, %c0_246, %c0_247] : memref<32x1x128xf32, #tpu.memory_space<vmem>>, vector<1x1x128xf32>
    %344 = vector.shape_cast %343 : vector<1x1x128xf32> to vector<1x128xf32>
    %345 = arith.addf %337, %344 : vector<1x128xf32>
    %c10_i32_248 = arith.constant 10 : i32
    %c10_i32_249 = arith.constant 10 : i32
    %c0_i32_250 = arith.constant 0 : i32
    %c0_i32_251 = arith.constant 0 : i32
    %346 = tpu.memref_slice %arg2[%c0_i32_250, %c0_i32_251] : memref<33x128xf32, #tpu.memory_space<any>> -> memref<1x128xf32, #tpu.memory_space<any>>
    %c0_i32_252 = arith.constant 0 : i32
    %c0_i32_253 = arith.constant 0 : i32
    %347 = tpu.memref_slice %arg4[%c10_i32_248, %c0_i32_252, %c0_i32_253] : memref<32x1x128xf32, #tpu.memory_space<vmem>> -> memref<1x1x128xf32, #tpu.memory_space<vmem>>
    %348 = tpu.memref_squeeze %347 : memref<1x1x128xf32, #tpu.memory_space<vmem>> -> memref<1x128xf32, #tpu.memory_space<vmem>>
    %349 = tpu.memref_slice %arg5[%c10_i32_249] : memref<32x!tpu.dma_semaphore, #tpu.memory_space<semaphore_mem>> -> memref<1x!tpu.dma_semaphore, #tpu.memory_space<semaphore_mem>>
    %350 = tpu.memref_squeeze %349 : memref<1x!tpu.dma_semaphore, #tpu.memory_space<semaphore_mem>> -> memref<!tpu.dma_semaphore, #tpu.memory_space<semaphore_mem>>
    tpu.wait_dma2 semaphore(%350 : memref<!tpu.dma_semaphore, #tpu.memory_space<semaphore_mem>>) src(%346 : memref<1x128xf32, #tpu.memory_space<any>>) dst(%348 : memref<1x128xf32, #tpu.memory_space<vmem>>)
    %c10 = arith.constant 10 : index
    %c0_254 = arith.constant 0 : index
    %c0_255 = arith.constant 0 : index
    %351 = vector.load %arg4[%c10, %c0_254, %c0_255] : memref<32x1x128xf32, #tpu.memory_space<vmem>>, vector<1x1x128xf32>
    %352 = vector.shape_cast %351 : vector<1x1x128xf32> to vector<1x128xf32>
    %353 = arith.addf %345, %352 : vector<1x128xf32>
    %c11_i32_256 = arith.constant 11 : i32
    %c11_i32_257 = arith.constant 11 : i32
    %c0_i32_258 = arith.constant 0 : i32
    %c0_i32_259 = arith.constant 0 : i32
    %354 = tpu.memref_slice %arg2[%c0_i32_258, %c0_i32_259] : memref<33x128xf32, #tpu.memory_space<any>> -> memref<1x128xf32, #tpu.memory_space<any>>
    %c0_i32_260 = arith.constant 0 : i32
    %c0_i32_261 = arith.constant 0 : i32
    %355 = tpu.memref_slice %arg4[%c11_i32_256, %c0_i32_260, %c0_i32_261] : memref<32x1x128xf32, #tpu.memory_space<vmem>> -> memref<1x1x128xf32, #tpu.memory_space<vmem>>
    %356 = tpu.memref_squeeze %355 : memref<1x1x128xf32, #tpu.memory_space<vmem>> -> memref<1x128xf32, #tpu.memory_space<vmem>>
    %357 = tpu.memref_slice %arg5[%c11_i32_257] : memref<32x!tpu.dma_semaphore, #tpu.memory_space<semaphore_mem>> -> memref<1x!tpu.dma_semaphore, #tpu.memory_space<semaphore_mem>>
    %358 = tpu.memref_squeeze %357 : memref<1x!tpu.dma_semaphore, #tpu.memory_space<semaphore_mem>> -> memref<!tpu.dma_semaphore, #tpu.memory_space<semaphore_mem>>
    tpu.wait_dma2 semaphore(%358 : memref<!tpu.dma_semaphore, #tpu.memory_space<semaphore_mem>>) src(%354 : memref<1x128xf32, #tpu.memory_space<any>>) dst(%356 : memref<1x128xf32, #tpu.memory_space<vmem>>)
    %c11 = arith.constant 11 : index
    %c0_262 = arith.constant 0 : index
    %c0_263 = arith.constant 0 : index
    %359 = vector.load %arg4[%c11, %c0_262, %c0_263] : memref<32x1x128xf32, #tpu.memory_space<vmem>>, vector<1x1x128xf32>
    %360 = vector.shape_cast %359 : vector<1x1x128xf32> to vector<1x128xf32>
    %361 = arith.addf %353, %360 : vector<1x128xf32>
    %cst_264 = arith.constant 2.500000e-01 : f32
    %362 = vector.broadcast %cst_264 : f32 to vector<1x128xf32>
    %363 = arith.mulf %361, %362 : vector<1x128xf32>
    %c2_265 = arith.constant 2 : index
    %c0_266 = arith.constant 0 : index
    %364 = vector.load %arg3[%c2_265, %c0_266] : memref<8x128xf32, #tpu.memory_space<vmem>>, vector<1x128xf32>
    tpu.vector_store %arg3[%c2_265, %c0_266], %363 {strides = array<i32>} : memref<8x128xf32, #tpu.memory_space<vmem>>, vector<1x128xf32>,
    %cst_267 = arith.constant 0.000000e+00 : f32
    %365 = vector.broadcast %cst_267 : f32 to vector<1x128xf32>
    %c12_i32_268 = arith.constant 12 : i32
    %c12_i32_269 = arith.constant 12 : i32
    %c0_i32_270 = arith.constant 0 : i32
    %c0_i32_271 = arith.constant 0 : i32
    %366 = tpu.memref_slice %arg2[%c0_i32_270, %c0_i32_271] : memref<33x128xf32, #tpu.memory_space<any>> -> memref<1x128xf32, #tpu.memory_space<any>>
    %c0_i32_272 = arith.constant 0 : i32
    %c0_i32_273 = arith.constant 0 : i32
    %367 = tpu.memref_slice %arg4[%c12_i32_268, %c0_i32_272, %c0_i32_273] : memref<32x1x128xf32, #tpu.memory_space<vmem>> -> memref<1x1x128xf32, #tpu.memory_space<vmem>>
    %368 = tpu.memref_squeeze %367 : memref<1x1x128xf32, #tpu.memory_space<vmem>> -> memref<1x128xf32, #tpu.memory_space<vmem>>
    %369 = tpu.memref_slice %arg5[%c12_i32_269] : memref<32x!tpu.dma_semaphore, #tpu.memory_space<semaphore_mem>> -> memref<1x!tpu.dma_semaphore, #tpu.memory_space<semaphore_mem>>
    %370 = tpu.memref_squeeze %369 : memref<1x!tpu.dma_semaphore, #tpu.memory_space<semaphore_mem>> -> memref<!tpu.dma_semaphore, #tpu.memory_space<semaphore_mem>>
    tpu.wait_dma2 semaphore(%370 : memref<!tpu.dma_semaphore, #tpu.memory_space<semaphore_mem>>) src(%366 : memref<1x128xf32, #tpu.memory_space<any>>) dst(%368 : memref<1x128xf32, #tpu.memory_space<vmem>>)
    %c12 = arith.constant 12 : index
    %c0_274 = arith.constant 0 : index
    %c0_275 = arith.constant 0 : index
    %371 = vector.load %arg4[%c12, %c0_274, %c0_275] : memref<32x1x128xf32, #tpu.memory_space<vmem>>, vector<1x1x128xf32>
    %372 = vector.shape_cast %371 : vector<1x1x128xf32> to vector<1x128xf32>
    %373 = arith.addf %365, %372 : vector<1x128xf32>
    %c13_i32_276 = arith.constant 13 : i32
    %c13_i32_277 = arith.constant 13 : i32
    %c0_i32_278 = arith.constant 0 : i32
    %c0_i32_279 = arith.constant 0 : i32
    %374 = tpu.memref_slice %arg2[%c0_i32_278, %c0_i32_279] : memref<33x128xf32, #tpu.memory_space<any>> -> memref<1x128xf32, #tpu.memory_space<any>>
    %c0_i32_280 = arith.constant 0 : i32
    %c0_i32_281 = arith.constant 0 : i32
    %375 = tpu.memref_slice %arg4[%c13_i32_276, %c0_i32_280, %c0_i32_281] : memref<32x1x128xf32, #tpu.memory_space<vmem>> -> memref<1x1x128xf32, #tpu.memory_space<vmem>>
    %376 = tpu.memref_squeeze %375 : memref<1x1x128xf32, #tpu.memory_space<vmem>> -> memref<1x128xf32, #tpu.memory_space<vmem>>
    %377 = tpu.memref_slice %arg5[%c13_i32_277] : memref<32x!tpu.dma_semaphore, #tpu.memory_space<semaphore_mem>> -> memref<1x!tpu.dma_semaphore, #tpu.memory_space<semaphore_mem>>
    %378 = tpu.memref_squeeze %377 : memref<1x!tpu.dma_semaphore, #tpu.memory_space<semaphore_mem>> -> memref<!tpu.dma_semaphore, #tpu.memory_space<semaphore_mem>>
    tpu.wait_dma2 semaphore(%378 : memref<!tpu.dma_semaphore, #tpu.memory_space<semaphore_mem>>) src(%374 : memref<1x128xf32, #tpu.memory_space<any>>) dst(%376 : memref<1x128xf32, #tpu.memory_space<vmem>>)
    %c13 = arith.constant 13 : index
    %c0_282 = arith.constant 0 : index
    %c0_283 = arith.constant 0 : index
    %379 = vector.load %arg4[%c13, %c0_282, %c0_283] : memref<32x1x128xf32, #tpu.memory_space<vmem>>, vector<1x1x128xf32>
    %380 = vector.shape_cast %379 : vector<1x1x128xf32> to vector<1x128xf32>
    %381 = arith.addf %373, %380 : vector<1x128xf32>
    %c14_i32_284 = arith.constant 14 : i32
    %c14_i32_285 = arith.constant 14 : i32
    %c0_i32_286 = arith.constant 0 : i32
    %c0_i32_287 = arith.constant 0 : i32
    %382 = tpu.memref_slice %arg2[%c0_i32_286, %c0_i32_287] : memref<33x128xf32, #tpu.memory_space<any>> -> memref<1x128xf32, #tpu.memory_space<any>>
    %c0_i32_288 = arith.constant 0 : i32
    %c0_i32_289 = arith.constant 0 : i32
    %383 = tpu.memref_slice %arg4[%c14_i32_284, %c0_i32_288, %c0_i32_289] : memref<32x1x128xf32, #tpu.memory_space<vmem>> -> memref<1x1x128xf32, #tpu.memory_space<vmem>>
    %384 = tpu.memref_squeeze %383 : memref<1x1x128xf32, #tpu.memory_space<vmem>> -> memref<1x128xf32, #tpu.memory_space<vmem>>
    %385 = tpu.memref_slice %arg5[%c14_i32_285] : memref<32x!tpu.dma_semaphore, #tpu.memory_space<semaphore_mem>> -> memref<1x!tpu.dma_semaphore, #tpu.memory_space<semaphore_mem>>
    %386 = tpu.memref_squeeze %385 : memref<1x!tpu.dma_semaphore, #tpu.memory_space<semaphore_mem>> -> memref<!tpu.dma_semaphore, #tpu.memory_space<semaphore_mem>>
    tpu.wait_dma2 semaphore(%386 : memref<!tpu.dma_semaphore, #tpu.memory_space<semaphore_mem>>) src(%382 : memref<1x128xf32, #tpu.memory_space<any>>) dst(%384 : memref<1x128xf32, #tpu.memory_space<vmem>>)
    %c14 = arith.constant 14 : index
    %c0_290 = arith.constant 0 : index
    %c0_291 = arith.constant 0 : index
    %387 = vector.load %arg4[%c14, %c0_290, %c0_291] : memref<32x1x128xf32, #tpu.memory_space<vmem>>, vector<1x1x128xf32>
    %388 = vector.shape_cast %387 : vector<1x1x128xf32> to vector<1x128xf32>
    %389 = arith.addf %381, %388 : vector<1x128xf32>
    %c15_i32_292 = arith.constant 15 : i32
    %c15_i32_293 = arith.constant 15 : i32
    %c0_i32_294 = arith.constant 0 : i32
    %c0_i32_295 = arith.constant 0 : i32
    %390 = tpu.memref_slice %arg2[%c0_i32_294, %c0_i32_295] : memref<33x128xf32, #tpu.memory_space<any>> -> memref<1x128xf32, #tpu.memory_space<any>>
    %c0_i32_296 = arith.constant 0 : i32
    %c0_i32_297 = arith.constant 0 : i32
    %391 = tpu.memref_slice %arg4[%c15_i32_292, %c0_i32_296, %c0_i32_297] : memref<32x1x128xf32, #tpu.memory_space<vmem>> -> memref<1x1x128xf32, #tpu.memory_space<vmem>>
    %392 = tpu.memref_squeeze %391 : memref<1x1x128xf32, #tpu.memory_space<vmem>> -> memref<1x128xf32, #tpu.memory_space<vmem>>
    %393 = tpu.memref_slice %arg5[%c15_i32_293] : memref<32x!tpu.dma_semaphore, #tpu.memory_space<semaphore_mem>> -> memref<1x!tpu.dma_semaphore, #tpu.memory_space<semaphore_mem>>
    %394 = tpu.memref_squeeze %393 : memref<1x!tpu.dma_semaphore, #tpu.memory_space<semaphore_mem>> -> memref<!tpu.dma_semaphore, #tpu.memory_space<semaphore_mem>>
    tpu.wait_dma2 semaphore(%394 : memref<!tpu.dma_semaphore, #tpu.memory_space<semaphore_mem>>) src(%390 : memref<1x128xf32, #tpu.memory_space<any>>) dst(%392 : memref<1x128xf32, #tpu.memory_space<vmem>>)
    %c15 = arith.constant 15 : index
    %c0_298 = arith.constant 0 : index
    %c0_299 = arith.constant 0 : index
    %395 = vector.load %arg4[%c15, %c0_298, %c0_299] : memref<32x1x128xf32, #tpu.memory_space<vmem>>, vector<1x1x128xf32>
    %396 = vector.shape_cast %395 : vector<1x1x128xf32> to vector<1x128xf32>
    %397 = arith.addf %389, %396 : vector<1x128xf32>
    %cst_300 = arith.constant 2.500000e-01 : f32
    %398 = vector.broadcast %cst_300 : f32 to vector<1x128xf32>
    %399 = arith.mulf %397, %398 : vector<1x128xf32>
    %c3_301 = arith.constant 3 : index
    %c0_302 = arith.constant 0 : index
    %400 = vector.load %arg3[%c3_301, %c0_302] : memref<8x128xf32, #tpu.memory_space<vmem>>, vector<1x128xf32>
    tpu.vector_store %arg3[%c3_301, %c0_302], %399 {strides = array<i32>} : memref<8x128xf32, #tpu.memory_space<vmem>>, vector<1x128xf32>,
    %cst_303 = arith.constant 0.000000e+00 : f32
    %401 = vector.broadcast %cst_303 : f32 to vector<1x128xf32>
    %c16_i32_304 = arith.constant 16 : i32
    %c16_i32_305 = arith.constant 16 : i32
    %c0_i32_306 = arith.constant 0 : i32
    %c0_i32_307 = arith.constant 0 : i32
    %402 = tpu.memref_slice %arg2[%c0_i32_306, %c0_i32_307] : memref<33x128xf32, #tpu.memory_space<any>> -> memref<1x128xf32, #tpu.memory_space<any>>
    %c0_i32_308 = arith.constant 0 : i32
    %c0_i32_309 = arith.constant 0 : i32
    %403 = tpu.memref_slice %arg4[%c16_i32_304, %c0_i32_308, %c0_i32_309] : memref<32x1x128xf32, #tpu.memory_space<vmem>> -> memref<1x1x128xf32, #tpu.memory_space<vmem>>
    %404 = tpu.memref_squeeze %403 : memref<1x1x128xf32, #tpu.memory_space<vmem>> -> memref<1x128xf32, #tpu.memory_space<vmem>>
    %405 = tpu.memref_slice %arg5[%c16_i32_305] : memref<32x!tpu.dma_semaphore, #tpu.memory_space<semaphore_mem>> -> memref<1x!tpu.dma_semaphore, #tpu.memory_space<semaphore_mem>>
    %406 = tpu.memref_squeeze %405 : memref<1x!tpu.dma_semaphore, #tpu.memory_space<semaphore_mem>> -> memref<!tpu.dma_semaphore, #tpu.memory_space<semaphore_mem>>
    tpu.wait_dma2 semaphore(%406 : memref<!tpu.dma_semaphore, #tpu.memory_space<semaphore_mem>>) src(%402 : memref<1x128xf32, #tpu.memory_space<any>>) dst(%404 : memref<1x128xf32, #tpu.memory_space<vmem>>)
    %c16 = arith.constant 16 : index
    %c0_310 = arith.constant 0 : index
    %c0_311 = arith.constant 0 : index
    %407 = vector.load %arg4[%c16, %c0_310, %c0_311] : memref<32x1x128xf32, #tpu.memory_space<vmem>>, vector<1x1x128xf32>
    %408 = vector.shape_cast %407 : vector<1x1x128xf32> to vector<1x128xf32>
    %409 = arith.addf %401, %408 : vector<1x128xf32>
    %c17_i32_312 = arith.constant 17 : i32
    %c17_i32_313 = arith.constant 17 : i32
    %c0_i32_314 = arith.constant 0 : i32
    %c0_i32_315 = arith.constant 0 : i32
    %410 = tpu.memref_slice %arg2[%c0_i32_314, %c0_i32_315] : memref<33x128xf32, #tpu.memory_space<any>> -> memref<1x128xf32, #tpu.memory_space<any>>
    %c0_i32_316 = arith.constant 0 : i32
    %c0_i32_317 = arith.constant 0 : i32
    %411 = tpu.memref_slice %arg4[%c17_i32_312, %c0_i32_316, %c0_i32_317] : memref<32x1x128xf32, #tpu.memory_space<vmem>> -> memref<1x1x128xf32, #tpu.memory_space<vmem>>
    %412 = tpu.memref_squeeze %411 : memref<1x1x128xf32, #tpu.memory_space<vmem>> -> memref<1x128xf32, #tpu.memory_space<vmem>>
    %413 = tpu.memref_slice %arg5[%c17_i32_313] : memref<32x!tpu.dma_semaphore, #tpu.memory_space<semaphore_mem>> -> memref<1x!tpu.dma_semaphore, #tpu.memory_space<semaphore_mem>>
    %414 = tpu.memref_squeeze %413 : memref<1x!tpu.dma_semaphore, #tpu.memory_space<semaphore_mem>> -> memref<!tpu.dma_semaphore, #tpu.memory_space<semaphore_mem>>
    tpu.wait_dma2 semaphore(%414 : memref<!tpu.dma_semaphore, #tpu.memory_space<semaphore_mem>>) src(%410 : memref<1x128xf32, #tpu.memory_space<any>>) dst(%412 : memref<1x128xf32, #tpu.memory_space<vmem>>)
    %c17 = arith.constant 17 : index
    %c0_318 = arith.constant 0 : index
    %c0_319 = arith.constant 0 : index
    %415 = vector.load %arg4[%c17, %c0_318, %c0_319] : memref<32x1x128xf32, #tpu.memory_space<vmem>>, vector<1x1x128xf32>
    %416 = vector.shape_cast %415 : vector<1x1x128xf32> to vector<1x128xf32>
    %417 = arith.addf %409, %416 : vector<1x128xf32>
    %c18_i32_320 = arith.constant 18 : i32
    %c18_i32_321 = arith.constant 18 : i32
    %c0_i32_322 = arith.constant 0 : i32
    %c0_i32_323 = arith.constant 0 : i32
    %418 = tpu.memref_slice %arg2[%c0_i32_322, %c0_i32_323] : memref<33x128xf32, #tpu.memory_space<any>> -> memref<1x128xf32, #tpu.memory_space<any>>
    %c0_i32_324 = arith.constant 0 : i32
    %c0_i32_325 = arith.constant 0 : i32
    %419 = tpu.memref_slice %arg4[%c18_i32_320, %c0_i32_324, %c0_i32_325] : memref<32x1x128xf32, #tpu.memory_space<vmem>> -> memref<1x1x128xf32, #tpu.memory_space<vmem>>
    %420 = tpu.memref_squeeze %419 : memref<1x1x128xf32, #tpu.memory_space<vmem>> -> memref<1x128xf32, #tpu.memory_space<vmem>>
    %421 = tpu.memref_slice %arg5[%c18_i32_321] : memref<32x!tpu.dma_semaphore, #tpu.memory_space<semaphore_mem>> -> memref<1x!tpu.dma_semaphore, #tpu.memory_space<semaphore_mem>>
    %422 = tpu.memref_squeeze %421 : memref<1x!tpu.dma_semaphore, #tpu.memory_space<semaphore_mem>> -> memref<!tpu.dma_semaphore, #tpu.memory_space<semaphore_mem>>
    tpu.wait_dma2 semaphore(%422 : memref<!tpu.dma_semaphore, #tpu.memory_space<semaphore_mem>>) src(%418 : memref<1x128xf32, #tpu.memory_space<any>>) dst(%420 : memref<1x128xf32, #tpu.memory_space<vmem>>)
    %c18 = arith.constant 18 : index
    %c0_326 = arith.constant 0 : index
    %c0_327 = arith.constant 0 : index
    %423 = vector.load %arg4[%c18, %c0_326, %c0_327] : memref<32x1x128xf32, #tpu.memory_space<vmem>>, vector<1x1x128xf32>
    %424 = vector.shape_cast %423 : vector<1x1x128xf32> to vector<1x128xf32>
    %425 = arith.addf %417, %424 : vector<1x128xf32>
    %c19_i32_328 = arith.constant 19 : i32
    %c19_i32_329 = arith.constant 19 : i32
    %c0_i32_330 = arith.constant 0 : i32
    %c0_i32_331 = arith.constant 0 : i32
    %426 = tpu.memref_slice %arg2[%c0_i32_330, %c0_i32_331] : memref<33x128xf32, #tpu.memory_space<any>> -> memref<1x128xf32, #tpu.memory_space<any>>
    %c0_i32_332 = arith.constant 0 : i32
    %c0_i32_333 = arith.constant 0 : i32
    %427 = tpu.memref_slice %arg4[%c19_i32_328, %c0_i32_332, %c0_i32_333] : memref<32x1x128xf32, #tpu.memory_space<vmem>> -> memref<1x1x128xf32, #tpu.memory_space<vmem>>
    %428 = tpu.memref_squeeze %427 : memref<1x1x128xf32, #tpu.memory_space<vmem>> -> memref<1x128xf32, #tpu.memory_space<vmem>>
    %429 = tpu.memref_slice %arg5[%c19_i32_329] : memref<32x!tpu.dma_semaphore, #tpu.memory_space<semaphore_mem>> -> memref<1x!tpu.dma_semaphore, #tpu.memory_space<semaphore_mem>>
    %430 = tpu.memref_squeeze %429 : memref<1x!tpu.dma_semaphore, #tpu.memory_space<semaphore_mem>> -> memref<!tpu.dma_semaphore, #tpu.memory_space<semaphore_mem>>
    tpu.wait_dma2 semaphore(%430 : memref<!tpu.dma_semaphore, #tpu.memory_space<semaphore_mem>>) src(%426 : memref<1x128xf32, #tpu.memory_space<any>>) dst(%428 : memref<1x128xf32, #tpu.memory_space<vmem>>)
    %c19 = arith.constant 19 : index
    %c0_334 = arith.constant 0 : index
    %c0_335 = arith.constant 0 : index
    %431 = vector.load %arg4[%c19, %c0_334, %c0_335] : memref<32x1x128xf32, #tpu.memory_space<vmem>>, vector<1x1x128xf32>
    %432 = vector.shape_cast %431 : vector<1x1x128xf32> to vector<1x128xf32>
    %433 = arith.addf %425, %432 : vector<1x128xf32>
    %cst_336 = arith.constant 2.500000e-01 : f32
    %434 = vector.broadcast %cst_336 : f32 to vector<1x128xf32>
    %435 = arith.mulf %433, %434 : vector<1x128xf32>
    %c4_337 = arith.constant 4 : index
    %c0_338 = arith.constant 0 : index
    %436 = vector.load %arg3[%c4_337, %c0_338] : memref<8x128xf32, #tpu.memory_space<vmem>>, vector<1x128xf32>
    tpu.vector_store %arg3[%c4_337, %c0_338], %435 {strides = array<i32>} : memref<8x128xf32, #tpu.memory_space<vmem>>, vector<1x128xf32>,
    %cst_339 = arith.constant 0.000000e+00 : f32
    %437 = vector.broadcast %cst_339 : f32 to vector<1x128xf32>
    %c20_i32_340 = arith.constant 20 : i32
    %c20_i32_341 = arith.constant 20 : i32
    %c0_i32_342 = arith.constant 0 : i32
    %c0_i32_343 = arith.constant 0 : i32
    %438 = tpu.memref_slice %arg2[%c0_i32_342, %c0_i32_343] : memref<33x128xf32, #tpu.memory_space<any>> -> memref<1x128xf32, #tpu.memory_space<any>>
    %c0_i32_344 = arith.constant 0 : i32
    %c0_i32_345 = arith.constant 0 : i32
    %439 = tpu.memref_slice %arg4[%c20_i32_340, %c0_i32_344, %c0_i32_345] : memref<32x1x128xf32, #tpu.memory_space<vmem>> -> memref<1x1x128xf32, #tpu.memory_space<vmem>>
    %440 = tpu.memref_squeeze %439 : memref<1x1x128xf32, #tpu.memory_space<vmem>> -> memref<1x128xf32, #tpu.memory_space<vmem>>
    %441 = tpu.memref_slice %arg5[%c20_i32_341] : memref<32x!tpu.dma_semaphore, #tpu.memory_space<semaphore_mem>> -> memref<1x!tpu.dma_semaphore, #tpu.memory_space<semaphore_mem>>
    %442 = tpu.memref_squeeze %441 : memref<1x!tpu.dma_semaphore, #tpu.memory_space<semaphore_mem>> -> memref<!tpu.dma_semaphore, #tpu.memory_space<semaphore_mem>>
    tpu.wait_dma2 semaphore(%442 : memref<!tpu.dma_semaphore, #tpu.memory_space<semaphore_mem>>) src(%438 : memref<1x128xf32, #tpu.memory_space<any>>) dst(%440 : memref<1x128xf32, #tpu.memory_space<vmem>>)
    %c20 = arith.constant 20 : index
    %c0_346 = arith.constant 0 : index
    %c0_347 = arith.constant 0 : index
    %443 = vector.load %arg4[%c20, %c0_346, %c0_347] : memref<32x1x128xf32, #tpu.memory_space<vmem>>, vector<1x1x128xf32>
    %444 = vector.shape_cast %443 : vector<1x1x128xf32> to vector<1x128xf32>
    %445 = arith.addf %437, %444 : vector<1x128xf32>
    %c21_i32_348 = arith.constant 21 : i32
    %c21_i32_349 = arith.constant 21 : i32
    %c0_i32_350 = arith.constant 0 : i32
    %c0_i32_351 = arith.constant 0 : i32
    %446 = tpu.memref_slice %arg2[%c0_i32_350, %c0_i32_351] : memref<33x128xf32, #tpu.memory_space<any>> -> memref<1x128xf32, #tpu.memory_space<any>>
    %c0_i32_352 = arith.constant 0 : i32
    %c0_i32_353 = arith.constant 0 : i32
    %447 = tpu.memref_slice %arg4[%c21_i32_348, %c0_i32_352, %c0_i32_353] : memref<32x1x128xf32, #tpu.memory_space<vmem>> -> memref<1x1x128xf32, #tpu.memory_space<vmem>>
    %448 = tpu.memref_squeeze %447 : memref<1x1x128xf32, #tpu.memory_space<vmem>> -> memref<1x128xf32, #tpu.memory_space<vmem>>
    %449 = tpu.memref_slice %arg5[%c21_i32_349] : memref<32x!tpu.dma_semaphore, #tpu.memory_space<semaphore_mem>> -> memref<1x!tpu.dma_semaphore, #tpu.memory_space<semaphore_mem>>
    %450 = tpu.memref_squeeze %449 : memref<1x!tpu.dma_semaphore, #tpu.memory_space<semaphore_mem>> -> memref<!tpu.dma_semaphore, #tpu.memory_space<semaphore_mem>>
    tpu.wait_dma2 semaphore(%450 : memref<!tpu.dma_semaphore, #tpu.memory_space<semaphore_mem>>) src(%446 : memref<1x128xf32, #tpu.memory_space<any>>) dst(%448 : memref<1x128xf32, #tpu.memory_space<vmem>>)
    %c21 = arith.constant 21 : index
    %c0_354 = arith.constant 0 : index
    %c0_355 = arith.constant 0 : index
    %451 = vector.load %arg4[%c21, %c0_354, %c0_355] : memref<32x1x128xf32, #tpu.memory_space<vmem>>, vector<1x1x128xf32>
    %452 = vector.shape_cast %451 : vector<1x1x128xf32> to vector<1x128xf32>
    %453 = arith.addf %445, %452 : vector<1x128xf32>
    %c22_i32_356 = arith.constant 22 : i32
    %c22_i32_357 = arith.constant 22 : i32
    %c0_i32_358 = arith.constant 0 : i32
    %c0_i32_359 = arith.constant 0 : i32
    %454 = tpu.memref_slice %arg2[%c0_i32_358, %c0_i32_359] : memref<33x128xf32, #tpu.memory_space<any>> -> memref<1x128xf32, #tpu.memory_space<any>>
    %c0_i32_360 = arith.constant 0 : i32
    %c0_i32_361 = arith.constant 0 : i32
    %455 = tpu.memref_slice %arg4[%c22_i32_356, %c0_i32_360, %c0_i32_361] : memref<32x1x128xf32, #tpu.memory_space<vmem>> -> memref<1x1x128xf32, #tpu.memory_space<vmem>>
    %456 = tpu.memref_squeeze %455 : memref<1x1x128xf32, #tpu.memory_space<vmem>> -> memref<1x128xf32, #tpu.memory_space<vmem>>
    %457 = tpu.memref_slice %arg5[%c22_i32_357] : memref<32x!tpu.dma_semaphore, #tpu.memory_space<semaphore_mem>> -> memref<1x!tpu.dma_semaphore, #tpu.memory_space<semaphore_mem>>
    %458 = tpu.memref_squeeze %457 : memref<1x!tpu.dma_semaphore, #tpu.memory_space<semaphore_mem>> -> memref<!tpu.dma_semaphore, #tpu.memory_space<semaphore_mem>>
    tpu.wait_dma2 semaphore(%458 : memref<!tpu.dma_semaphore, #tpu.memory_space<semaphore_mem>>) src(%454 : memref<1x128xf32, #tpu.memory_space<any>>) dst(%456 : memref<1x128xf32, #tpu.memory_space<vmem>>)
    %c22 = arith.constant 22 : index
    %c0_362 = arith.constant 0 : index
    %c0_363 = arith.constant 0 : index
    %459 = vector.load %arg4[%c22, %c0_362, %c0_363] : memref<32x1x128xf32, #tpu.memory_space<vmem>>, vector<1x1x128xf32>
    %460 = vector.shape_cast %459 : vector<1x1x128xf32> to vector<1x128xf32>
    %461 = arith.addf %453, %460 : vector<1x128xf32>
    %c23_i32_364 = arith.constant 23 : i32
    %c23_i32_365 = arith.constant 23 : i32
    %c0_i32_366 = arith.constant 0 : i32
    %c0_i32_367 = arith.constant 0 : i32
    %462 = tpu.memref_slice %arg2[%c0_i32_366, %c0_i32_367] : memref<33x128xf32, #tpu.memory_space<any>> -> memref<1x128xf32, #tpu.memory_space<any>>
    %c0_i32_368 = arith.constant 0 : i32
    %c0_i32_369 = arith.constant 0 : i32
    %463 = tpu.memref_slice %arg4[%c23_i32_364, %c0_i32_368, %c0_i32_369] : memref<32x1x128xf32, #tpu.memory_space<vmem>> -> memref<1x1x128xf32, #tpu.memory_space<vmem>>
    %464 = tpu.memref_squeeze %463 : memref<1x1x128xf32, #tpu.memory_space<vmem>> -> memref<1x128xf32, #tpu.memory_space<vmem>>
    %465 = tpu.memref_slice %arg5[%c23_i32_365] : memref<32x!tpu.dma_semaphore, #tpu.memory_space<semaphore_mem>> -> memref<1x!tpu.dma_semaphore, #tpu.memory_space<semaphore_mem>>
    %466 = tpu.memref_squeeze %465 : memref<1x!tpu.dma_semaphore, #tpu.memory_space<semaphore_mem>> -> memref<!tpu.dma_semaphore, #tpu.memory_space<semaphore_mem>>
    tpu.wait_dma2 semaphore(%466 : memref<!tpu.dma_semaphore, #tpu.memory_space<semaphore_mem>>) src(%462 : memref<1x128xf32, #tpu.memory_space<any>>) dst(%464 : memref<1x128xf32, #tpu.memory_space<vmem>>)
    %c23 = arith.constant 23 : index
    %c0_370 = arith.constant 0 : index
    %c0_371 = arith.constant 0 : index
    %467 = vector.load %arg4[%c23, %c0_370, %c0_371] : memref<32x1x128xf32, #tpu.memory_space<vmem>>, vector<1x1x128xf32>
    %468 = vector.shape_cast %467 : vector<1x1x128xf32> to vector<1x128xf32>
    %469 = arith.addf %461, %468 : vector<1x128xf32>
    %cst_372 = arith.constant 2.500000e-01 : f32
    %470 = vector.broadcast %cst_372 : f32 to vector<1x128xf32>
    %471 = arith.mulf %469, %470 : vector<1x128xf32>
    %c5_373 = arith.constant 5 : index
    %c0_374 = arith.constant 0 : index
    %472 = vector.load %arg3[%c5_373, %c0_374] : memref<8x128xf32, #tpu.memory_space<vmem>>, vector<1x128xf32>
    tpu.vector_store %arg3[%c5_373, %c0_374], %471 {strides = array<i32>} : memref<8x128xf32, #tpu.memory_space<vmem>>, vector<1x128xf32>,
    %cst_375 = arith.constant 0.000000e+00 : f32
    %473 = vector.broadcast %cst_375 : f32 to vector<1x128xf32>
    %c24_i32_376 = arith.constant 24 : i32
    %c24_i32_377 = arith.constant 24 : i32
    %c0_i32_378 = arith.constant 0 : i32
    %c0_i32_379 = arith.constant 0 : i32
    %474 = tpu.memref_slice %arg2[%c0_i32_378, %c0_i32_379] : memref<33x128xf32, #tpu.memory_space<any>> -> memref<1x128xf32, #tpu.memory_space<any>>
    %c0_i32_380 = arith.constant 0 : i32
    %c0_i32_381 = arith.constant 0 : i32
    %475 = tpu.memref_slice %arg4[%c24_i32_376, %c0_i32_380, %c0_i32_381] : memref<32x1x128xf32, #tpu.memory_space<vmem>> -> memref<1x1x128xf32, #tpu.memory_space<vmem>>
    %476 = tpu.memref_squeeze %475 : memref<1x1x128xf32, #tpu.memory_space<vmem>> -> memref<1x128xf32, #tpu.memory_space<vmem>>
    %477 = tpu.memref_slice %arg5[%c24_i32_377] : memref<32x!tpu.dma_semaphore, #tpu.memory_space<semaphore_mem>> -> memref<1x!tpu.dma_semaphore, #tpu.memory_space<semaphore_mem>>
    %478 = tpu.memref_squeeze %477 : memref<1x!tpu.dma_semaphore, #tpu.memory_space<semaphore_mem>> -> memref<!tpu.dma_semaphore, #tpu.memory_space<semaphore_mem>>
    tpu.wait_dma2 semaphore(%478 : memref<!tpu.dma_semaphore, #tpu.memory_space<semaphore_mem>>) src(%474 : memref<1x128xf32, #tpu.memory_space<any>>) dst(%476 : memref<1x128xf32, #tpu.memory_space<vmem>>)
    %c24 = arith.constant 24 : index
    %c0_382 = arith.constant 0 : index
    %c0_383 = arith.constant 0 : index
    %479 = vector.load %arg4[%c24, %c0_382, %c0_383] : memref<32x1x128xf32, #tpu.memory_space<vmem>>, vector<1x1x128xf32>
    %480 = vector.shape_cast %479 : vector<1x1x128xf32> to vector<1x128xf32>
    %481 = arith.addf %473, %480 : vector<1x128xf32>
    %c25_i32_384 = arith.constant 25 : i32
    %c25_i32_385 = arith.constant 25 : i32
    %c0_i32_386 = arith.constant 0 : i32
    %c0_i32_387 = arith.constant 0 : i32
    %482 = tpu.memref_slice %arg2[%c0_i32_386, %c0_i32_387] : memref<33x128xf32, #tpu.memory_space<any>> -> memref<1x128xf32, #tpu.memory_space<any>>
    %c0_i32_388 = arith.constant 0 : i32
    %c0_i32_389 = arith.constant 0 : i32
    %483 = tpu.memref_slice %arg4[%c25_i32_384, %c0_i32_388, %c0_i32_389] : memref<32x1x128xf32, #tpu.memory_space<vmem>> -> memref<1x1x128xf32, #tpu.memory_space<vmem>>
    %484 = tpu.memref_squeeze %483 : memref<1x1x128xf32, #tpu.memory_space<vmem>> -> memref<1x128xf32, #tpu.memory_space<vmem>>
    %485 = tpu.memref_slice %arg5[%c25_i32_385] : memref<32x!tpu.dma_semaphore, #tpu.memory_space<semaphore_mem>> -> memref<1x!tpu.dma_semaphore, #tpu.memory_space<semaphore_mem>>
    %486 = tpu.memref_squeeze %485 : memref<1x!tpu.dma_semaphore, #tpu.memory_space<semaphore_mem>> -> memref<!tpu.dma_semaphore, #tpu.memory_space<semaphore_mem>>
    tpu.wait_dma2 semaphore(%486 : memref<!tpu.dma_semaphore, #tpu.memory_space<semaphore_mem>>) src(%482 : memref<1x128xf32, #tpu.memory_space<any>>) dst(%484 : memref<1x128xf32, #tpu.memory_space<vmem>>)
    %c25 = arith.constant 25 : index
    %c0_390 = arith.constant 0 : index
    %c0_391 = arith.constant 0 : index
    %487 = vector.load %arg4[%c25, %c0_390, %c0_391] : memref<32x1x128xf32, #tpu.memory_space<vmem>>, vector<1x1x128xf32>
    %488 = vector.shape_cast %487 : vector<1x1x128xf32> to vector<1x128xf32>
    %489 = arith.addf %481, %488 : vector<1x128xf32>
    %c26_i32_392 = arith.constant 26 : i32
    %c26_i32_393 = arith.constant 26 : i32
    %c0_i32_394 = arith.constant 0 : i32
    %c0_i32_395 = arith.constant 0 : i32
    %490 = tpu.memref_slice %arg2[%c0_i32_394, %c0_i32_395] : memref<33x128xf32, #tpu.memory_space<any>> -> memref<1x128xf32, #tpu.memory_space<any>>
    %c0_i32_396 = arith.constant 0 : i32
    %c0_i32_397 = arith.constant 0 : i32
    %491 = tpu.memref_slice %arg4[%c26_i32_392, %c0_i32_396, %c0_i32_397] : memref<32x1x128xf32, #tpu.memory_space<vmem>> -> memref<1x1x128xf32, #tpu.memory_space<vmem>>
    %492 = tpu.memref_squeeze %491 : memref<1x1x128xf32, #tpu.memory_space<vmem>> -> memref<1x128xf32, #tpu.memory_space<vmem>>
    %493 = tpu.memref_slice %arg5[%c26_i32_393] : memref<32x!tpu.dma_semaphore, #tpu.memory_space<semaphore_mem>> -> memref<1x!tpu.dma_semaphore, #tpu.memory_space<semaphore_mem>>
    %494 = tpu.memref_squeeze %493 : memref<1x!tpu.dma_semaphore, #tpu.memory_space<semaphore_mem>> -> memref<!tpu.dma_semaphore, #tpu.memory_space<semaphore_mem>>
    tpu.wait_dma2 semaphore(%494 : memref<!tpu.dma_semaphore, #tpu.memory_space<semaphore_mem>>) src(%490 : memref<1x128xf32, #tpu.memory_space<any>>) dst(%492 : memref<1x128xf32, #tpu.memory_space<vmem>>)
    %c26 = arith.constant 26 : index
    %c0_398 = arith.constant 0 : index
    %c0_399 = arith.constant 0 : index
    %495 = vector.load %arg4[%c26, %c0_398, %c0_399] : memref<32x1x128xf32, #tpu.memory_space<vmem>>, vector<1x1x128xf32>
    %496 = vector.shape_cast %495 : vector<1x1x128xf32> to vector<1x128xf32>
    %497 = arith.addf %489, %496 : vector<1x128xf32>
    %c27_i32_400 = arith.constant 27 : i32
    %c27_i32_401 = arith.constant 27 : i32
    %c0_i32_402 = arith.constant 0 : i32
    %c0_i32_403 = arith.constant 0 : i32
    %498 = tpu.memref_slice %arg2[%c0_i32_402, %c0_i32_403] : memref<33x128xf32, #tpu.memory_space<any>> -> memref<1x128xf32, #tpu.memory_space<any>>
    %c0_i32_404 = arith.constant 0 : i32
    %c0_i32_405 = arith.constant 0 : i32
    %499 = tpu.memref_slice %arg4[%c27_i32_400, %c0_i32_404, %c0_i32_405] : memref<32x1x128xf32, #tpu.memory_space<vmem>> -> memref<1x1x128xf32, #tpu.memory_space<vmem>>
    %500 = tpu.memref_squeeze %499 : memref<1x1x128xf32, #tpu.memory_space<vmem>> -> memref<1x128xf32, #tpu.memory_space<vmem>>
    %501 = tpu.memref_slice %arg5[%c27_i32_401] : memref<32x!tpu.dma_semaphore, #tpu.memory_space<semaphore_mem>> -> memref<1x!tpu.dma_semaphore, #tpu.memory_space<semaphore_mem>>
    %502 = tpu.memref_squeeze %501 : memref<1x!tpu.dma_semaphore, #tpu.memory_space<semaphore_mem>> -> memref<!tpu.dma_semaphore, #tpu.memory_space<semaphore_mem>>
    tpu.wait_dma2 semaphore(%502 : memref<!tpu.dma_semaphore, #tpu.memory_space<semaphore_mem>>) src(%498 : memref<1x128xf32, #tpu.memory_space<any>>) dst(%500 : memref<1x128xf32, #tpu.memory_space<vmem>>)
    %c27 = arith.constant 27 : index
    %c0_406 = arith.constant 0 : index
    %c0_407 = arith.constant 0 : index
    %503 = vector.load %arg4[%c27, %c0_406, %c0_407] : memref<32x1x128xf32, #tpu.memory_space<vmem>>, vector<1x1x128xf32>
    %504 = vector.shape_cast %503 : vector<1x1x128xf32> to vector<1x128xf32>
    %505 = arith.addf %497, %504 : vector<1x128xf32>
    %cst_408 = arith.constant 2.500000e-01 : f32
    %506 = vector.broadcast %cst_408 : f32 to vector<1x128xf32>
    %507 = arith.mulf %505, %506 : vector<1x128xf32>
    %c6_409 = arith.constant 6 : index
    %c0_410 = arith.constant 0 : index
    %508 = vector.load %arg3[%c6_409, %c0_410] : memref<8x128xf32, #tpu.memory_space<vmem>>, vector<1x128xf32>
    tpu.vector_store %arg3[%c6_409, %c0_410], %507 {strides = array<i32>} : memref<8x128xf32, #tpu.memory_space<vmem>>, vector<1x128xf32>,
    %cst_411 = arith.constant 0.000000e+00 : f32
    %509 = vector.broadcast %cst_411 : f32 to vector<1x128xf32>
    %c28_i32_412 = arith.constant 28 : i32
    %c28_i32_413 = arith.constant 28 : i32
    %c0_i32_414 = arith.constant 0 : i32
    %c0_i32_415 = arith.constant 0 : i32
    %510 = tpu.memref_slice %arg2[%c0_i32_414, %c0_i32_415] : memref<33x128xf32, #tpu.memory_space<any>> -> memref<1x128xf32, #tpu.memory_space<any>>
    %c0_i32_416 = arith.constant 0 : i32
    %c0_i32_417 = arith.constant 0 : i32
    %511 = tpu.memref_slice %arg4[%c28_i32_412, %c0_i32_416, %c0_i32_417] : memref<32x1x128xf32, #tpu.memory_space<vmem>> -> memref<1x1x128xf32, #tpu.memory_space<vmem>>
    %512 = tpu.memref_squeeze %511 : memref<1x1x128xf32, #tpu.memory_space<vmem>> -> memref<1x128xf32, #tpu.memory_space<vmem>>
    %513 = tpu.memref_slice %arg5[%c28_i32_413] : memref<32x!tpu.dma_semaphore, #tpu.memory_space<semaphore_mem>> -> memref<1x!tpu.dma_semaphore, #tpu.memory_space<semaphore_mem>>
    %514 = tpu.memref_squeeze %513 : memref<1x!tpu.dma_semaphore, #tpu.memory_space<semaphore_mem>> -> memref<!tpu.dma_semaphore, #tpu.memory_space<semaphore_mem>>
    tpu.wait_dma2 semaphore(%514 : memref<!tpu.dma_semaphore, #tpu.memory_space<semaphore_mem>>) src(%510 : memref<1x128xf32, #tpu.memory_space<any>>) dst(%512 : memref<1x128xf32, #tpu.memory_space<vmem>>)
    %c28 = arith.constant 28 : index
    %c0_418 = arith.constant 0 : index
    %c0_419 = arith.constant 0 : index
    %515 = vector.load %arg4[%c28, %c0_418, %c0_419] : memref<32x1x128xf32, #tpu.memory_space<vmem>>, vector<1x1x128xf32>
    %516 = vector.shape_cast %515 : vector<1x1x128xf32> to vector<1x128xf32>
    %517 = arith.addf %509, %516 : vector<1x128xf32>
    %c29_i32_420 = arith.constant 29 : i32
    %c29_i32_421 = arith.constant 29 : i32
    %c0_i32_422 = arith.constant 0 : i32
    %c0_i32_423 = arith.constant 0 : i32
    %518 = tpu.memref_slice %arg2[%c0_i32_422, %c0_i32_423] : memref<33x128xf32, #tpu.memory_space<any>> -> memref<1x128xf32, #tpu.memory_space<any>>
    %c0_i32_424 = arith.constant 0 : i32
    %c0_i32_425 = arith.constant 0 : i32
    %519 = tpu.memref_slice %arg4[%c29_i32_420, %c0_i32_424, %c0_i32_425] : memref<32x1x128xf32, #tpu.memory_space<vmem>> -> memref<1x1x128xf32, #tpu.memory_space<vmem>>
    %520 = tpu.memref_squeeze %519 : memref<1x1x128xf32, #tpu.memory_space<vmem>> -> memref<1x128xf32, #tpu.memory_space<vmem>>
    %521 = tpu.memref_slice %arg5[%c29_i32_421] : memref<32x!tpu.dma_semaphore, #tpu.memory_space<semaphore_mem>> -> memref<1x!tpu.dma_semaphore, #tpu.memory_space<semaphore_mem>>
    %522 = tpu.memref_squeeze %521 : memref<1x!tpu.dma_semaphore, #tpu.memory_space<semaphore_mem>> -> memref<!tpu.dma_semaphore, #tpu.memory_space<semaphore_mem>>
    tpu.wait_dma2 semaphore(%522 : memref<!tpu.dma_semaphore, #tpu.memory_space<semaphore_mem>>) src(%518 : memref<1x128xf32, #tpu.memory_space<any>>) dst(%520 : memref<1x128xf32, #tpu.memory_space<vmem>>)
    %c29 = arith.constant 29 : index
    %c0_426 = arith.constant 0 : index
    %c0_427 = arith.constant 0 : index
    %523 = vector.load %arg4[%c29, %c0_426, %c0_427] : memref<32x1x128xf32, #tpu.memory_space<vmem>>, vector<1x1x128xf32>
    %524 = vector.shape_cast %523 : vector<1x1x128xf32> to vector<1x128xf32>
    %525 = arith.addf %517, %524 : vector<1x128xf32>
    %c30_i32_428 = arith.constant 30 : i32
    %c30_i32_429 = arith.constant 30 : i32
    %c0_i32_430 = arith.constant 0 : i32
    %c0_i32_431 = arith.constant 0 : i32
    %526 = tpu.memref_slice %arg2[%c0_i32_430, %c0_i32_431] : memref<33x128xf32, #tpu.memory_space<any>> -> memref<1x128xf32, #tpu.memory_space<any>>
    %c0_i32_432 = arith.constant 0 : i32
    %c0_i32_433 = arith.constant 0 : i32
    %527 = tpu.memref_slice %arg4[%c30_i32_428, %c0_i32_432, %c0_i32_433] : memref<32x1x128xf32, #tpu.memory_space<vmem>> -> memref<1x1x128xf32, #tpu.memory_space<vmem>>
    %528 = tpu.memref_squeeze %527 : memref<1x1x128xf32, #tpu.memory_space<vmem>> -> memref<1x128xf32, #tpu.memory_space<vmem>>
    %529 = tpu.memref_slice %arg5[%c30_i32_429] : memref<32x!tpu.dma_semaphore, #tpu.memory_space<semaphore_mem>> -> memref<1x!tpu.dma_semaphore, #tpu.memory_space<semaphore_mem>>
    %530 = tpu.memref_squeeze %529 : memref<1x!tpu.dma_semaphore, #tpu.memory_space<semaphore_mem>> -> memref<!tpu.dma_semaphore, #tpu.memory_space<semaphore_mem>>
    tpu.wait_dma2 semaphore(%530 : memref<!tpu.dma_semaphore, #tpu.memory_space<semaphore_mem>>) src(%526 : memref<1x128xf32, #tpu.memory_space<any>>) dst(%528 : memref<1x128xf32, #tpu.memory_space<vmem>>)
    %c30 = arith.constant 30 : index
    %c0_434 = arith.constant 0 : index
    %c0_435 = arith.constant 0 : index
    %531 = vector.load %arg4[%c30, %c0_434, %c0_435] : memref<32x1x128xf32, #tpu.memory_space<vmem>>, vector<1x1x128xf32>
    %532 = vector.shape_cast %531 : vector<1x1x128xf32> to vector<1x128xf32>
    %533 = arith.addf %525, %532 : vector<1x128xf32>
    %c31_i32_436 = arith.constant 31 : i32
    %c31_i32_437 = arith.constant 31 : i32
    %c0_i32_438 = arith.constant 0 : i32
    %c0_i32_439 = arith.constant 0 : i32
    %534 = tpu.memref_slice %arg2[%c0_i32_438, %c0_i32_439] : memref<33x128xf32, #tpu.memory_space<any>> -> memref<1x128xf32, #tpu.memory_space<any>>
    %c0_i32_440 = arith.constant 0 : i32
    %c0_i32_441 = arith.constant 0 : i32
    %535 = tpu.memref_slice %arg4[%c31_i32_436, %c0_i32_440, %c0_i32_441] : memref<32x1x128xf32, #tpu.memory_space<vmem>> -> memref<1x1x128xf32, #tpu.memory_space<vmem>>
    %536 = tpu.memref_squeeze %535 : memref<1x1x128xf32, #tpu.memory_space<vmem>> -> memref<1x128xf32, #tpu.memory_space<vmem>>
    %537 = tpu.memref_slice %arg5[%c31_i32_437] : memref<32x!tpu.dma_semaphore, #tpu.memory_space<semaphore_mem>> -> memref<1x!tpu.dma_semaphore, #tpu.memory_space<semaphore_mem>>
    %538 = tpu.memref_squeeze %537 : memref<1x!tpu.dma_semaphore, #tpu.memory_space<semaphore_mem>> -> memref<!tpu.dma_semaphore, #tpu.memory_space<semaphore_mem>>
    tpu.wait_dma2 semaphore(%538 : memref<!tpu.dma_semaphore, #tpu.memory_space<semaphore_mem>>) src(%534 : memref<1x128xf32, #tpu.memory_space<any>>) dst(%536 : memref<1x128xf32, #tpu.memory_space<vmem>>)
    %c31 = arith.constant 31 : index
    %c0_442 = arith.constant 0 : index
    %c0_443 = arith.constant 0 : index
    %539 = vector.load %arg4[%c31, %c0_442, %c0_443] : memref<32x1x128xf32, #tpu.memory_space<vmem>>, vector<1x1x128xf32>
    %540 = vector.shape_cast %539 : vector<1x1x128xf32> to vector<1x128xf32>
    %541 = arith.addf %533, %540 : vector<1x128xf32>
    %cst_444 = arith.constant 2.500000e-01 : f32
    %542 = vector.broadcast %cst_444 : f32 to vector<1x128xf32>
    %543 = arith.mulf %541, %542 : vector<1x128xf32>
    %c7_445 = arith.constant 7 : index
    %c0_446 = arith.constant 0 : index
    %544 = vector.load %arg3[%c7_445, %c0_446] : memref<8x128xf32, #tpu.memory_space<vmem>>, vector<1x128xf32>
    tpu.vector_store %arg3[%c7_445, %c0_446], %543 {strides = array<i32>} : memref<8x128xf32, #tpu.memory_space<vmem>>, vector<1x128xf32>,
    return
  }
  func.func @transform_1(%arg0: i32, %arg1: memref<64xi32, #tpu.memory_space<smem>>) -> (i32, i32) {
    %c0_i32 = arith.constant 0 : i32
    %c0_i32_0 = arith.constant 0 : i32
    return %arg0, %c0_i32 : i32, i32
  }
}

</mosaic_0001>

<llo_original>
// kernel: tpu_custom_call.1
$region0: #{tpu_custom_call.1}
  #allocation0 [shape = 'u32[]', space=smem, size = 0x4, offset = 0x4, fixed_abs, tag = 'smem constant byte address 0x4 - core index']
  #allocation1 [shape = 'u32[72,128]{1,0:T(1,128)}', space=vmem, size = 0x9000, scoped, tag = 'internal scratch']
  #allocation2 [shape = 'f32[32,1,128]{2,1,0:T(1,128)}', space=vmem, size = 0x4000, scoped, tag = 'scratch operand']
  #allocation3 [shape = 's32[32]{0}', space=sflag, size = 0x80, scoped, tag = 'scratch operand']
  #allocation4 [shape = 's32[1]{0}', space=sflag, size = 0x4, scoped, tag = 'scoped memory for tpu_custom_call.1']
  #allocation5 [shape = 'u8[512]{0}', space=smem, size = 0x200, scoped, tag = 'prefetched SMEM operand 0']
  #allocation8 [shape = 's32[]', space=sflag, size = 0x4, offset = 0, fixed_abs, tag = 'sflag constant byte address 0x0 - dummy sync flag']
  #allocation9 [shape = 's32[]', space=sflag, size = 0x4, offset = 0, fixed_abs, tag = 'sflag constant byte address 0x0 - dummy sync flag']
  #allocation10 [shape = 'u32[]', space=smem, size = 0x4, offset = 0x44, fixed_abs, tag = 'smem constant byte address 0x44 - assertion arg 0']
  #allocation11 [shape = 'u32[]', space=smem, size = 0x4, offset = 0x48, fixed_abs, tag = 'smem constant byte address 0x48 - assertion arg 1']
  #allocation12 [shape = 's32[]', space=sflag, size = 0x4, offset = 0, fixed_abs, tag = 'sflag constant byte address 0x0 - dummy sync flag']
  #allocation13 [shape = 's32[]', space=sflag, size = 0x4, offset = 0, fixed_abs, tag = 'sflag constant byte address 0x0 - dummy sync flag']
  #allocation14 [shape = 's32[]', space=sflag, size = 0x4, offset = 0, fixed_abs, tag = 'sflag constant byte address 0x0 - dummy sync flag']
  #allocation15 [shape = 's32[]', space=sflag, size = 0x4, offset = 0, fixed_abs, tag = 'sflag constant byte address 0x0 - dummy sync flag']
  #allocation16 [shape = 's32[]', space=sflag, size = 0x4, offset = 0, fixed_abs, tag = 'sflag constant byte address 0x0 - dummy sync flag']
  #allocation17 [shape = 's32[]', space=sflag, size = 0x4, offset = 0, fixed_abs, tag = 'sflag constant byte address 0x0 - dummy sync flag']
  #allocation18 [shape = 's32[]', space=sflag, size = 0x4, offset = 0, fixed_abs, tag = 'sflag constant byte address 0x0 - dummy sync flag']
  #allocation19 [shape = 's32[]', space=sflag, size = 0x4, offset = 0, fixed_abs, tag = 'sflag constant byte address 0x0 - dummy sync flag']
  #allocation20 [shape = 's32[]', space=sflag, size = 0x4, offset = 0, fixed_abs, tag = 'sflag constant byte address 0x0 - dummy sync flag']
  #allocation21 [shape = 's32[]', space=sflag, size = 0x4, offset = 0, fixed_abs, tag = 'sflag constant byte address 0x0 - dummy sync flag']
  #allocation22 [shape = 's32[]', space=sflag, size = 0x4, offset = 0, fixed_abs, tag = 'sflag constant byte address 0x0 - dummy sync flag']
  #allocation23 [shape = 's32[]', space=sflag, size = 0x4, offset = 0, fixed_abs, tag = 'sflag constant byte address 0x0 - dummy sync flag']
  #allocation24 [shape = 's32[]', space=sflag, size = 0x4, offset = 0, fixed_abs, tag = 'sflag constant byte address 0x0 - dummy sync flag']
  #allocation25 [shape = 's32[]', space=sflag, size = 0x4, offset = 0, fixed_abs, tag = 'sflag constant byte address 0x0 - dummy sync flag']
  #allocation26 [shape = 's32[]', space=sflag, size = 0x4, offset = 0, fixed_abs, tag = 'sflag constant byte address 0x0 - dummy sync flag']
  #allocation27 [shape = 's32[]', space=sflag, size = 0x4, offset = 0, fixed_abs, tag = 'sflag constant byte address 0x0 - dummy sync flag']
  #allocation28 [shape = 's32[]', space=sflag, size = 0x4, offset = 0, fixed_abs, tag = 'sflag constant byte address 0x0 - dummy sync flag']
  #allocation29 [shape = 's32[]', space=sflag, size = 0x4, offset = 0, fixed_abs, tag = 'sflag constant byte address 0x0 - dummy sync flag']
  #allocation30 [shape = 's32[]', space=sflag, size = 0x4, offset = 0, fixed_abs, tag = 'sflag constant byte address 0x0 - dummy sync flag']
  #allocation31 [shape = 's32[]', space=sflag, size = 0x4, offset = 0, fixed_abs, tag = 'sflag constant byte address 0x0 - dummy sync flag']
  #allocation32 [shape = 's32[]', space=sflag, size = 0x4, offset = 0, fixed_abs, tag = 'sflag constant byte address 0x0 - dummy sync flag']
  #allocation33 [shape = 's32[]', space=sflag, size = 0x4, offset = 0, fixed_abs, tag = 'sflag constant byte address 0x0 - dummy sync flag']
  #allocation34 [shape = 's32[]', space=sflag, size = 0x4, offset = 0, fixed_abs, tag = 'sflag constant byte address 0x0 - dummy sync flag']
  #allocation35 [shape = 's32[]', space=sflag, size = 0x4, offset = 0, fixed_abs, tag = 'sflag constant byte address 0x0 - dummy sync flag']
  #allocation36 [shape = 's32[]', space=sflag, size = 0x4, offset = 0, fixed_abs, tag = 'sflag constant byte address 0x0 - dummy sync flag']
  #allocation37 [shape = 's32[]', space=sflag, size = 0x4, offset = 0, fixed_abs, tag = 'sflag constant byte address 0x0 - dummy sync flag']
  #allocation38 [shape = 's32[]', space=sflag, size = 0x4, offset = 0, fixed_abs, tag = 'sflag constant byte address 0x0 - dummy sync flag']
  #allocation39 [shape = 's32[]', space=sflag, size = 0x4, offset = 0, fixed_abs, tag = 'sflag constant byte address 0x0 - dummy sync flag']
  #allocation40 [shape = 's32[]', space=sflag, size = 0x4, offset = 0, fixed_abs, tag = 'sflag constant byte address 0x0 - dummy sync flag']
  #allocation41 [shape = 's32[]', space=sflag, size = 0x4, offset = 0, fixed_abs, tag = 'sflag constant byte address 0x0 - dummy sync flag']
  #allocation42 [shape = 's32[]', space=sflag, size = 0x4, offset = 0, fixed_abs, tag = 'sflag constant byte address 0x0 - dummy sync flag']
  #allocation43 [shape = 's32[]', space=sflag, size = 0x4, offset = 0, fixed_abs, tag = 'sflag constant byte address 0x0 - dummy sync flag']
  #allocation44 [shape = 's32[]', space=sflag, size = 0x4, offset = 0, fixed_abs, tag = 'sflag constant byte address 0x0 - dummy sync flag']
  #allocation45 [shape = 's32[]', space=sflag, size = 0x4, offset = 0, fixed_abs, tag = 'sflag constant byte address 0x0 - dummy sync flag']
  #allocation46 [shape = 's32[]', space=sflag, size = 0x4, offset = 0, fixed_abs, tag = 'sflag constant byte address 0x0 - dummy sync flag']
  #allocation47 [shape = 's32[]', space=sflag, size = 0x4, offset = 0, fixed_abs, tag = 'sflag constant byte address 0x0 - dummy sync flag']
  #allocation48 [shape = 's32[]', space=sflag, size = 0x4, offset = 0, fixed_abs, tag = 'sflag constant byte address 0x0 - dummy sync flag']
  #allocation49 [shape = 's32[]', space=sflag, size = 0x4, offset = 0, fixed_abs, tag = 'sflag constant byte address 0x0 - dummy sync flag']
  #allocation50 [shape = 's32[]', space=sflag, size = 0x4, offset = 0, fixed_abs, tag = 'sflag constant byte address 0x0 - dummy sync flag']
  #allocation51 [shape = 's32[]', space=sflag, size = 0x4, offset = 0, fixed_abs, tag = 'sflag constant byte address 0x0 - dummy sync flag']
  #allocation52 [shape = 's32[]', space=sflag, size = 0x4, offset = 0, fixed_abs, tag = 'sflag constant byte address 0x0 - dummy sync flag']
  #allocation53 [shape = 's32[]', space=sflag, size = 0x4, offset = 0, fixed_abs, tag = 'sflag constant byte address 0x0 - dummy sync flag']
  #allocation54 [shape = 's32[]', space=sflag, size = 0x4, offset = 0, fixed_abs, tag = 'sflag constant byte address 0x0 - dummy sync flag']
  #allocation55 [shape = 's32[]', space=sflag, size = 0x4, offset = 0, fixed_abs, tag = 'sflag constant byte address 0x0 - dummy sync flag']
  #allocation56 [shape = 's32[]', space=sflag, size = 0x4, offset = 0, fixed_abs, tag = 'sflag constant byte address 0x0 - dummy sync flag']
  #allocation57 [shape = 's32[]', space=sflag, size = 0x4, offset = 0, fixed_abs, tag = 'sflag constant byte address 0x0 - dummy sync flag']
  #allocation58 [shape = 's32[]', space=sflag, size = 0x4, offset = 0, fixed_abs, tag = 'sflag constant byte address 0x0 - dummy sync flag']
  #allocation59 [shape = 's32[]', space=sflag, size = 0x4, offset = 0, fixed_abs, tag = 'sflag constant byte address 0x0 - dummy sync flag']
  #allocation60 [shape = 's32[]', space=sflag, size = 0x4, offset = 0, fixed_abs, tag = 'sflag constant byte address 0x0 - dummy sync flag']
  #allocation61 [shape = 's32[]', space=sflag, size = 0x4, offset = 0, fixed_abs, tag = 'sflag constant byte address 0x0 - dummy sync flag']
  #allocation62 [shape = 's32[]', space=sflag, size = 0x4, offset = 0, fixed_abs, tag = 'sflag constant byte address 0x0 - dummy sync flag']
  #allocation63 [shape = 's32[]', space=sflag, size = 0x4, offset = 0, fixed_abs, tag = 'sflag constant byte address 0x0 - dummy sync flag']
  #allocation64 [shape = 's32[]', space=sflag, size = 0x4, offset = 0, fixed_abs, tag = 'sflag constant byte address 0x0 - dummy sync flag']
  #allocation65 [shape = 's32[]', space=sflag, size = 0x4, offset = 0, fixed_abs, tag = 'sflag constant byte address 0x0 - dummy sync flag']
  #allocation66 [shape = 's32[]', space=sflag, size = 0x4, offset = 0, fixed_abs, tag = 'sflag constant byte address 0x0 - dummy sync flag']
  #allocation67 [shape = 's32[]', space=sflag, size = 0x4, offset = 0, fixed_abs, tag = 'sflag constant byte address 0x0 - dummy sync flag']
  #allocation68 [shape = 's32[]', space=sflag, size = 0x4, offset = 0, fixed_abs, tag = 'sflag constant byte address 0x0 - dummy sync flag']
  #allocation69 [shape = 's32[]', space=sflag, size = 0x4, offset = 0, fixed_abs, tag = 'sflag constant byte address 0x0 - dummy sync flag']
  #allocation70 [shape = 's32[]', space=sflag, size = 0x4, offset = 0, fixed_abs, tag = 'sflag constant byte address 0x0 - dummy sync flag']
  #allocation71 [shape = 's32[]', space=sflag, size = 0x4, offset = 0, fixed_abs, tag = 'sflag constant byte address 0x0 - dummy sync flag']
  #allocation72 [shape = 's32[]', space=sflag, size = 0x4, offset = 0, fixed_abs, tag = 'sflag constant byte address 0x0 - dummy sync flag']
  #allocation73 [shape = 's32[]', space=sflag, size = 0x4, offset = 0, fixed_abs, tag = 'sflag constant byte address 0x0 - dummy sync flag']
  %s0 = inlined_call_operand.hbm [shape: s32[64], index: 0, kind: input, shape index: {}]
  %s1 = inlined_call_operand.hbm [shape: f32[33,128], index: 1, kind: input, shape index: {}]
  %s2 = inlined_call_operand.hbm [shape: f32[16,128], index: 2, kind: output, shape index: {}]
  %s3 = sld [smem:[#allocation0]]
  $region153: #{tpu_custom_call.1} parent=0
    _
  %s5 = ssub.s32 1, %s3
  %s6 = scalar_select 0, %s5, %s3
  %s8 = sshll.u32 %s0, 4
  %s9 = int_to_ptr.hbm [resolvable:$true] %s8
  %11 = dma.hbm_to_smem %s9, 16, [#allocation5], [#allocation4]
  %13 = dma.done [#allocation4], 16
  %14 = sfence
  $region1: #{tpu_custom_call.1} parent=0
    #allocation6 [shape = 'u8[8192]{0}', space=vmem, size = 0x2000, scoped, tag = 'output window, operand 0']
    #allocation7 [shape = 's32[2]{0}', space=sflag, size = 0x8, scoped, tag = 'scoped memory for tpu_custom_call.1']
    %15 = vsyncpa [#allocation7], 0
    %s16 = scalar_lea.sflag [#allocation7], 1
    %17 = vsyncpa %s16, 0
    loop: start=0, step=1, limit=3
    $region2: #{tpu_custom_call.1} parent=1 // loop_pre_header
      _
    $region3: #{tpu_custom_call.1} parent=1 // loop_header
      %s19 = sphi 0, %s23
      %p20 = scmp.ge.s32.totalorder %s19, 3
      %s28 = sphi 0, %s30
      %s31 = sphi 0, %s28
      %s41 = sphi 0, %s31
    $region4: #{tpu_custom_call.1} parent=1 // loop_header_branch
      %22 = sbr.rel (%p20) target = $region8
    $region5: #{tpu_custom_call.1} parent=1 // loop_body
      %s24 = ssub.s32 %s19, 1
      %s25 = sadd.s32 %s19, 1
      %s26 = ssub.s32 %s19, %s25
      %p27 = scmp.eq.s32.totalorder %s26, 0
      %s29 = sadd.s32 %s28, 1
      %s30 = scalar_select %p27, %s28, %s29
      %p32 = pneg %p27
      %p33 = scmp.eq.s32.totalorder %s19, 1
      %p34 = por %p32, %p33
      %p35 = scmp.ne.s32.totalorder %s28, %s31
      %p36 = scmp.eq.s32.totalorder %s19, 0
      %p37 = por %p35, %p36
      %p38 = scmp.ne.s32.totalorder %s28, %s31
      %p39 = scmp.eq.s32.totalorder %s24, 1
      %p40 = por %p38, %p39
      %p42 = scmp.ne.s32.totalorder %s31, %s41
      %p43 = scmp.eq.s32.totalorder %s24, 0
      %p44 = por %p42, %p43
      %p45 = scmp.lt.s32.totalorder %s19, 2
      // Predicated region
      $region9: #{tpu_custom_call.1} parent=5 // pred_check
        %p46 = pneg %p45
      $region10: #{tpu_custom_call.1} parent=5 // pred_check_branch
        %48 = sbr.rel (%p46) target = $region12
      $region11: #{tpu_custom_call.1} parent=5 // pred_region
        %p49 = pneg %p37
        %p50 = pneg %p34
        %s51 = sand.u32 %s28, 1
        %s52 = scalar_lea.sflag [#allocation7], %s51
        %s53 = sand.u32 %s28, 1
        %s54 = smul.addr %s53, 8
        %s55 = scalar_lea.vmem [#allocation6], %s54
        %s56 = smul.u32 %s19, 32
        %s57 = sld [smem:[#allocation5 + %s56]]
        %s58 = scalar_lea.hbm %s1, %s57
        // Predicated region
        $region13: #{tpu_custom_call.1} parent=11 // pred_check
          _
        $region14: #{tpu_custom_call.1} parent=11 // pred_check_branch
          %60 = sbr.rel target = $region16
        $region15: #{tpu_custom_call.1} parent=11 // pred_region
          %61 = sst [smem:[#allocation10]] [#allocation9]
          %62 = sst [smem:[#allocation11]] [#allocation8]
        $region16: #{tpu_custom_call.1} parent=11 // pred_fallthru
          _
        %64 = shalt.err (0)
        %s66 = sshll.u32 %s58, 4
        %s67 = int_to_ptr.hbm [resolvable:$true] %s66
        %s68 = sshll.u32 [#allocation2], 4
        %s69 = int_to_ptr.vmem [resolvable:$true] %s68
        %71 = dma.hbm_to_vmem [thread:$0]  %s67, 16, %s69, [#allocation3]
        %s72 = sadd.s32 %s56, 1
        %s73 = sld [smem:[#allocation5 + %s72]]
        %s74 = scalar_lea.hbm %s1, %s73
        %s75 = scalar_lea.vmem [#allocation2], 1
        %s76 = scalar_lea.sflag [#allocation3], 1
        // Predicated region
        $region17: #{tpu_custom_call.1} parent=11 // pred_check
          _
        $region18: #{tpu_custom_call.1} parent=11 // pred_check_branch
          %78 = sbr.rel target = $region20
        $region19: #{tpu_custom_call.1} parent=11 // pred_region
          %79 = sst [smem:[#allocation10]] [#allocation13]
          %80 = sst [smem:[#allocation11]] [#allocation12]
        $region20: #{tpu_custom_call.1} parent=11 // pred_fallthru
          _
        %82 = shalt.err (0)
        %s84 = sshll.u32 %s74, 4
        %s85 = int_to_ptr.hbm [resolvable:$true] %s84
        %s86 = sshll.u32 %s75, 4
        %s87 = int_to_ptr.vmem [resolvable:$true] %s86
        %89 = dma.hbm_to_vmem [thread:$0]  %s85, 16, %s87, %s76
        %s90 = sadd.s32 %s56, 2
        %s91 = sld [smem:[#allocation5 + %s90]]
        %s92 = scalar_lea.hbm %s1, %s91
        %s93 = scalar_lea.vmem [#allocation2], 2
        %s94 = scalar_lea.sflag [#allocation3], 2
        // Predicated region
        $region21: #{tpu_custom_call.1} parent=11 // pred_check
          _
        $region22: #{tpu_custom_call.1} parent=11 // pred_check_branch
          %96 = sbr.rel target = $region24
        $region23: #{tpu_custom_call.1} parent=11 // pred_region
          %97 = sst [smem:[#allocation10]] [#allocation15]
          %98 = sst [smem:[#allocation11]] [#allocation14]
        $region24: #{tpu_custom_call.1} parent=11 // pred_fallthru
          _
        %100 = shalt.err (0)
        %s102 = sshll.u32 %s92, 4
        %s103 = int_to_ptr.hbm [resolvable:$true] %s102
        %s104 = sshll.u32 %s93, 4
        %s105 = int_to_ptr.vmem [resolvable:$true] %s104
        %107 = dma.hbm_to_vmem [thread:$0]  %s103, 16, %s105, %s94
        %s108 = sadd.s32 %s56, 3
        %s109 = sld [smem:[#allocation5 + %s108]]
        %s110 = scalar_lea.hbm %s1, %s109
        %s111 = scalar_lea.vmem [#allocation2], 3
        %s112 = scalar_lea.sflag [#allocation3], 3
        // Predicated region
        $region25: #{tpu_custom_call.1} parent=11 // pred_check
          _
        $region26: #{tpu_custom_call.1} parent=11 // pred_check_branch
          %114 = sbr.rel target = $region28
        $region27: #{tpu_custom_call.1} parent=11 // pred_region
          %115 = sst [smem:[#allocation10]] [#allocation17]
          %116 = sst [smem:[#allocation11]] [#allocation16]
        $region28: #{tpu_custom_call.1} parent=11 // pred_fallthru
          _
        %118 = shalt.err (0)
        %s120 = sshll.u32 %s110, 4
        %s121 = int_to_ptr.hbm [resolvable:$true] %s120
        %s122 = sshll.u32 %s111, 4
        %s123 = int_to_ptr.vmem [resolvable:$true] %s122
        %125 = dma.hbm_to_vmem [thread:$0]  %s121, 16, %s123, %s112
        %s126 = sadd.s32 %s56, 4
        %s127 = sld [smem:[#allocation5 + %s126]]
        %s128 = scalar_lea.hbm %s1, %s127
        %s129 = scalar_lea.vmem [#allocation2], 4
        %s130 = scalar_lea.sflag [#allocation3], 4
        // Predicated region
        $region29: #{tpu_custom_call.1} parent=11 // pred_check
          _
        $region30: #{tpu_custom_call.1} parent=11 // pred_check_branch
          %132 = sbr.rel target = $region32
        $region31: #{tpu_custom_call.1} parent=11 // pred_region
          %133 = sst [smem:[#allocation10]] [#allocation19]
          %134 = sst [smem:[#allocation11]] [#allocation18]
        $region32: #{tpu_custom_call.1} parent=11 // pred_fallthru
          _
        %136 = shalt.err (0)
        %s138 = sshll.u32 %s128, 4
        %s139 = int_to_ptr.hbm [resolvable:$true] %s138
        %s140 = sshll.u32 %s129, 4
        %s141 = int_to_ptr.vmem [resolvable:$true] %s140
        %143 = dma.hbm_to_vmem [thread:$0]  %s139, 16, %s141, %s130
        %s144 = sadd.s32 %s56, 5
        %s145 = sld [smem:[#allocation5 + %s144]]
        %s146 = scalar_lea.hbm %s1, %s145
        %s147 = scalar_lea.vmem [#allocation2], 5
        %s148 = scalar_lea.sflag [#allocation3], 5
        // Predicated region
        $region33: #{tpu_custom_call.1} parent=11 // pred_check
          _
        $region34: #{tpu_custom_call.1} parent=11 // pred_check_branch
          %150 = sbr.rel target = $region36
        $region35: #{tpu_custom_call.1} parent=11 // pred_region
          %151 = sst [smem:[#allocation10]] [#allocation21]
          %152 = sst [smem:[#allocation11]] [#allocation20]
        $region36: #{tpu_custom_call.1} parent=11 // pred_fallthru
          _
        %154 = shalt.err (0)
        %s156 = sshll.u32 %s146, 4
        %s157 = int_to_ptr.hbm [resolvable:$true] %s156
        %s158 = sshll.u32 %s147, 4
        %s159 = int_to_ptr.vmem [resolvable:$true] %s158
        %161 = dma.hbm_to_vmem [thread:$0]  %s157, 16, %s159, %s148
        %s162 = sadd.s32 %s56, 6
        %s163 = sld [smem:[#allocation5 + %s162]]
        %s164 = scalar_lea.hbm %s1, %s163
        %s165 = scalar_lea.vmem [#allocation2], 6
        %s166 = scalar_lea.sflag [#allocation3], 6
        // Predicated region
        $region37: #{tpu_custom_call.1} parent=11 // pred_check
          _
        $region38: #{tpu_custom_call.1} parent=11 // pred_check_branch
          %168 = sbr.rel target = $region40
        $region39: #{tpu_custom_call.1} parent=11 // pred_region
          %169 = sst [smem:[#allocation10]] [#allocation23]
          %170 = sst [smem:[#allocation11]] [#allocation22]
        $region40: #{tpu_custom_call.1} parent=11 // pred_fallthru
          _
        %172 = shalt.err (0)
        %s174 = sshll.u32 %s164, 4
        %s175 = int_to_ptr.hbm [resolvable:$true] %s174
        %s176 = sshll.u32 %s165, 4
        %s177 = int_to_ptr.vmem [resolvable:$true] %s176
        %179 = dma.hbm_to_vmem [thread:$0]  %s175, 16, %s177, %s166
        %s180 = sadd.s32 %s56, 7
        %s181 = sld [smem:[#allocation5 + %s180]]
        %s182 = scalar_lea.hbm %s1, %s181
        %s183 = scalar_lea.vmem [#allocation2], 7
        %s184 = scalar_lea.sflag [#allocation3], 7
        // Predicated region
        $region41: #{tpu_custom_call.1} parent=11 // pred_check
          _
        $region42: #{tpu_custom_call.1} parent=11 // pred_check_branch
          %186 = sbr.rel target = $region44
        $region43: #{tpu_custom_call.1} parent=11 // pred_region
          %187 = sst [smem:[#allocation10]] [#allocation25]
          %188 = sst [smem:[#allocation11]] [#allocation24]
        $region44: #{tpu_custom_call.1} parent=11 // pred_fallthru
          _
        %190 = shalt.err (0)
        %s192 = sshll.u32 %s182, 4
        %s193 = int_to_ptr.hbm [resolvable:$true] %s192
        %s194 = sshll.u32 %s183, 4
        %s195 = int_to_ptr.vmem [resolvable:$true] %s194
        %197 = dma.hbm_to_vmem [thread:$0]  %s193, 16, %s195, %s184
        %s198 = sadd.s32 %s56, 8
        %s199 = sld [smem:[#allocation5 + %s198]]
        %s200 = scalar_lea.hbm %s1, %s199
        %s201 = scalar_lea.vmem [#allocation2], 8
        %s202 = scalar_lea.sflag [#allocation3], 8
        // Predicated region
        $region45: #{tpu_custom_call.1} parent=11 // pred_check
          _
        $region46: #{tpu_custom_call.1} parent=11 // pred_check_branch
          %204 = sbr.rel target = $region48
        $region47: #{tpu_custom_call.1} parent=11 // pred_region
          %205 = sst [smem:[#allocation10]] [#allocation27]
          %206 = sst [smem:[#allocation11]] [#allocation26]
        $region48: #{tpu_custom_call.1} parent=11 // pred_fallthru
          _
        %208 = shalt.err (0)
        %s210 = sshll.u32 %s200, 4
        %s211 = int_to_ptr.hbm [resolvable:$true] %s210
        %s212 = sshll.u32 %s201, 4
        %s213 = int_to_ptr.vmem [resolvable:$true] %s212
        %215 = dma.hbm_to_vmem [thread:$0]  %s211, 16, %s213, %s202
        %s216 = sadd.s32 %s56, 9
        %s217 = sld [smem:[#allocation5 + %s216]]
        %s218 = scalar_lea.hbm %s1, %s217
        %s219 = scalar_lea.vmem [#allocation2], 9
        %s220 = scalar_lea.sflag [#allocation3], 9
        // Predicated region
        $region49: #{tpu_custom_call.1} parent=11 // pred_check
          _
        $region50: #{tpu_custom_call.1} parent=11 // pred_check_branch
          %222 = sbr.rel target = $region52
        $region51: #{tpu_custom_call.1} parent=11 // pred_region
          %223 = sst [smem:[#allocation10]] [#allocation29]
          %224 = sst [smem:[#allocation11]] [#allocation28]
        $region52: #{tpu_custom_call.1} parent=11 // pred_fallthru
          _
        %226 = shalt.err (0)
        %s228 = sshll.u32 %s218, 4
        %s229 = int_to_ptr.hbm [resolvable:$true] %s228
        %s230 = sshll.u32 %s219, 4
        %s231 = int_to_ptr.vmem [resolvable:$true] %s230
        %233 = dma.hbm_to_vmem [thread:$0]  %s229, 16, %s231, %s220
        %s234 = sadd.s32 %s56, 10
        %s235 = sld [smem:[#allocation5 + %s234]]
        %s236 = scalar_lea.hbm %s1, %s235
        %s237 = scalar_lea.vmem [#allocation2], 10
        %s238 = scalar_lea.sflag [#allocation3], 10
        // Predicated region
        $region53: #{tpu_custom_call.1} parent=11 // pred_check
          _
        $region54: #{tpu_custom_call.1} parent=11 // pred_check_branch
          %240 = sbr.rel target = $region56
        $region55: #{tpu_custom_call.1} parent=11 // pred_region
          %241 = sst [smem:[#allocation10]] [#allocation31]
          %242 = sst [smem:[#allocation11]] [#allocation30]
        $region56: #{tpu_custom_call.1} parent=11 // pred_fallthru
          _
        %244 = shalt.err (0)
        %s246 = sshll.u32 %s236, 4
        %s247 = int_to_ptr.hbm [resolvable:$true] %s246
        %s248 = sshll.u32 %s237, 4
        %s249 = int_to_ptr.vmem [resolvable:$true] %s248
        %251 = dma.hbm_to_vmem [thread:$0]  %s247, 16, %s249, %s238
        %s252 = sadd.s32 %s56, 11
        %s253 = sld [smem:[#allocation5 + %s252]]
        %s254 = scalar_lea.hbm %s1, %s253
        %s255 = scalar_lea.vmem [#allocation2], 11
        %s256 = scalar_lea.sflag [#allocation3], 11
        // Predicated region
        $region57: #{tpu_custom_call.1} parent=11 // pred_check
          _
        $region58: #{tpu_custom_call.1} parent=11 // pred_check_branch
          %258 = sbr.rel target = $region60
        $region59: #{tpu_custom_call.1} parent=11 // pred_region
          %259 = sst [smem:[#allocation10]] [#allocation33]
          %260 = sst [smem:[#allocation11]] [#allocation32]
        $region60: #{tpu_custom_call.1} parent=11 // pred_fallthru
          _
        %262 = shalt.err (0)
        %s264 = sshll.u32 %s254, 4
        %s265 = int_to_ptr.hbm [resolvable:$true] %s264
        %s266 = sshll.u32 %s255, 4
        %s267 = int_to_ptr.vmem [resolvable:$true] %s266
        %269 = dma.hbm_to_vmem [thread:$0]  %s265, 16, %s267, %s256
        %s270 = sadd.s32 %s56, 12
        %s271 = sld [smem:[#allocation5 + %s270]]
        %s272 = scalar_lea.hbm %s1, %s271
        %s273 = scalar_lea.vmem [#allocation2], 12
        %s274 = scalar_lea.sflag [#allocation3], 12
        // Predicated region
        $region61: #{tpu_custom_call.1} parent=11 // pred_check
          _
        $region62: #{tpu_custom_call.1} parent=11 // pred_check_branch
          %276 = sbr.rel target = $region64
        $region63: #{tpu_custom_call.1} parent=11 // pred_region
          %277 = sst [smem:[#allocation10]] [#allocation35]
          %278 = sst [smem:[#allocation11]] [#allocation34]
        $region64: #{tpu_custom_call.1} parent=11 // pred_fallthru
          _
        %280 = shalt.err (0)
        %s282 = sshll.u32 %s272, 4
        %s283 = int_to_ptr.hbm [resolvable:$true] %s282
        %s284 = sshll.u32 %s273, 4
        %s285 = int_to_ptr.vmem [resolvable:$true] %s284
        %287 = dma.hbm_to_vmem [thread:$0]  %s283, 16, %s285, %s274
        %s288 = sadd.s32 %s56, 13
        %s289 = sld [smem:[#allocation5 + %s288]]
        %s290 = scalar_lea.hbm %s1, %s289
        %s291 = scalar_lea.vmem [#allocation2], 13
        %s292 = scalar_lea.sflag [#allocation3], 13
        // Predicated region
        $region65: #{tpu_custom_call.1} parent=11 // pred_check
          _
        $region66: #{tpu_custom_call.1} parent=11 // pred_check_branch
          %294 = sbr.rel target = $region68
        $region67: #{tpu_custom_call.1} parent=11 // pred_region
          %295 = sst [smem:[#allocation10]] [#allocation37]
          %296 = sst [smem:[#allocation11]] [#allocation36]
        $region68: #{tpu_custom_call.1} parent=11 // pred_fallthru
          _
        %298 = shalt.err (0)
        %s300 = sshll.u32 %s290, 4
        %s301 = int_to_ptr.hbm [resolvable:$true] %s300
        %s302 = sshll.u32 %s291, 4
        %s303 = int_to_ptr.vmem [resolvable:$true] %s302
        %305 = dma.hbm_to_vmem [thread:$0]  %s301, 16, %s303, %s292
        %s306 = sadd.s32 %s56, 14
        %s307 = sld [smem:[#allocation5 + %s306]]
        %s308 = scalar_lea.hbm %s1, %s307
        %s309 = scalar_lea.vmem [#allocation2], 14
        %s310 = scalar_lea.sflag [#allocation3], 14
        // Predicated region
        $region69: #{tpu_custom_call.1} parent=11 // pred_check
          _
        $region70: #{tpu_custom_call.1} parent=11 // pred_check_branch
          %312 = sbr.rel target = $region72
        $region71: #{tpu_custom_call.1} parent=11 // pred_region
          %313 = sst [smem:[#allocation10]] [#allocation39]
          %314 = sst [smem:[#allocation11]] [#allocation38]
        $region72: #{tpu_custom_call.1} parent=11 // pred_fallthru
          _
        %316 = shalt.err (0)
        %s318 = sshll.u32 %s308, 4
        %s319 = int_to_ptr.hbm [resolvable:$true] %s318
        %s320 = sshll.u32 %s309, 4
        %s321 = int_to_ptr.vmem [resolvable:$true] %s320
        %323 = dma.hbm_to_vmem [thread:$0]  %s319, 16, %s321, %s310
        %s324 = sadd.s32 %s56, 15
        %s325 = sld [smem:[#allocation5 + %s324]]
        %s326 = scalar_lea.hbm %s1, %s325
        %s327 = scalar_lea.vmem [#allocation2], 15
        %s328 = scalar_lea.sflag [#allocation3], 15
        // Predicated region
        $region73: #{tpu_custom_call.1} parent=11 // pred_check
          _
        $region74: #{tpu_custom_call.1} parent=11 // pred_check_branch
          %330 = sbr.rel target = $region76
        $region75: #{tpu_custom_call.1} parent=11 // pred_region
          %331 = sst [smem:[#allocation10]] [#allocation41]
          %332 = sst [smem:[#allocation11]] [#allocation40]
        $region76: #{tpu_custom_call.1} parent=11 // pred_fallthru
          _
        %334 = shalt.err (0)
        %s336 = sshll.u32 %s326, 4
        %s337 = int_to_ptr.hbm [resolvable:$true] %s336
        %s338 = sshll.u32 %s327, 4
        %s339 = int_to_ptr.vmem [resolvable:$true] %s338
        %341 = dma.hbm_to_vmem [thread:$0]  %s337, 16, %s339, %s328
        %s342 = sadd.s32 %s56, 16
        %s343 = sld [smem:[#allocation5 + %s342]]
        %s344 = scalar_lea.hbm %s1, %s343
        %s345 = scalar_lea.vmem [#allocation2], 16
        %s346 = scalar_lea.sflag [#allocation3], 16
        // Predicated region
        $region77: #{tpu_custom_call.1} parent=11 // pred_check
          _
        $region78: #{tpu_custom_call.1} parent=11 // pred_check_branch
          %348 = sbr.rel target = $region80
        $region79: #{tpu_custom_call.1} parent=11 // pred_region
          %349 = sst [smem:[#allocation10]] [#allocation43]
          %350 = sst [smem:[#allocation11]] [#allocation42]
        $region80: #{tpu_custom_call.1} parent=11 // pred_fallthru
          _
        %352 = shalt.err (0)
        %s354 = sshll.u32 %s344, 4
        %s355 = int_to_ptr.hbm [resolvable:$true] %s354
        %s356 = sshll.u32 %s345, 4
        %s357 = int_to_ptr.vmem [resolvable:$true] %s356
        %359 = dma.hbm_to_vmem [thread:$0]  %s355, 16, %s357, %s346
        %s360 = sadd.s32 %s56, 17
        %s361 = sld [smem:[#allocation5 + %s360]]
        %s362 = scalar_lea.hbm %s1, %s361
        %s363 = scalar_lea.vmem [#allocation2], 17
        %s364 = scalar_lea.sflag [#allocation3], 17
        // Predicated region
        $region81: #{tpu_custom_call.1} parent=11 // pred_check
          _
        $region82: #{tpu_custom_call.1} parent=11 // pred_check_branch
          %366 = sbr.rel target = $region84
        $region83: #{tpu_custom_call.1} parent=11 // pred_region
          %367 = sst [smem:[#allocation10]] [#allocation45]
          %368 = sst [smem:[#allocation11]] [#allocation44]
        $region84: #{tpu_custom_call.1} parent=11 // pred_fallthru
          _
        %370 = shalt.err (0)
        %s372 = sshll.u32 %s362, 4
        %s373 = int_to_ptr.hbm [resolvable:$true] %s372
        %s374 = sshll.u32 %s363, 4
        %s375 = int_to_ptr.vmem [resolvable:$true] %s374
        %377 = dma.hbm_to_vmem [thread:$0]  %s373, 16, %s375, %s364
        %s378 = sadd.s32 %s56, 18
        %s379 = sld [smem:[#allocation5 + %s378]]
        %s380 = scalar_lea.hbm %s1, %s379
        %s381 = scalar_lea.vmem [#allocation2], 18
        %s382 = scalar_lea.sflag [#allocation3], 18
        // Predicated region
        $region85: #{tpu_custom_call.1} parent=11 // pred_check
          _
        $region86: #{tpu_custom_call.1} parent=11 // pred_check_branch
          %384 = sbr.rel target = $region88
        $region87: #{tpu_custom_call.1} parent=11 // pred_region
          %385 = sst [smem:[#allocation10]] [#allocation47]
          %386 = sst [smem:[#allocation11]] [#allocation46]
        $region88: #{tpu_custom_call.1} parent=11 // pred_fallthru
          _
        %388 = shalt.err (0)
        %s390 = sshll.u32 %s380, 4
        %s391 = int_to_ptr.hbm [resolvable:$true] %s390
        %s392 = sshll.u32 %s381, 4
        %s393 = int_to_ptr.vmem [resolvable:$true] %s392
        %395 = dma.hbm_to_vmem [thread:$0]  %s391, 16, %s393, %s382
        %s396 = sadd.s32 %s56, 19
        %s397 = sld [smem:[#allocation5 + %s396]]
        %s398 = scalar_lea.hbm %s1, %s397
        %s399 = scalar_lea.vmem [#allocation2], 19
        %s400 = scalar_lea.sflag [#allocation3], 19
        // Predicated region
        $region89: #{tpu_custom_call.1} parent=11 // pred_check
          _
        $region90: #{tpu_custom_call.1} parent=11 // pred_check_branch
          %402 = sbr.rel target = $region92
        $region91: #{tpu_custom_call.1} parent=11 // pred_region
          %403 = sst [smem:[#allocation10]] [#allocation49]
          %404 = sst [smem:[#allocation11]] [#allocation48]
        $region92: #{tpu_custom_call.1} parent=11 // pred_fallthru
          _
        %406 = shalt.err (0)
        %s408 = sshll.u32 %s398, 4
        %s409 = int_to_ptr.hbm [resolvable:$true] %s408
        %s410 = sshll.u32 %s399, 4
        %s411 = int_to_ptr.vmem [resolvable:$true] %s410
        %413 = dma.hbm_to_vmem [thread:$0]  %s409, 16, %s411, %s400
        %s414 = sadd.s32 %s56, 20
        %s415 = sld [smem:[#allocation5 + %s414]]
        %s416 = scalar_lea.hbm %s1, %s415
        %s417 = scalar_lea.vmem [#allocation2], 20
        %s418 = scalar_lea.sflag [#allocation3], 20
        // Predicated region
        $region93: #{tpu_custom_call.1} parent=11 // pred_check
          _
        $region94: #{tpu_custom_call.1} parent=11 // pred_check_branch
          %420 = sbr.rel target = $region96
        $region95: #{tpu_custom_call.1} parent=11 // pred_region
          %421 = sst [smem:[#allocation10]] [#allocation51]
          %422 = sst [smem:[#allocation11]] [#allocation50]
        $region96: #{tpu_custom_call.1} parent=11 // pred_fallthru
          _
        %424 = shalt.err (0)
        %s426 = sshll.u32 %s416, 4
        %s427 = int_to_ptr.hbm [resolvable:$true] %s426
        %s428 = sshll.u32 %s417, 4
        %s429 = int_to_ptr.vmem [resolvable:$true] %s428
        %431 = dma.hbm_to_vmem [thread:$0]  %s427, 16, %s429, %s418
        %s432 = sadd.s32 %s56, 21
        %s433 = sld [smem:[#allocation5 + %s432]]
        %s434 = scalar_lea.hbm %s1, %s433
        %s435 = scalar_lea.vmem [#allocation2], 21
        %s436 = scalar_lea.sflag [#allocation3], 21
        // Predicated region
        $region97: #{tpu_custom_call.1} parent=11 // pred_check
          _
        $region98: #{tpu_custom_call.1} parent=11 // pred_check_branch
          %438 = sbr.rel target = $region100
        $region99: #{tpu_custom_call.1} parent=11 // pred_region
          %439 = sst [smem:[#allocation10]] [#allocation53]
          %440 = sst [smem:[#allocation11]] [#allocation52]
        $region100: #{tpu_custom_call.1} parent=11 // pred_fallthru
          _
        %442 = shalt.err (0)
        %s444 = sshll.u32 %s434, 4
        %s445 = int_to_ptr.hbm [resolvable:$true] %s444
        %s446 = sshll.u32 %s435, 4
        %s447 = int_to_ptr.vmem [resolvable:$true] %s446
        %449 = dma.hbm_to_vmem [thread:$0]  %s445, 16, %s447, %s436
        %s450 = sadd.s32 %s56, 22
        %s451 = sld [smem:[#allocation5 + %s450]]
        %s452 = scalar_lea.hbm %s1, %s451
        %s453 = scalar_lea.vmem [#allocation2], 22
        %s454 = scalar_lea.sflag [#allocation3], 22
        // Predicated region
        $region101: #{tpu_custom_call.1} parent=11 // pred_check
          _
        $region102: #{tpu_custom_call.1} parent=11 // pred_check_branch
          %456 = sbr.rel target = $region104
        $region103: #{tpu_custom_call.1} parent=11 // pred_region
          %457 = sst [smem:[#allocation10]] [#allocation55]
          %458 = sst [smem:[#allocation11]] [#allocation54]
        $region104: #{tpu_custom_call.1} parent=11 // pred_fallthru
          _
        %460 = shalt.err (0)
        %s462 = sshll.u32 %s452, 4
        %s463 = int_to_ptr.hbm [resolvable:$true] %s462
        %s464 = sshll.u32 %s453, 4
        %s465 = int_to_ptr.vmem [resolvable:$true] %s464
        %467 = dma.hbm_to_vmem [thread:$0]  %s463, 16, %s465, %s454
        %s468 = sadd.s32 %s56, 23
        %s469 = sld [smem:[#allocation5 + %s468]]
        %s470 = scalar_lea.hbm %s1, %s469
        %s471 = scalar_lea.vmem [#allocation2], 23
        %s472 = scalar_lea.sflag [#allocation3], 23
        // Predicated region
        $region105: #{tpu_custom_call.1} parent=11 // pred_check
          _
        $region106: #{tpu_custom_call.1} parent=11 // pred_check_branch
          %474 = sbr.rel target = $region108
        $region107: #{tpu_custom_call.1} parent=11 // pred_region
          %475 = sst [smem:[#allocation10]] [#allocation57]
          %476 = sst [smem:[#allocation11]] [#allocation56]
        $region108: #{tpu_custom_call.1} parent=11 // pred_fallthru
          _
        %478 = shalt.err (0)
        %s480 = sshll.u32 %s470, 4
        %s481 = int_to_ptr.hbm [resolvable:$true] %s480
        %s482 = sshll.u32 %s471, 4
        %s483 = int_to_ptr.vmem [resolvable:$true] %s482
        %485 = dma.hbm_to_vmem [thread:$0]  %s481, 16, %s483, %s472
        %s486 = sadd.s32 %s56, 24
        %s487 = sld [smem:[#allocation5 + %s486]]
        %s488 = scalar_lea.hbm %s1, %s487
        %s489 = scalar_lea.vmem [#allocation2], 24
        %s490 = scalar_lea.sflag [#allocation3], 24
        // Predicated region
        $region109: #{tpu_custom_call.1} parent=11 // pred_check
          _
        $region110: #{tpu_custom_call.1} parent=11 // pred_check_branch
          %492 = sbr.rel target = $region112
        $region111: #{tpu_custom_call.1} parent=11 // pred_region
          %493 = sst [smem:[#allocation10]] [#allocation59]
          %494 = sst [smem:[#allocation11]] [#allocation58]
        $region112: #{tpu_custom_call.1} parent=11 // pred_fallthru
          _
        %496 = shalt.err (0)
        %s498 = sshll.u32 %s488, 4
        %s499 = int_to_ptr.hbm [resolvable:$true] %s498
        %s500 = sshll.u32 %s489, 4
        %s501 = int_to_ptr.vmem [resolvable:$true] %s500
        %503 = dma.hbm_to_vmem [thread:$0]  %s499, 16, %s501, %s490
        %s504 = sadd.s32 %s56, 25
        %s505 = sld [smem:[#allocation5 + %s504]]
        %s506 = scalar_lea.hbm %s1, %s505
        %s507 = scalar_lea.vmem [#allocation2], 25
        %s508 = scalar_lea.sflag [#allocation3], 25
        // Predicated region
        $region113: #{tpu_custom_call.1} parent=11 // pred_check
          _
        $region114: #{tpu_custom_call.1} parent=11 // pred_check_branch
          %510 = sbr.rel target = $region116
        $region115: #{tpu_custom_call.1} parent=11 // pred_region
          %511 = sst [smem:[#allocation10]] [#allocation61]
          %512 = sst [smem:[#allocation11]] [#allocation60]
        $region116: #{tpu_custom_call.1} parent=11 // pred_fallthru
          _
        %514 = shalt.err (0)
        %s516 = sshll.u32 %s506, 4
        %s517 = int_to_ptr.hbm [resolvable:$true] %s516
        %s518 = sshll.u32 %s507, 4
        %s519 = int_to_ptr.vmem [resolvable:$true] %s518
        %521 = dma.hbm_to_vmem [thread:$0]  %s517, 16, %s519, %s508
        %s522 = sadd.s32 %s56, 26
        %s523 = sld [smem:[#allocation5 + %s522]]
        %s524 = scalar_lea.hbm %s1, %s523
        %s525 = scalar_lea.vmem [#allocation2], 26
        %s526 = scalar_lea.sflag [#allocation3], 26
        // Predicated region
        $region117: #{tpu_custom_call.1} parent=11 // pred_check
          _
        $region118: #{tpu_custom_call.1} parent=11 // pred_check_branch
          %528 = sbr.rel target = $region120
        $region119: #{tpu_custom_call.1} parent=11 // pred_region
          %529 = sst [smem:[#allocation10]] [#allocation63]
          %530 = sst [smem:[#allocation11]] [#allocation62]
        $region120: #{tpu_custom_call.1} parent=11 // pred_fallthru
          _
        %532 = shalt.err (0)
        %s534 = sshll.u32 %s524, 4
        %s535 = int_to_ptr.hbm [resolvable:$true] %s534
        %s536 = sshll.u32 %s525, 4
        %s537 = int_to_ptr.vmem [resolvable:$true] %s536
        %539 = dma.hbm_to_vmem [thread:$0]  %s535, 16, %s537, %s526
        %s540 = sadd.s32 %s56, 27
        %s541 = sld [smem:[#allocation5 + %s540]]
        %s542 = scalar_lea.hbm %s1, %s541
        %s543 = scalar_lea.vmem [#allocation2], 27
        %s544 = scalar_lea.sflag [#allocation3], 27
        // Predicated region
        $region121: #{tpu_custom_call.1} parent=11 // pred_check
          _
        $region122: #{tpu_custom_call.1} parent=11 // pred_check_branch
          %546 = sbr.rel target = $region124
        $region123: #{tpu_custom_call.1} parent=11 // pred_region
          %547 = sst [smem:[#allocation10]] [#allocation65]
          %548 = sst [smem:[#allocation11]] [#allocation64]
        $region124: #{tpu_custom_call.1} parent=11 // pred_fallthru
          _
        %550 = shalt.err (0)
        %s552 = sshll.u32 %s542, 4
        %s553 = int_to_ptr.hbm [resolvable:$true] %s552
        %s554 = sshll.u32 %s543, 4
        %s555 = int_to_ptr.vmem [resolvable:$true] %s554
        %557 = dma.hbm_to_vmem [thread:$0]  %s553, 16, %s555, %s544
        %s558 = sadd.s32 %s56, 28
        %s559 = sld [smem:[#allocation5 + %s558]]
        %s560 = scalar_lea.hbm %s1, %s559
        %s561 = scalar_lea.vmem [#allocation2], 28
        %s562 = scalar_lea.sflag [#allocation3], 28
        // Predicated region
        $region125: #{tpu_custom_call.1} parent=11 // pred_check
          _
        $region126: #{tpu_custom_call.1} parent=11 // pred_check_branch
          %564 = sbr.rel target = $region128
        $region127: #{tpu_custom_call.1} parent=11 // pred_region
          %565 = sst [smem:[#allocation10]] [#allocation67]
          %566 = sst [smem:[#allocation11]] [#allocation66]
        $region128: #{tpu_custom_call.1} parent=11 // pred_fallthru
          _
        %568 = shalt.err (0)
        %s570 = sshll.u32 %s560, 4
        %s571 = int_to_ptr.hbm [resolvable:$true] %s570
        %s572 = sshll.u32 %s561, 4
        %s573 = int_to_ptr.vmem [resolvable:$true] %s572
        %575 = dma.hbm_to_vmem [thread:$0]  %s571, 16, %s573, %s562
        %s576 = sadd.s32 %s56, 29
        %s577 = sld [smem:[#allocation5 + %s576]]
        %s578 = scalar_lea.hbm %s1, %s577
        %s579 = scalar_lea.vmem [#allocation2], 29
        %s580 = scalar_lea.sflag [#allocation3], 29
        // Predicated region
        $region129: #{tpu_custom_call.1} parent=11 // pred_check
          _
        $region130: #{tpu_custom_call.1} parent=11 // pred_check_branch
          %582 = sbr.rel target = $region132
        $region131: #{tpu_custom_call.1} parent=11 // pred_region
          %583 = sst [smem:[#allocation10]] [#allocation69]
          %584 = sst [smem:[#allocation11]] [#allocation68]
        $region132: #{tpu_custom_call.1} parent=11 // pred_fallthru
          _
        %586 = shalt.err (0)
        %s588 = sshll.u32 %s578, 4
        %s589 = int_to_ptr.hbm [resolvable:$true] %s588
        %s590 = sshll.u32 %s579, 4
        %s591 = int_to_ptr.vmem [resolvable:$true] %s590
        %593 = dma.hbm_to_vmem [thread:$0]  %s589, 16, %s591, %s580
        %s594 = sadd.s32 %s56, 30
        %s595 = sld [smem:[#allocation5 + %s594]]
        %s596 = scalar_lea.hbm %s1, %s595
        %s597 = scalar_lea.vmem [#allocation2], 30
        %s598 = scalar_lea.sflag [#allocation3], 30
        // Predicated region
        $region133: #{tpu_custom_call.1} parent=11 // pred_check
          _
        $region134: #{tpu_custom_call.1} parent=11 // pred_check_branch
          %600 = sbr.rel target = $region136
        $region135: #{tpu_custom_call.1} parent=11 // pred_region
          %601 = sst [smem:[#allocation10]] [#allocation71]
          %602 = sst [smem:[#allocation11]] [#allocation70]
        $region136: #{tpu_custom_call.1} parent=11 // pred_fallthru
          _
        %604 = shalt.err (0)
        %s606 = sshll.u32 %s596, 4
        %s607 = int_to_ptr.hbm [resolvable:$true] %s606
        %s608 = sshll.u32 %s597, 4
        %s609 = int_to_ptr.vmem [resolvable:$true] %s608
        %611 = dma.hbm_to_vmem [thread:$0]  %s607, 16, %s609, %s598
        %s612 = sadd.s32 %s56, 31
        %s613 = sld [smem:[#allocation5 + %s612]]
        %s614 = scalar_lea.hbm %s1, %s613
        %s615 = scalar_lea.vmem [#allocation2], 31
        %s616 = scalar_lea.sflag [#allocation3], 31
        // Predicated region
        $region137: #{tpu_custom_call.1} parent=11 // pred_check
          _
        $region138: #{tpu_custom_call.1} parent=11 // pred_check_branch
          %618 = sbr.rel target = $region140
        $region139: #{tpu_custom_call.1} parent=11 // pred_region
          %619 = sst [smem:[#allocation10]] [#allocation73]
          %620 = sst [smem:[#allocation11]] [#allocation72]
        $region140: #{tpu_custom_call.1} parent=11 // pred_fallthru
          _
        %622 = shalt.err (0)
        %s624 = sshll.u32 %s614, 4
        %s625 = int_to_ptr.hbm [resolvable:$true] %s624
        %s626 = sshll.u32 %s615, 4
        %s627 = int_to_ptr.vmem [resolvable:$true] %s626
        %629 = dma.hbm_to_vmem [thread:$0]  %s625, 16, %s627, %s616
        %s630 = smul.u32 1, 1
        %s631 = sshll.u32 %s630, 4
        %632 = dma.done [#allocation3], %s631
        %v633 = vld [vmem:[#allocation2] sm:$0x1]
        %v634 = vadd.f32 %v633, 0.0
        %s635 = sshll.u32 %s630, 4
        %636 = dma.done %s76, %s635
        %v637 = vld [vmem:[%s75] sm:$0x1]
        %v638 = vadd.f32 %v634, %v637
        %s639 = sshll.u32 %s630, 4
        %640 = dma.done %s94, %s639
        %v641 = vld [vmem:[%s93] sm:$0x1]
        %v642 = vadd.f32 %v638, %v641
        %s643 = sshll.u32 %s630, 4
        %644 = dma.done %s112, %s643
        %v645 = vld [vmem:[%s111] sm:$0x1]
        %v646 = vadd.f32 %v642, %v645
        %v647 = vmul.f32 %v646, 0.25
        %648 = vst [vmem:[%s55] sm:$0x1] %v647
        %s649 = sshll.u32 %s630, 4
        %650 = dma.done %s130, %s649
        %v651 = vld [vmem:[%s129] sm:$0x1]
        %v652 = vadd.f32 %v651, 0.0
        %s653 = sshll.u32 %s630, 4
        %654 = dma.done %s148, %s653
        %v655 = vld [vmem:[%s147] sm:$0x1]
        %v656 = vadd.f32 %v652, %v655
        %s657 = sshll.u32 %s630, 4
        %658 = dma.done %s166, %s657
        %v659 = vld [vmem:[%s165] sm:$0x1]
        %v660 = vadd.f32 %v656, %v659
        %s661 = sshll.u32 %s630, 4
        %662 = dma.done %s184, %s661
        %v663 = vld [vmem:[%s183] sm:$0x1]
        %v664 = vadd.f32 %v660, %v663
        %v665 = vmul.f32 %v664, 0.25
        %666 = vst [vmem:[%s55 + $0x1] sm:$0x1] %v665
        %s667 = sshll.u32 %s630, 4
        %668 = dma.done %s202, %s667
        %v669 = vld [vmem:[%s201] sm:$0x1]
        %v670 = vadd.f32 %v669, 0.0
        %s671 = sshll.u32 %s630, 4
        %672 = dma.done %s220, %s671
        %v673 = vld [vmem:[%s219] sm:$0x1]
        %v674 = vadd.f32 %v670, %v673
        %s675 = sshll.u32 %s630, 4
        %676 = dma.done %s238, %s675
        %v677 = vld [vmem:[%s237] sm:$0x1]
        %v678 = vadd.f32 %v674, %v677
        %s679 = sshll.u32 %s630, 4
        %680 = dma.done %s256, %s679
        %v681 = vld [vmem:[%s255] sm:$0x1]
        %v682 = vadd.f32 %v678, %v681
        %v683 = vmul.f32 %v682, 0.25
        %684 = vst [vmem:[%s55 + $0x2] sm:$0x1] %v683
        %s685 = sshll.u32 %s630, 4
        %686 = dma.done %s274, %s685
        %v687 = vld [vmem:[%s273] sm:$0x1]
        %v688 = vadd.f32 %v687, 0.0
        %s689 = sshll.u32 %s630, 4
        %690 = dma.done %s292, %s689
        %v691 = vld [vmem:[%s291] sm:$0x1]
        %v692 = vadd.f32 %v688, %v691
        %s693 = sshll.u32 %s630, 4
        %694 = dma.done %s310, %s693
        %v695 = vld [vmem:[%s309] sm:$0x1]
        %v696 = vadd.f32 %v692, %v695
        %s697 = sshll.u32 %s630, 4
        %698 = dma.done %s328, %s697
        %v699 = vld [vmem:[%s327] sm:$0x1]
        %v700 = vadd.f32 %v696, %v699
        %v701 = vmul.f32 %v700, 0.25
        %702 = vst [vmem:[%s55 + $0x3] sm:$0x1] %v701
        %s703 = sshll.u32 %s630, 4
        %704 = dma.done %s346, %s703
        %v705 = vld [vmem:[%s345] sm:$0x1]
        %v706 = vadd.f32 %v705, 0.0
        %s707 = sshll.u32 %s630, 4
        %708 = dma.done %s364, %s707
        %v709 = vld [vmem:[%s363] sm:$0x1]
        %v710 = vadd.f32 %v706, %v709
        %s711 = sshll.u32 %s630, 4
        %712 = dma.done %s382, %s711
        %v713 = vld [vmem:[%s381] sm:$0x1]
        %v714 = vadd.f32 %v710, %v713
        %s715 = sshll.u32 %s630, 4
        %716 = dma.done %s400, %s715
        %v717 = vld [vmem:[%s399] sm:$0x1]
        %v718 = vadd.f32 %v714, %v717
        %v719 = vmul.f32 %v718, 0.25
        %720 = vst [vmem:[%s55 + $0x4] sm:$0x1] %v719
        %s721 = sshll.u32 %s630, 4
        %722 = dma.done %s418, %s721
        %v723 = vld [vmem:[%s417] sm:$0x1]
        %v724 = vadd.f32 %v723, 0.0
        %s725 = sshll.u32 %s630, 4
        %726 = dma.done %s436, %s725
        %v727 = vld [vmem:[%s435] sm:$0x1]
        %v728 = vadd.f32 %v724, %v727
        %s729 = sshll.u32 %s630, 4
        %730 = dma.done %s454, %s729
        %v731 = vld [vmem:[%s453] sm:$0x1]
        %v732 = vadd.f32 %v728, %v731
        %s733 = sshll.u32 %s630, 4
        %734 = dma.done %s472, %s733
        %v735 = vld [vmem:[%s471] sm:$0x1]
        %v736 = vadd.f32 %v732, %v735
        %v737 = vmul.f32 %v736, 0.25
        %738 = vst [vmem:[%s55 + $0x5] sm:$0x1] %v737
        %s739 = sshll.u32 %s630, 4
        %740 = dma.done %s490, %s739
        %v741 = vld [vmem:[%s489] sm:$0x1]
        %v742 = vadd.f32 %v741, 0.0
        %s743 = sshll.u32 %s630, 4
        %744 = dma.done %s508, %s743
        %v745 = vld [vmem:[%s507] sm:$0x1]
        %v746 = vadd.f32 %v742, %v745
        %s747 = sshll.u32 %s630, 4
        %748 = dma.done %s526, %s747
        %v749 = vld [vmem:[%s525] sm:$0x1]
        %v750 = vadd.f32 %v746, %v749
        %s751 = sshll.u32 %s630, 4
        %752 = dma.done %s544, %s751
        %v753 = vld [vmem:[%s543] sm:$0x1]
        %v754 = vadd.f32 %v750, %v753
        %v755 = vmul.f32 %v754, 0.25
        %756 = vst [vmem:[%s55 + $0x6] sm:$0x1] %v755
        %s757 = sshll.u32 %s630, 4
        %758 = dma.done %s562, %s757
        %v759 = vld [vmem:[%s561] sm:$0x1]
        %v760 = vadd.f32 %v759, 0.0
        %s761 = sshll.u32 %s630, 4
        %762 = dma.done %s580, %s761
        %v763 = vld [vmem:[%s579] sm:$0x1]
        %v764 = vadd.f32 %v760, %v763
        %s765 = sshll.u32 %s630, 4
        %766 = dma.done %s598, %s765
        %v767 = vld [vmem:[%s597] sm:$0x1]
        %v768 = vadd.f32 %v764, %v767
        %s769 = sshll.u32 %s630, 4
        %770 = dma.done %s616, %s769
        %v771 = vld [vmem:[%s615] sm:$0x1]
        %v772 = vadd.f32 %v768, %v771
        %v773 = vmul.f32 %v772, 0.25
        %774 = vst [vmem:[%s55 + $0x7] sm:$0x1] %v773
        %s775 = sand.u32 %s28, 1
        %s776 = scalar_lea.sflag [#allocation7], %s775
        %s777 = sand.u32 %s28, 1
        %s778 = smul.addr %s777, 8
        %s779 = scalar_lea.vmem [#allocation6], %s778
        // Predicated region
        $region141: #{tpu_custom_call.1} parent=11 // pred_check
          %p780 = pneg %p34
        $region142: #{tpu_custom_call.1} parent=11 // pred_check_branch
          %782 = sbr.rel (%p780) target = $region144
        $region143: #{tpu_custom_call.1} parent=11 // pred_region
          %784 = vsyncadd %s776, 0
          %s785 = smul.addr %s19, 8
          %s786 = scalar_lea.hbm %s2, %s785
          %s788 = sshll.u32 %s779, 4
          %s789 = int_to_ptr.vmem [resolvable:$true] %s788
          %s790 = sshll.u32 %s786, 4
          %s791 = int_to_ptr.hbm [resolvable:$true] %s790
          %793 = dma.vmem_to_hbm [thread:$0]  %s789, 128, %s791, %s776
        $region144: #{tpu_custom_call.1} parent=11 // pred_fallthru
          _
      $region12: #{tpu_custom_call.1} parent=5 // pred_fallthru
        _
      %p794 = scmp.le.s32.totalorder 1, %s19
      // Predicated region
      $region145: #{tpu_custom_call.1} parent=5 // pred_check
        %p795 = pneg %p794
      $region146: #{tpu_custom_call.1} parent=5 // pred_check_branch
        %797 = sbr.rel (%p795) target = $region148
      $region147: #{tpu_custom_call.1} parent=5 // pred_region
        %s798 = ssub.s32 %s19, 1
        // Predicated region
        $region149: #{tpu_custom_call.1} parent=147 // pred_check
          %p799 = pneg %p40
        $region150: #{tpu_custom_call.1} parent=147 // pred_check_branch
          %801 = sbr.rel (%p799) target = $region152
        $region151: #{tpu_custom_call.1} parent=147 // pred_region
          %s802 = sand.u32 %s31, 1
          %s803 = scalar_lea.sflag [#allocation7], %s802
          %s804 = sand.u32 %s31, 1
          %s805 = smul.addr %s804, 8
          %s806 = scalar_lea.vmem [#allocation6], %s805
          %808 = dma.done %s803, 128
        $region152: #{tpu_custom_call.1} parent=147 // pred_fallthru
          _
      $region148: #{tpu_custom_call.1} parent=5 // pred_fallthru
        _
    $region6: #{tpu_custom_call.1} parent=1 // loop_footer
      %s23 = sadd.s32 1, %s19
    $region7: #{tpu_custom_call.1} parent=1 // loop_footer_branch
      %18 = sbr.rel target = $region3
    $region8: #{tpu_custom_call.1} parent=1 // loop_exit
      _
    %809 = vsyncpa [#allocation7], 1
    %s810 = scalar_lea.sflag [#allocation7], 1
    %811 = vsyncpa %s810, 1
  %812 = vsyncmov [#allocation3]
  %s813 = vpop.sfrf %812
  %p814 = scmp.eq.s32.totalorder %s813, 0
  %p815 = pneg %p814
  %817 = shalt.err (%p815)
  %s818 = scalar_lea.sflag [#allocation3], 1
  %819 = vsyncmov %s818
  %s820 = vpop.sfrf %819
  %p821 = scmp.eq.s32.totalorder %s820, 0
  %p822 = pneg %p821
  %824 = shalt.err (%p822)
  %s825 = scalar_lea.sflag [#allocation3], 2
  %826 = vsyncmov %s825
  %s827 = vpop.sfrf %826
  %p828 = scmp.eq.s32.totalorder %s827, 0
  %p829 = pneg %p828
  %831 = shalt.err (%p829)
  %s832 = scalar_lea.sflag [#allocation3], 3
  %833 = vsyncmov %s832
  %s834 = vpop.sfrf %833
  %p835 = scmp.eq.s32.totalorder %s834, 0
  %p836 = pneg %p835
  %838 = shalt.err (%p836)
  %s839 = scalar_lea.sflag [#allocation3], 4
  %840 = vsyncmov %s839
  %s841 = vpop.sfrf %840
  %p842 = scmp.eq.s32.totalorder %s841, 0
  %p843 = pneg %p842
  %845 = shalt.err (%p843)
  %s846 = scalar_lea.sflag [#allocation3], 5
  %847 = vsyncmov %s846
  %s848 = vpop.sfrf %847
  %p849 = scmp.eq.s32.totalorder %s848, 0
  %p850 = pneg %p849
  %852 = shalt.err (%p850)
  %s853 = scalar_lea.sflag [#allocation3], 6
  %854 = vsyncmov %s853
  %s855 = vpop.sfrf %854
  %p856 = scmp.eq.s32.totalorder %s855, 0
  %p857 = pneg %p856
  %859 = shalt.err (%p857)
  %s860 = scalar_lea.sflag [#allocation3], 7
  %861 = vsyncmov %s860
  %s862 = vpop.sfrf %861
  %p863 = scmp.eq.s32.totalorder %s862, 0
  %p864 = pneg %p863
  %866 = shalt.err (%p864)
  %s867 = scalar_lea.sflag [#allocation3], 8
  %868 = vsyncmov %s867
  %s869 = vpop.sfrf %868
  %p870 = scmp.eq.s32.totalorder %s869, 0
  %p871 = pneg %p870
  %873 = shalt.err (%p871)
  %s874 = scalar_lea.sflag [#allocation3], 9
  %875 = vsyncmov %s874
  %s876 = vpop.sfrf %875
  %p877 = scmp.eq.s32.totalorder %s876, 0
  %p878 = pneg %p877
  %880 = shalt.err (%p878)
  %s881 = scalar_lea.sflag [#allocation3], 10
  %882 = vsyncmov %s881
  %s883 = vpop.sfrf %882
  %p884 = scmp.eq.s32.totalorder %s883, 0
  %p885 = pneg %p884
  %887 = shalt.err (%p885)
  %s888 = scalar_lea.sflag [#allocation3], 11
  %889 = vsyncmov %s888
  %s890 = vpop.sfrf %889
  %p891 = scmp.eq.s32.totalorder %s890, 0
  %p892 = pneg %p891
  %894 = shalt.err (%p892)
  %s895 = scalar_lea.sflag [#allocation3], 12
  %896 = vsyncmov %s895
  %s897 = vpop.sfrf %896
  %p898 = scmp.eq.s32.totalorder %s897, 0
  %p899 = pneg %p898
  %901 = shalt.err (%p899)
  %s902 = scalar_lea.sflag [#allocation3], 13
  %903 = vsyncmov %s902
  %s904 = vpop.sfrf %903
  %p905 = scmp.eq.s32.totalorder %s904, 0
  %p906 = pneg %p905
  %908 = shalt.err (%p906)
  %s909 = scalar_lea.sflag [#allocation3], 14
  %910 = vsyncmov %s909
  %s911 = vpop.sfrf %910
  %p912 = scmp.eq.s32.totalorder %s911, 0
  %p913 = pneg %p912
  %915 = shalt.err (%p913)
  %s916 = scalar_lea.sflag [#allocation3], 15
  %917 = vsyncmov %s916
  %s918 = vpop.sfrf %917
  %p919 = scmp.eq.s32.totalorder %s918, 0
  %p920 = pneg %p919
  %922 = shalt.err (%p920)
  %s923 = scalar_lea.sflag [#allocation3], 16
  %924 = vsyncmov %s923
  %s925 = vpop.sfrf %924
  %p926 = scmp.eq.s32.totalorder %s925, 0
  %p927 = pneg %p926
  %929 = shalt.err (%p927)
  %s930 = scalar_lea.sflag [#allocation3], 17
  %931 = vsyncmov %s930
  %s932 = vpop.sfrf %931
  %p933 = scmp.eq.s32.totalorder %s932, 0
  %p934 = pneg %p933
  %936 = shalt.err (%p934)
  %s937 = scalar_lea.sflag [#allocation3], 18
  %938 = vsyncmov %s937
  %s939 = vpop.sfrf %938
  %p940 = scmp.eq.s32.totalorder %s939, 0
  %p941 = pneg %p940
  %943 = shalt.err (%p941)
  %s944 = scalar_lea.sflag [#allocation3], 19
  %945 = vsyncmov %s944
  %s946 = vpop.sfrf %945
  %p947 = scmp.eq.s32.totalorder %s946, 0
  %p948 = pneg %p947
  %950 = shalt.err (%p948)
  %s951 = scalar_lea.sflag [#allocation3], 20
  %952 = vsyncmov %s951
  %s953 = vpop.sfrf %952
  %p954 = scmp.eq.s32.totalorder %s953, 0
  %p955 = pneg %p954
  %957 = shalt.err (%p955)
  %s958 = scalar_lea.sflag [#allocation3], 21
  %959 = vsyncmov %s958
  %s960 = vpop.sfrf %959
  %p961 = scmp.eq.s32.totalorder %s960, 0
  %p962 = pneg %p961
  %964 = shalt.err (%p962)
  %s965 = scalar_lea.sflag [#allocation3], 22
  %966 = vsyncmov %s965
  %s967 = vpop.sfrf %966
  %p968 = scmp.eq.s32.totalorder %s967, 0
  %p969 = pneg %p968
  %971 = shalt.err (%p969)
  %s972 = scalar_lea.sflag [#allocation3], 23
  %973 = vsyncmov %s972
  %s974 = vpop.sfrf %973
  %p975 = scmp.eq.s32.totalorder %s974, 0
  %p976 = pneg %p975
  %978 = shalt.err (%p976)
  %s979 = scalar_lea.sflag [#allocation3], 24
  %980 = vsyncmov %s979
  %s981 = vpop.sfrf %980
  %p982 = scmp.eq.s32.totalorder %s981, 0
  %p983 = pneg %p982
  %985 = shalt.err (%p983)
  %s986 = scalar_lea.sflag [#allocation3], 25
  %987 = vsyncmov %s986
  %s988 = vpop.sfrf %987
  %p989 = scmp.eq.s32.totalorder %s988, 0
  %p990 = pneg %p989
  %992 = shalt.err (%p990)
  %s993 = scalar_lea.sflag [#allocation3], 26
  %994 = vsyncmov %s993
  %s995 = vpop.sfrf %994
  %p996 = scmp.eq.s32.totalorder %s995, 0
  %p997 = pneg %p996
  %999 = shalt.err (%p997)
  %s1000 = scalar_lea.sflag [#allocation3], 27
  %1001 = vsyncmov %s1000
  %s1002 = vpop.sfrf %1001
  %p1003 = scmp.eq.s32.totalorder %s1002, 0
  %p1004 = pneg %p1003
  %1006 = shalt.err (%p1004)
  %s1007 = scalar_lea.sflag [#allocation3], 28
  %1008 = vsyncmov %s1007
  %s1009 = vpop.sfrf %1008
  %p1010 = scmp.eq.s32.totalorder %s1009, 0
  %p1011 = pneg %p1010
  %1013 = shalt.err (%p1011)
  %s1014 = scalar_lea.sflag [#allocation3], 29
  %1015 = vsyncmov %s1014
  %s1016 = vpop.sfrf %1015
  %p1017 = scmp.eq.s32.totalorder %s1016, 0
  %p1018 = pneg %p1017
  %1020 = shalt.err (%p1018)
  %s1021 = scalar_lea.sflag [#allocation3], 30
  %1022 = vsyncmov %s1021
  %s1023 = vpop.sfrf %1022
  %p1024 = scmp.eq.s32.totalorder %s1023, 0
  %p1025 = pneg %p1024
  %1027 = shalt.err (%p1025)
  %s1028 = scalar_lea.sflag [#allocation3], 31
  %1029 = vsyncmov %s1028
  %s1030 = vpop.sfrf %1029
  %p1031 = scmp.eq.s32.totalorder %s1030, 0
  %p1032 = pneg %p1031
  %1034 = shalt.err (%p1032)

</llo_original>
